<compile_context>
chip_gen: v6e
topology: v6e:2x2x1
jax: 0.10.0
libtpu: 0.0.40
codegen_flags: <defaults>
</compile_context>

<pallas_src>
import numpy as np
import jax
import jax.numpy as jnp
from jax import lax
from jax.experimental import pallas as pl
from jax.experimental.pallas import tpu as pltpu

_BN_EPS = 1e-5

# Eigen / XLA float32 erf rational approximation: erf(x) ~= x * P(x^2) / Q(x^2)
_ERF_ALPHA = (-2.72614225801306e-10, 2.77068142495902e-08, -2.10102402082508e-06,
              -5.69250639462346e-05, -7.34990630326855e-04, -2.95459980854025e-03,
              -1.60960333262415e-02)
_ERF_BETA = (-1.45660718464996e-05, -2.13374055278905e-04, -1.68282697438203e-03,
             -7.37332916720468e-03, -1.42647390514189e-02)


def _poly(x, coeffs):
    p = jnp.full_like(x, coeffs[0])
    for c in coeffs[1:]:
        p = p * x + c
    return p


def _erf_f32(z):
    z = jnp.clip(z, -4.0, 4.0)
    z2 = z * z
    return z * _poly(z2, _ERF_ALPHA) / _poly(z2, _ERF_BETA)


def _gelu_exact(z):
    # matches nn.GELU() default (erf-based) numerics on TPU
    return 0.5 * z * (1.0 + _erf_f32(z * 0.7071067811865475))


# ----------------------------------------------------------------------------
# shared in-kernel helpers (lane-major layout: activations are (C, H*W))
# ----------------------------------------------------------------------------
def _col_masks(W, HW):
    # column-validity masks per horizontal tap offset (row wrap-around kill);
    # computed once per kernel invocation (cheap VPU work), reused by both 3x3 branches.
    col = lax.broadcasted_iota(jnp.int32, (1, HW), 1) % W
    return {dx: jnp.logical_and(col + dx >= 0, col + dx < W)
            for dx in (-2, -1, 1, 2)}


def _window(xpad_ref, xin, masks, dy, dx, W, HW, PAD):
    # shifted view of the flat zero-padded image: output pos n needs input n + dy*W + dx
    if dy == 0 and dx == 0:
        return xin                                 # center tap: reuse the loaded tile
    off = PAD + dy * W + dx                        # static Python int -> static slice
    win = xpad_ref[:, off:off + HW]
    if dx != 0:
        win = jnp.where(masks[dx], win, 0.0)
    return win


def _stage_tile(xpad_ref, xin, HW, PAD, first):
    # Zero the halo buffer only once; every grid step just overwrites the live middle.
    @pl.when(first)
    def _():
        xpad_ref[...] = jnp.zeros_like(xpad_ref)
    xpad_ref[:, PAD:PAD + HW] = xin


def _branch_convs(xin, xpad_ref, masks, w_pw, w_oc, w_dc, W, HW, PAD):
    """Raw (bias-free) outputs of the three conv branches, each shaped (C, HW)."""
    # pointwise 1x1 conv
    y1 = jnp.dot(w_pw, xin, preferred_element_type=jnp.float32)

    # im2col slabs: ordinary 3x3 (pad=1) and dilated 3x3 (dil=2, pad=2); one fused
    # K=9C matmul per branch instead of nine K=C accumulated dots.
    taps_oc, taps_dc = [], []
    for ky in range(3):
        for kx in range(3):
            taps_oc.append(_window(xpad_ref, xin, masks, ky - 1, kx - 1, W, HW, PAD))
            taps_dc.append(_window(xpad_ref, xin, masks, 2 * (ky - 1), 2 * (kx - 1),
                                   W, HW, PAD))
    y2 = jnp.dot(w_oc, jnp.concatenate(taps_oc, axis=0), preferred_element_type=jnp.float32)
    y3 = jnp.dot(w_dc, jnp.concatenate(taps_dc, axis=0), preferred_element_type=jnp.float32)
    return y1, y2, y3


# ----------------------------------------------------------------------------
# pass 1: global per-channel stats (sum, sum-of-squares) of the raw conv branches
# ----------------------------------------------------------------------------
def _make_stats_kernel(W, HW, PAD):
    def stats_kernel(x_ref, w_pw_ref, w_oc_ref, w_dc_ref, stats_ref, xpad_ref):
        first = pl.program_id(0) == 0

        @pl.when(first)
        def _():
            stats_ref[...] = jnp.zeros_like(stats_ref)   # resident accumulator block

        xin = x_ref[0]
        _stage_tile(xpad_ref, xin, HW, PAD, first)
        masks = _col_masks(W, HW)
        y1, y2, y3 = _branch_convs(xin, xpad_ref, masks,
                                   w_pw_ref[...], w_oc_ref[...], w_dc_ref[...],
                                   W, HW, PAD)
        stats_ref[...] += jnp.concatenate(
            [jnp.sum(y1, axis=1, keepdims=True),
             jnp.sum(y2, axis=1, keepdims=True),
             jnp.sum(y3, axis=1, keepdims=True),
             jnp.sum(y1 * y1, axis=1, keepdims=True),
             jnp.sum(y2 * y2, axis=1, keepdims=True),
             jnp.sum(y3 * y3, axis=1, keepdims=True)], axis=1)      # (C, 6)
    return stats_kernel


# ----------------------------------------------------------------------------
# pass 2: folded branch BN + ReLU + fused vote matmul; emit pre-BN vote + its stats
# ----------------------------------------------------------------------------
def _make_conv_vote_kernel(W, HW, PAD):
    def conv_vote_kernel(x_ref, w_pw_ref, w_oc_ref, w_dc_ref, w_v_ref, fold_ref,
                         v_ref, vstats_ref, xpad_ref):
        first = pl.program_id(0) == 0

        @pl.when(first)
        def _():
            vstats_ref[...] = jnp.zeros_like(vstats_ref)  # resident accumulator block

        xin = x_ref[0]
        _stage_tile(xpad_ref, xin, HW, PAD, first)
        masks = _col_masks(W, HW)
        y1, y2, y3 = _branch_convs(xin, xpad_ref, masks,
                                   w_pw_ref[...], w_oc_ref[...], w_dc_ref[...],
                                   W, HW, PAD)
        # folded train-mode BN (scale/shift from pass-1 global stats) + ReLU
        r1 = jnp.maximum(y1 * fold_ref[:, 0:1] + fold_ref[:, 3:4], 0.0)
        r2 = jnp.maximum(y2 * fold_ref[:, 1:2] + fold_ref[:, 4:5], 0.0)
        r3 = jnp.maximum(y3 * fold_ref[:, 2:3] + fold_ref[:, 5:6], 0.0)
        # fused vote 1x1 conv: one K=3C matmul over the concatenated branches
        v = jnp.dot(w_v_ref[...], jnp.concatenate([r1, r2, r3], axis=0),
                    preferred_element_type=jnp.float32)               # (C, HW)
        v_ref[0] = v

        vstats_ref[...] += jnp.concatenate(
            [jnp.sum(v, axis=1, keepdims=True),
             jnp.sum(v * v, axis=1, keepdims=True)], axis=1)          # (C, 2)
    return conv_vote_kernel


# ----------------------------------------------------------------------------
# pass 3: folded vote BN + exact GELU + residual gate (pure lane-dense elementwise)
# ----------------------------------------------------------------------------
def _gate_kernel(x_ref, v_ref, fold_ref, o_ref):
    a = fold_ref[:, 0:1]
    c = fold_ref[:, 1:2]
    x = x_ref[0]
    gate = _gelu_exact(v_ref[0] * a + c)
    o_ref[0] = x + x * gate


# ----------------------------------------------------------------------------
# wrapper
# ----------------------------------------------------------------------------
def multi_scale_attention_gate(x_nchw, params):
    """x_nchw: (B, C, H, W) float32 -> (B, C, H, W) float32."""
    B, C, H, W = x_nchw.shape
    HW = H * W
    PAD = 2 * W + 2                       # max |dy*W + dx| halo for both 3x3 convs
    x = x_nchw.reshape(B, C, HW).astype(jnp.float32)   # free reshape (no transpose/pad)

    (w_pw, p_pw, w_oc, p_oc, w_dc, p_dc, w_v, p_v) = params
    # kernel-layout weight matrices (Cout leading); O(C^2) one-time work
    w_pw_m = jnp.transpose(w_pw, (1, 0))                           # (Cout, Cin)
    w_oc_m = jnp.transpose(w_oc, (3, 0, 1, 2)).reshape(C, 9 * C)   # (Cout, 9*Cin)
    w_dc_m = jnp.transpose(w_dc, (3, 0, 1, 2)).reshape(C, 9 * C)
    w_v_m = jnp.transpose(w_v, (1, 0))                             # (Cout, 3*Cin)

    x_spec = pl.BlockSpec((1, C, HW), lambda b: (b, 0, 0))

    def full_spec(a):
        return pl.BlockSpec(a.shape, lambda b, _nd=a.ndim: (0,) * _nd)

    tile_bytes = C * HW * 4
    xpad_scratch = pltpu.VMEM((C, HW + 2 * PAD), jnp.float32)

    def cparams(sem, n_tiles):
        # explicit VMEM budget: double-buffered tiles + scratch + headroom, clamped so
        # it also fits v7x's 64 MiB physical VMEM (re-derive block sizes for huge H*W).
        need = 4 * n_tiles * tile_bytes + (4 << 20)
        return pltpu.CompilerParams(
            dimension_semantics=sem,
            vmem_limit_bytes=int(min(max(need, 8 << 20), 48 << 20)))

    # ---- pass 1: per-channel stats of the three raw conv branches ---------------
    stats = pl.pallas_call(
        _make_stats_kernel(W, HW, PAD),
        out_shape=jax.ShapeDtypeStruct((C, 6), jnp.float32),
        grid=(B,),
        in_specs=[x_spec, full_spec(w_pw_m), full_spec(w_oc_m), full_spec(w_dc_m)],
        out_specs=pl.BlockSpec((C, 6), lambda b: (0, 0)),
        scratch_shapes=[xpad_scratch],
        compiler_params=cparams(("arbitrary",), 1),
    )(x, w_pw_m, w_oc_m, w_dc_m)

    # fold train-mode BN into per-channel scale/shift (conv bias cancels vs. batch mean)
    n_tot = jnp.float32(B * HW)
    means = stats[:, 0:3] / n_tot
    varis = jnp.maximum(stats[:, 3:6] / n_tot - means * means, 0.0)
    gammas = jnp.stack([p_pw[1], p_oc[1], p_dc[1]], axis=1)        # (C, 3)
    betas = jnp.stack([p_pw[2], p_oc[2], p_dc[2]], axis=1)
    a_br = gammas * lax.rsqrt(varis + _BN_EPS)
    c_br = betas - means * a_br
    branch_fold = jnp.concatenate([a_br, c_br], axis=1)            # (C, 6)

    # ---- pass 2: branches + ReLU + fused vote conv; pre-BN vote + its stats -----
    v_flat, vstats = pl.pallas_call(
        _make_conv_vote_kernel(W, HW, PAD),
        out_shape=(jax.ShapeDtypeStruct((B, C, HW), jnp.float32),
                   jax.ShapeDtypeStruct((C, 2), jnp.float32)),
        grid=(B,),
        in_specs=[x_spec, full_spec(w_pw_m), full_spec(w_oc_m), full_spec(w_dc_m),
                  full_spec(w_v_m), full_spec(branch_fold)],
        out_specs=(pl.BlockSpec((1, C, HW), lambda b: (b, 0, 0)),
                   pl.BlockSpec((C, 2), lambda b: (0, 0))),
        scratch_shapes=[xpad_scratch],
        compiler_params=cparams(("arbitrary",), 2),
    )(x, w_pw_m, w_oc_m, w_dc_m, w_v_m, branch_fold)

    mean_v = vstats[:, 0] / n_tot
    var_v = jnp.maximum(vstats[:, 1] / n_tot - mean_v * mean_v, 0.0)
    a_v = p_v[1] * lax.rsqrt(var_v + _BN_EPS)
    c_v = p_v[2] - mean_v * a_v
    vote_fold = jnp.stack([a_v, c_v], axis=1)                      # (C, 2)

    # ---- pass 3: vote BN + exact GELU + residual gate ('parallel', lane-dense) ---
    # output is aliased onto the intermediate vote tensor (no extra HBM allocation)
    out = pl.pallas_call(
        _gate_kernel,
        out_shape=jax.ShapeDtypeStruct((B, C, HW), jnp.float32),
        grid=(B,),
        in_specs=[x_spec, pl.BlockSpec((1, C, HW), lambda b: (b, 0, 0)),
                  full_spec(vote_fold)],
        out_specs=pl.BlockSpec((1, C, HW), lambda b: (b, 0, 0)),
        input_output_aliases={1: 0},
        compiler_params=cparams(("parallel",), 3),
    )(x, v_flat, vote_fold)

    return out.reshape(B, C, H, W)


# ----------------------------------------------------------------------------
# params + pure-JAX reference (mirrors the PyTorch forward)
# ----------------------------------------------------------------------------
def init_params(key, C):
    """Deterministic synthetic parameters (shapes follow the PyTorch module)."""
    ks = jax.random.split(key, 16)

    def u(k, shape, fan_in):
        bound = 1.0 / np.sqrt(fan_in)
        return jax.random.uniform(k, shape, jnp.float32, -bound, bound)

    w_pw = u(ks[0], (C, C), C)                 # 1x1 conv, (Cin, Cout)
    b_pw = u(ks[1], (C,), C)
    w_oc = u(ks[2], (3, 3, C, C), 9 * C)       # 3x3 conv, HWIO
    b_oc = u(ks[3], (C,), 9 * C)
    w_dc = u(ks[4], (3, 3, C, C), 9 * C)       # 3x3 dilated conv, HWIO
    b_dc = u(ks[5], (C,), 9 * C)
    w_v = u(ks[6], (3 * C, C), 3 * C)          # vote 1x1 conv, (3C, C)
    b_v = u(ks[7], (C,), 3 * C)

    def bn_gb(kg, kb):
        g = 1.0 + 0.1 * jax.random.normal(kg, (C,), jnp.float32)
        b = 0.1 * jax.random.normal(kb, (C,), jnp.float32)
        return g, b

    g_pw, be_pw = bn_gb(ks[8], ks[9])
    g_oc, be_oc = bn_gb(ks[10], ks[11])
    g_dc, be_dc = bn_gb(ks[12], ks[13])
    g_v, be_v = bn_gb(ks[14], ks[15])

    pack = lambda b, g, be: jnp.stack([b, g, be], axis=0)  # (3, C): [conv_bias, gamma, beta]
    return (w_pw, pack(b_pw, g_pw, be_pw),
            w_oc, pack(b_oc, g_oc, be_oc),
            w_dc, pack(b_dc, g_dc, be_dc),
            w_v, pack(b_v, g_v, be_v))


def reference(x_nchw, params):
    """Pure-JAX reference (train-mode BN, exact GELU)."""
    x = jnp.transpose(x_nchw, (0, 2, 3, 1)).astype(jnp.float32)
    B, H, W, C = x.shape
    w_pw, p_pw, w_oc, p_oc, w_dc, p_dc, w_v, p_v = params

    def conv(xx, w, padding, rhs_dilation=(1, 1)):
        return lax.conv_general_dilated(
            xx, w, window_strides=(1, 1), padding=padding, rhs_dilation=rhs_dilation,
            dimension_numbers=('NHWC', 'HWIO', 'NHWC'))

    def bn(y, p):
        y = y + p[0]
        mu = jnp.mean(y, axis=(0, 1, 2), keepdims=True)
        var = jnp.mean(jnp.square(y - mu), axis=(0, 1, 2), keepdims=True)
        return p[1] * (y - mu) * lax.rsqrt(var + _BN_EPS) + p[2]

    x1 = bn(conv(x, w_pw.reshape(1, 1, C, C), [(0, 0), (0, 0)]), p_pw)
    x2 = bn(conv(x, w_oc, [(1, 1), (1, 1)]), p_oc)
    x3 = bn(conv(x, w_dc, [(2, 2), (2, 2)], (2, 2)), p_dc)
    cat = jax.nn.relu(jnp.concatenate([x1, x2, x3], axis=-1))
    v = bn(jnp.einsum('bhwc,cd->bhwd', cat, w_v), p_v)
    gate = jax.nn.gelu(v, approximate=False)
    out = x + x * gate
    return jnp.transpose(out, (0, 3, 1, 2))


if __name__ == "__main__":
    B, C, H, W = 2, 4, 16, 16
    key = jax.random.PRNGKey(0)
    kx, kp = jax.random.split(key)
    x = jax.random.normal(kx, (B, C, H, W), jnp.float32)
    params = init_params(kp, C)

    msag = jax.jit(multi_scale_attention_gate)
    out = jax.block_until_ready(msag(x, params))

    ref = jax.block_until_ready(reference(x, params))
    np.testing.assert_allclose(np.asarray(out), np.asarray(ref), rtol=2e-3, atol=2e-3)

    print("KERNEL_OK")
</pallas_src>

<mosaic_0001>
module attributes {stable_mosaic.version = 11 : i64} {
  func.func @stats_kernel(%arg0: i32, %arg1: memref<1x4x256xf32, #tpu.memory_space<vmem>>, %arg2: memref<4x4xf32, #tpu.memory_space<vmem>>, %arg3: memref<4x36xf32, #tpu.memory_space<vmem>>, %arg4: memref<4x36xf32, #tpu.memory_space<vmem>>, %arg5: memref<4x6xf32, #tpu.memory_space<vmem>>, %arg6: memref<4x324xf32, #tpu.memory_space<vmem>>) attributes {dimension_semantics = [#tpu.dimension_semantics<arbitrary>], iteration_bounds = array<i64: 2>, scalar_prefetch = 0 : i64, scratch_operands = 1 : i64, tpu.core_type = #tpu.core_type<tc>, window_params = [{transform_indices = @transform_0, window_bounds = array<i64: 1, 4, 256>}, {pipeline_mode = #tpu.pipeline_mode<synchronous>, transform_indices = @transform_1, window_bounds = array<i64: 4, 4>}, {pipeline_mode = #tpu.pipeline_mode<synchronous>, transform_indices = @transform_2, window_bounds = array<i64: 4, 36>}, {pipeline_mode = #tpu.pipeline_mode<synchronous>, transform_indices = @transform_3, window_bounds = array<i64: 4, 36>}, {pipeline_mode = #tpu.pipeline_mode<synchronous>, transform_indices = @transform_4, window_bounds = array<i64: 4, 6>}]} {
    %c0_i32 = arith.constant 0 : i32
    %0 = arith.cmpi eq, %arg0, %c0_i32 : i32
    %1 = arith.extui %0 : i1 to i32
    %c0_i32_0 = arith.constant 0 : i32
    %2 = arith.cmpi ne, %1, %c0_i32_0 : i32
    scf.if %2 {
      %cst_69 = arith.constant 0.000000e+00 : f32
      %152 = vector.broadcast %cst_69 : f32 to vector<4x6xf32>
      %c0_70 = arith.constant 0 : index
      %c0_71 = arith.constant 0 : index
      %153 = vector.load %arg5[%c0_70, %c0_71] : memref<4x6xf32, #tpu.memory_space<vmem>>, vector<4x6xf32>
      tpu.vector_store %arg5[%c0_70, %c0_71], %152 {strides = array<i32>} : memref<4x6xf32, #tpu.memory_space<vmem>>, vector<4x6xf32>,
    } else {
    }
    %c0 = arith.constant 0 : index
    %c0_1 = arith.constant 0 : index
    %c0_2 = arith.constant 0 : index
    %3 = vector.load %arg1[%c0, %c0_1, %c0_2] : memref<1x4x256xf32, #tpu.memory_space<vmem>>, vector<1x4x256xf32>
    %4 = vector.shape_cast %3 : vector<1x4x256xf32> to vector<4x256xf32>
    %5 = arith.extui %0 : i1 to i32
    %c0_i32_3 = arith.constant 0 : i32
    %6 = arith.cmpi ne, %5, %c0_i32_3 : i32
    scf.if %6 {
      %cst_69 = arith.constant 0.000000e+00 : f32
      %152 = vector.broadcast %cst_69 : f32 to vector<4x324xf32>
      %c0_70 = arith.constant 0 : index
      %c0_71 = arith.constant 0 : index
      %153 = vector.load %arg6[%c0_70, %c0_71] : memref<4x324xf32, #tpu.memory_space<vmem>>, vector<4x324xf32>
      tpu.vector_store %arg6[%c0_70, %c0_71], %152 {strides = array<i32>} : memref<4x324xf32, #tpu.memory_space<vmem>>, vector<4x324xf32>,
    } else {
    }
    %c0_4 = arith.constant 0 : index
    %c34 = arith.constant 34 : index
    %7 = vector.load %arg6[%c0_4, %c34] : memref<4x324xf32, #tpu.memory_space<vmem>>, vector<4x256xf32>
    tpu.vector_store %arg6[%c0_4, %c34], %4 {strides = array<i32>} : memref<4x324xf32, #tpu.memory_space<vmem>>, vector<4x256xf32>,
    %8 = tpu.iota {dimensions = array<i32: 1>} : vector<1x256xi32>
    %c16_i32 = arith.constant 16 : i32
    %c0_i32_5 = arith.constant 0 : i32
    %9 = arith.cmpi eq, %c16_i32, %c0_i32_5 : i32
    %c1_i32 = arith.constant 1 : i32
    %10 = arith.select %9, %c1_i32, %c16_i32 : i32
    %11 = vector.broadcast %10 : i32 to vector<1x256xi32>
    %12 = arith.remsi %8, %11 : vector<1x256xi32>
    %c0_i32_6 = arith.constant 0 : i32
    %13 = vector.broadcast %c0_i32_6 : i32 to vector<1x256xi32>
    %14 = arith.cmpi ne, %12, %13 : vector<1x256xi32>
    %c0_i32_7 = arith.constant 0 : i32
    %15 = vector.broadcast %c0_i32_7 : i32 to vector<1x256xi32>
    %16 = arith.cmpi slt, %12, %15 : vector<1x256xi32>
    %c0_i32_8 = arith.constant 0 : i32
    %17 = arith.cmpi slt, %10, %c0_i32_8 : i32
    %18 = vector.broadcast %17 : i1 to vector<1x256xi1>
    %19 = vector.broadcast %18 : vector<1x256xi1> to vector<1x256xi1>
    %20 = arith.xori %16, %19 : vector<1x256xi1>
    %21 = arith.andi %20, %14 : vector<1x256xi1>
    %22 = vector.broadcast %10 : i32 to vector<1x256xi32>
    %23 = arith.addi %12, %22 : vector<1x256xi32>
    %24 = arith.select %21, %23, %12 : vector<1x256xi1>, vector<1x256xi32>
    %c-2_i32 = arith.constant -2 : i32
    %25 = vector.broadcast %c-2_i32 : i32 to vector<1x256xi32>
    %26 = arith.addi %24, %25 : vector<1x256xi32>
    %c0_i32_9 = arith.constant 0 : i32
    %27 = vector.broadcast %c0_i32_9 : i32 to vector<1x256xi32>
    %28 = arith.cmpi sge, %26, %27 : vector<1x256xi32>
    %c-2_i32_10 = arith.constant -2 : i32
    %29 = vector.broadcast %c-2_i32_10 : i32 to vector<1x256xi32>
    %30 = arith.addi %24, %29 : vector<1x256xi32>
    %c16_i32_11 = arith.constant 16 : i32
    %31 = vector.broadcast %c16_i32_11 : i32 to vector<1x256xi32>
    %32 = arith.cmpi slt, %30, %31 : vector<1x256xi32>
    %33 = arith.andi %28, %32 : vector<1x256xi1>
    %c-1_i32 = arith.constant -1 : i32
    %34 = vector.broadcast %c-1_i32 : i32 to vector<1x256xi32>
    %35 = arith.addi %24, %34 : vector<1x256xi32>
    %c0_i32_12 = arith.constant 0 : i32
    %36 = vector.broadcast %c0_i32_12 : i32 to vector<1x256xi32>
    %37 = arith.cmpi sge, %35, %36 : vector<1x256xi32>
    %c-1_i32_13 = arith.constant -1 : i32
    %38 = vector.broadcast %c-1_i32_13 : i32 to vector<1x256xi32>
    %39 = arith.addi %24, %38 : vector<1x256xi32>
    %c16_i32_14 = arith.constant 16 : i32
    %40 = vector.broadcast %c16_i32_14 : i32 to vector<1x256xi32>
    %41 = arith.cmpi slt, %39, %40 : vector<1x256xi32>
    %42 = arith.andi %37, %41 : vector<1x256xi1>
    %c1_i32_15 = arith.constant 1 : i32
    %43 = vector.broadcast %c1_i32_15 : i32 to vector<1x256xi32>
    %44 = arith.addi %24, %43 : vector<1x256xi32>
    %c0_i32_16 = arith.constant 0 : i32
    %45 = vector.broadcast %c0_i32_16 : i32 to vector<1x256xi32>
    %46 = arith.cmpi sge, %44, %45 : vector<1x256xi32>
    %c1_i32_17 = arith.constant 1 : i32
    %47 = vector.broadcast %c1_i32_17 : i32 to vector<1x256xi32>
    %48 = arith.addi %24, %47 : vector<1x256xi32>
    %c16_i32_18 = arith.constant 16 : i32
    %49 = vector.broadcast %c16_i32_18 : i32 to vector<1x256xi32>
    %50 = arith.cmpi slt, %48, %49 : vector<1x256xi32>
    %51 = arith.andi %46, %50 : vector<1x256xi1>
    %c2_i32 = arith.constant 2 : i32
    %52 = vector.broadcast %c2_i32 : i32 to vector<1x256xi32>
    %53 = arith.addi %24, %52 : vector<1x256xi32>
    %c0_i32_19 = arith.constant 0 : i32
    %54 = vector.broadcast %c0_i32_19 : i32 to vector<1x256xi32>
    %55 = arith.cmpi sge, %53, %54 : vector<1x256xi32>
    %c2_i32_20 = arith.constant 2 : i32
    %56 = vector.broadcast %c2_i32_20 : i32 to vector<1x256xi32>
    %57 = arith.addi %24, %56 : vector<1x256xi32>
    %c16_i32_21 = arith.constant 16 : i32
    %58 = vector.broadcast %c16_i32_21 : i32 to vector<1x256xi32>
    %59 = arith.cmpi slt, %57, %58 : vector<1x256xi32>
    %60 = arith.andi %55, %59 : vector<1x256xi1>
    %c0_22 = arith.constant 0 : index
    %c0_23 = arith.constant 0 : index
    %61 = vector.load %arg2[%c0_22, %c0_23] : memref<4x4xf32, #tpu.memory_space<vmem>>, vector<4x4xf32>
    %c0_24 = arith.constant 0 : index
    %c0_25 = arith.constant 0 : index
    %62 = vector.load %arg3[%c0_24, %c0_25] : memref<4x36xf32, #tpu.memory_space<vmem>>, vector<4x36xf32>
    %c0_26 = arith.constant 0 : index
    %c0_27 = arith.constant 0 : index
    %63 = vector.load %arg4[%c0_26, %c0_27] : memref<4x36xf32, #tpu.memory_space<vmem>>, vector<4x36xf32>
    %cst = arith.constant dense<0.000000e+00> : vector<4x256xf32>
    %64 = tpu.matmul %61, %4, %cst {dimension_numbers = #tpu.dot_dimension_numbers<[1], [0], [0], [1], [0, 0, 1, 1], [], []>} : vector<4x4xf32>, vector<4x256xf32>, vector<4x256xf32> -> vector<4x256xf32>
    %c0_28 = arith.constant 0 : index
    %c17 = arith.constant 17 : index
    %65 = vector.load %arg6[%c0_28, %c17] : memref<4x324xf32, #tpu.memory_space<vmem>>, vector<4x256xf32>
    %cst_29 = arith.constant 0.000000e+00 : f32
    %66 = vector.shape_cast %42 : vector<1x256xi1> to vector<1x256xi1>
    %67 = vector.broadcast %66 : vector<1x256xi1> to vector<4x256xi1>
    %68 = vector.broadcast %cst_29 : f32 to vector<4x256xf32>
    %69 = arith.select %67, %65, %68 : vector<4x256xi1>, vector<4x256xf32>
    %c0_30 = arith.constant 0 : index
    %c0_31 = arith.constant 0 : index
    %70 = vector.load %arg6[%c0_30, %c0_31] : memref<4x324xf32, #tpu.memory_space<vmem>>, vector<4x256xf32>
    %cst_32 = arith.constant 0.000000e+00 : f32
    %71 = vector.shape_cast %33 : vector<1x256xi1> to vector<1x256xi1>
    %72 = vector.broadcast %71 : vector<1x256xi1> to vector<4x256xi1>
    %73 = vector.broadcast %cst_32 : f32 to vector<4x256xf32>
    %74 = arith.select %72, %70, %73 : vector<4x256xi1>, vector<4x256xf32>
    %c0_33 = arith.constant 0 : index
    %c18 = arith.constant 18 : index
    %75 = vector.load %arg6[%c0_33, %c18] : memref<4x324xf32, #tpu.memory_space<vmem>>, vector<4x256xf32>
    %c0_34 = arith.constant 0 : index
    %c2 = arith.constant 2 : index
    %76 = vector.load %arg6[%c0_34, %c2] : memref<4x324xf32, #tpu.memory_space<vmem>>, vector<4x256xf32>
    %c0_35 = arith.constant 0 : index
    %c19 = arith.constant 19 : index
    %77 = vector.load %arg6[%c0_35, %c19] : memref<4x324xf32, #tpu.memory_space<vmem>>, vector<4x256xf32>
    %cst_36 = arith.constant 0.000000e+00 : f32
    %78 = vector.shape_cast %51 : vector<1x256xi1> to vector<1x256xi1>
    %79 = vector.broadcast %78 : vector<1x256xi1> to vector<4x256xi1>
    %80 = vector.broadcast %cst_36 : f32 to vector<4x256xf32>
    %81 = arith.select %79, %77, %80 : vector<4x256xi1>, vector<4x256xf32>
    %c0_37 = arith.constant 0 : index
    %c4 = arith.constant 4 : index
    %82 = vector.load %arg6[%c0_37, %c4] : memref<4x324xf32, #tpu.memory_space<vmem>>, vector<4x256xf32>
    %cst_38 = arith.constant 0.000000e+00 : f32
    %83 = vector.shape_cast %60 : vector<1x256xi1> to vector<1x256xi1>
    %84 = vector.broadcast %83 : vector<1x256xi1> to vector<4x256xi1>
    %85 = vector.broadcast %cst_38 : f32 to vector<4x256xf32>
    %86 = arith.select %84, %82, %85 : vector<4x256xi1>, vector<4x256xf32>
    %c0_39 = arith.constant 0 : index
    %c33 = arith.constant 33 : index
    %87 = vector.load %arg6[%c0_39, %c33] : memref<4x324xf32, #tpu.memory_space<vmem>>, vector<4x256xf32>
    %cst_40 = arith.constant 0.000000e+00 : f32
    %88 = vector.shape_cast %42 : vector<1x256xi1> to vector<1x256xi1>
    %89 = vector.broadcast %88 : vector<1x256xi1> to vector<4x256xi1>
    %90 = vector.broadcast %cst_40 : f32 to vector<4x256xf32>
    %91 = arith.select %89, %87, %90 : vector<4x256xi1>, vector<4x256xf32>
    %c0_41 = arith.constant 0 : index
    %c32 = arith.constant 32 : index
    %92 = vector.load %arg6[%c0_41, %c32] : memref<4x324xf32, #tpu.memory_space<vmem>>, vector<4x256xf32>
    %cst_42 = arith.constant 0.000000e+00 : f32
    %93 = vector.shape_cast %33 : vector<1x256xi1> to vector<1x256xi1>
    %94 = vector.broadcast %93 : vector<1x256xi1> to vector<4x256xi1>
    %95 = vector.broadcast %cst_42 : f32 to vector<4x256xf32>
    %96 = arith.select %94, %92, %95 : vector<4x256xi1>, vector<4x256xf32>
    %c0_43 = arith.constant 0 : index
    %c35 = arith.constant 35 : index
    %97 = vector.load %arg6[%c0_43, %c35] : memref<4x324xf32, #tpu.memory_space<vmem>>, vector<4x256xf32>
    %cst_44 = arith.constant 0.000000e+00 : f32
    %98 = vector.shape_cast %51 : vector<1x256xi1> to vector<1x256xi1>
    %99 = vector.broadcast %98 : vector<1x256xi1> to vector<4x256xi1>
    %100 = vector.broadcast %cst_44 : f32 to vector<4x256xf32>
    %101 = arith.select %99, %97, %100 : vector<4x256xi1>, vector<4x256xf32>
    %c0_45 = arith.constant 0 : index
    %c36 = arith.constant 36 : index
    %102 = vector.load %arg6[%c0_45, %c36] : memref<4x324xf32, #tpu.memory_space<vmem>>, vector<4x256xf32>
    %cst_46 = arith.constant 0.000000e+00 : f32
    %103 = vector.shape_cast %60 : vector<1x256xi1> to vector<1x256xi1>
    %104 = vector.broadcast %103 : vector<1x256xi1> to vector<4x256xi1>
    %105 = vector.broadcast %cst_46 : f32 to vector<4x256xf32>
    %106 = arith.select %104, %102, %105 : vector<4x256xi1>, vector<4x256xf32>
    %c0_47 = arith.constant 0 : index
    %c49 = arith.constant 49 : index
    %107 = vector.load %arg6[%c0_47, %c49] : memref<4x324xf32, #tpu.memory_space<vmem>>, vector<4x256xf32>
    %cst_48 = arith.constant 0.000000e+00 : f32
    %108 = vector.shape_cast %42 : vector<1x256xi1> to vector<1x256xi1>
    %109 = vector.broadcast %108 : vector<1x256xi1> to vector<4x256xi1>
    %110 = vector.broadcast %cst_48 : f32 to vector<4x256xf32>
    %111 = arith.select %109, %107, %110 : vector<4x256xi1>, vector<4x256xf32>
    %c0_49 = arith.constant 0 : index
    %c64 = arith.constant 64 : index
    %112 = vector.load %arg6[%c0_49, %c64] : memref<4x324xf32, #tpu.memory_space<vmem>>, vector<4x256xf32>
    %cst_50 = arith.constant 0.000000e+00 : f32
    %113 = vector.shape_cast %33 : vector<1x256xi1> to vector<1x256xi1>
    %114 = vector.broadcast %113 : vector<1x256xi1> to vector<4x256xi1>
    %115 = vector.broadcast %cst_50 : f32 to vector<4x256xf32>
    %116 = arith.select %114, %112, %115 : vector<4x256xi1>, vector<4x256xf32>
    %c0_51 = arith.constant 0 : index
    %c50 = arith.constant 50 : index
    %117 = vector.load %arg6[%c0_51, %c50] : memref<4x324xf32, #tpu.memory_space<vmem>>, vector<4x256xf32>
    %c0_52 = arith.constant 0 : index
    %c66 = arith.constant 66 : index
    %118 = vector.load %arg6[%c0_52, %c66] : memref<4x324xf32, #tpu.memory_space<vmem>>, vector<4x256xf32>
    %c0_53 = arith.constant 0 : index
    %c51 = arith.constant 51 : index
    %119 = vector.load %arg6[%c0_53, %c51] : memref<4x324xf32, #tpu.memory_space<vmem>>, vector<4x256xf32>
    %cst_54 = arith.constant 0.000000e+00 : f32
    %120 = vector.shape_cast %51 : vector<1x256xi1> to vector<1x256xi1>
    %121 = vector.broadcast %120 : vector<1x256xi1> to vector<4x256xi1>
    %122 = vector.broadcast %cst_54 : f32 to vector<4x256xf32>
    %123 = arith.select %121, %119, %122 : vector<4x256xi1>, vector<4x256xf32>
    %c0_55 = arith.constant 0 : index
    %c68 = arith.constant 68 : index
    %124 = vector.load %arg6[%c0_55, %c68] : memref<4x324xf32, #tpu.memory_space<vmem>>, vector<4x256xf32>
    %cst_56 = arith.constant 0.000000e+00 : f32
    %125 = vector.shape_cast %60 : vector<1x256xi1> to vector<1x256xi1>
    %126 = vector.broadcast %125 : vector<1x256xi1> to vector<4x256xi1>
    %127 = vector.broadcast %cst_56 : f32 to vector<4x256xf32>
    %128 = arith.select %126, %124, %127 : vector<4x256xi1>, vector<4x256xf32>
    %129 = tpu.concatenate %69, %75, %81, %91, %4, %101, %111, %117, %123 in 0 : vector<4x256xf32>, vector<4x256xf32>, vector<4x256xf32>, vector<4x256xf32>, vector<4x256xf32>, vector<4x256xf32>, vector<4x256xf32>, vector<4x256xf32>, vector<4x256xf32> -> vector<36x256xf32>
    %cst_57 = arith.constant dense<0.000000e+00> : vector<4x256xf32>
    %130 = tpu.matmul %62, %129, %cst_57 {dimension_numbers = #tpu.dot_dimension_numbers<[1], [0], [0], [1], [0, 0, 1, 1], [], []>} : vector<4x36xf32>, vector<36x256xf32>, vector<4x256xf32> -> vector<4x256xf32>
    %131 = tpu.concatenate %74, %76, %86, %96, %4, %106, %116, %118, %128 in 0 : vector<4x256xf32>, vector<4x256xf32>, vector<4x256xf32>, vector<4x256xf32>, vector<4x256xf32>, vector<4x256xf32>, vector<4x256xf32>, vector<4x256xf32>, vector<4x256xf32> -> vector<36x256xf32>
    %cst_58 = arith.constant dense<0.000000e+00> : vector<4x256xf32>
    %132 = tpu.matmul %63, %131, %cst_58 {dimension_numbers = #tpu.dot_dimension_numbers<[1], [0], [0], [1], [0, 0, 1, 1], [], []>} : vector<4x36xf32>, vector<36x256xf32>, vector<4x256xf32> -> vector<4x256xf32>
    %c0_59 = arith.constant 0 : index
    %c0_60 = arith.constant 0 : index
    %133 = vector.load %arg5[%c0_59, %c0_60] : memref<4x6xf32, #tpu.memory_space<vmem>>, vector<4x6xf32>
    %cst_61 = arith.constant dense<0.000000e+00> : vector<4xf32>
    %134 = vector.multi_reduction <add>, %64, %cst_61 [1] : vector<4x256xf32> to vector<4xf32>
    %135 = vector.shape_cast %134 : vector<4xf32> to vector<4x1xf32>
    %cst_62 = arith.constant dense<0.000000e+00> : vector<4xf32>
    %136 = vector.multi_reduction <add>, %130, %cst_62 [1] : vector<4x256xf32> to vector<4xf32>
    %137 = vector.shape_cast %136 : vector<4xf32> to vector<4x1xf32>
    %cst_63 = arith.constant dense<0.000000e+00> : vector<4xf32>
    %138 = vector.multi_reduction <add>, %132, %cst_63 [1] : vector<4x256xf32> to vector<4xf32>
    %139 = vector.shape_cast %138 : vector<4xf32> to vector<4x1xf32>
    %140 = arith.mulf %64, %64 : vector<4x256xf32>
    %cst_64 = arith.constant dense<0.000000e+00> : vector<4xf32>
    %141 = vector.multi_reduction <add>, %140, %cst_64 [1] : vector<4x256xf32> to vector<4xf32>
    %142 = vector.shape_cast %141 : vector<4xf32> to vector<4x1xf32>
    %143 = arith.mulf %130, %130 : vector<4x256xf32>
    %cst_65 = arith.constant dense<0.000000e+00> : vector<4xf32>
    %144 = vector.multi_reduction <add>, %143, %cst_65 [1] : vector<4x256xf32> to vector<4xf32>
    %145 = vector.shape_cast %144 : vector<4xf32> to vector<4x1xf32>
    %146 = arith.mulf %132, %132 : vector<4x256xf32>
    %cst_66 = arith.constant dense<0.000000e+00> : vector<4xf32>
    %147 = vector.multi_reduction <add>, %146, %cst_66 [1] : vector<4x256xf32> to vector<4xf32>
    %148 = vector.shape_cast %147 : vector<4xf32> to vector<4x1xf32>
    %149 = tpu.concatenate %135, %137, %139, %142, %145, %148 in 1 : vector<4x1xf32>, vector<4x1xf32>, vector<4x1xf32>, vector<4x1xf32>, vector<4x1xf32>, vector<4x1xf32> -> vector<4x6xf32>
    %150 = arith.addf %133, %149 : vector<4x6xf32>
    %c0_67 = arith.constant 0 : index
    %c0_68 = arith.constant 0 : index
    %151 = vector.load %arg5[%c0_67, %c0_68] : memref<4x6xf32, #tpu.memory_space<vmem>>, vector<4x6xf32>
    tpu.vector_store %arg5[%c0_67, %c0_68], %150 {strides = array<i32>} : memref<4x6xf32, #tpu.memory_space<vmem>>, vector<4x6xf32>,
    return
  }
  func.func @transform_0(%arg0: i32) -> (i32, i32, i32) {
    %c0_i32 = arith.constant 0 : i32
    %c0_i32_0 = arith.constant 0 : i32
    %c0_i32_1 = arith.constant 0 : i32
    return %arg0, %c0_i32, %c0_i32_0 : i32, i32, i32
  }
  func.func @transform_1(%arg0: i32) -> (i32, i32) {
    %c0_i32 = arith.constant 0 : i32
    %c0_i32_0 = arith.constant 0 : i32
    %c0_i32_1 = arith.constant 0 : i32
    return %c0_i32, %c0_i32_0 : i32, i32
  }
  func.func @transform_2(%arg0: i32) -> (i32, i32) {
    %c0_i32 = arith.constant 0 : i32
    %c0_i32_0 = arith.constant 0 : i32
    %c0_i32_1 = arith.constant 0 : i32
    return %c0_i32, %c0_i32_0 : i32, i32
  }
  func.func @transform_3(%arg0: i32) -> (i32, i32) {
    %c0_i32 = arith.constant 0 : i32
    %c0_i32_0 = arith.constant 0 : i32
    %c0_i32_1 = arith.constant 0 : i32
    return %c0_i32, %c0_i32_0 : i32, i32
  }
  func.func @transform_4(%arg0: i32) -> (i32, i32) {
    %c0_i32 = arith.constant 0 : i32
    %c0_i32_0 = arith.constant 0 : i32
    %c0_i32_1 = arith.constant 0 : i32
    return %c0_i32, %c0_i32_0 : i32, i32
  }
}

module attributes {stable_mosaic.version = 11 : i64} {
  func.func @conv_vote_kernel(%arg0: i32, %arg1: memref<1x4x256xf32, #tpu.memory_space<vmem>>, %arg2: memref<4x4xf32, #tpu.memory_space<vmem>>, %arg3: memref<4x36xf32, #tpu.memory_space<vmem>>, %arg4: memref<4x36xf32, #tpu.memory_space<vmem>>, %arg5: memref<4x12xf32, #tpu.memory_space<vmem>>, %arg6: memref<4x6xf32, #tpu.memory_space<vmem>>, %arg7: memref<1x4x256xf32, #tpu.memory_space<vmem>>, %arg8: memref<4x2xf32, #tpu.memory_space<vmem>>, %arg9: memref<4x324xf32, #tpu.memory_space<vmem>>) attributes {dimension_semantics = [#tpu.dimension_semantics<arbitrary>], iteration_bounds = array<i64: 2>, scalar_prefetch = 0 : i64, scratch_operands = 1 : i64, tpu.core_type = #tpu.core_type<tc>, window_params = [{transform_indices = @transform_0, window_bounds = array<i64: 1, 4, 256>}, {pipeline_mode = #tpu.pipeline_mode<synchronous>, transform_indices = @transform_1, window_bounds = array<i64: 4, 4>}, {pipeline_mode = #tpu.pipeline_mode<synchronous>, transform_indices = @transform_2, window_bounds = array<i64: 4, 36>}, {pipeline_mode = #tpu.pipeline_mode<synchronous>, transform_indices = @transform_3, window_bounds = array<i64: 4, 36>}, {pipeline_mode = #tpu.pipeline_mode<synchronous>, transform_indices = @transform_4, window_bounds = array<i64: 4, 12>}, {pipeline_mode = #tpu.pipeline_mode<synchronous>, transform_indices = @transform_5, window_bounds = array<i64: 4, 6>}, {transform_indices = @transform_6, window_bounds = array<i64: 1, 4, 256>}, {pipeline_mode = #tpu.pipeline_mode<synchronous>, transform_indices = @transform_7, window_bounds = array<i64: 4, 2>}]} {
    %c0_i32 = arith.constant 0 : i32
    %0 = arith.cmpi eq, %arg0, %c0_i32 : i32
    %1 = arith.extui %0 : i1 to i32
    %c0_i32_0 = arith.constant 0 : i32
    %2 = arith.cmpi ne, %1, %c0_i32_0 : i32
    scf.if %2 {
      %cst_83 = arith.constant 0.000000e+00 : f32
      %172 = vector.broadcast %cst_83 : f32 to vector<4x2xf32>
      %c0_84 = arith.constant 0 : index
      %c0_85 = arith.constant 0 : index
      %173 = vector.load %arg8[%c0_84, %c0_85] : memref<4x2xf32, #tpu.memory_space<vmem>>, vector<4x2xf32>
      tpu.vector_store %arg8[%c0_84, %c0_85], %172 {strides = array<i32>} : memref<4x2xf32, #tpu.memory_space<vmem>>, vector<4x2xf32>,
    } else {
    }
    %c0 = arith.constant 0 : index
    %c0_1 = arith.constant 0 : index
    %c0_2 = arith.constant 0 : index
    %3 = vector.load %arg1[%c0, %c0_1, %c0_2] : memref<1x4x256xf32, #tpu.memory_space<vmem>>, vector<1x4x256xf32>
    %4 = vector.shape_cast %3 : vector<1x4x256xf32> to vector<4x256xf32>
    %5 = arith.extui %0 : i1 to i32
    %c0_i32_3 = arith.constant 0 : i32
    %6 = arith.cmpi ne, %5, %c0_i32_3 : i32
    scf.if %6 {
      %cst_83 = arith.constant 0.000000e+00 : f32
      %172 = vector.broadcast %cst_83 : f32 to vector<4x324xf32>
      %c0_84 = arith.constant 0 : index
      %c0_85 = arith.constant 0 : index
      %173 = vector.load %arg9[%c0_84, %c0_85] : memref<4x324xf32, #tpu.memory_space<vmem>>, vector<4x324xf32>
      tpu.vector_store %arg9[%c0_84, %c0_85], %172 {strides = array<i32>} : memref<4x324xf32, #tpu.memory_space<vmem>>, vector<4x324xf32>,
    } else {
    }
    %c0_4 = arith.constant 0 : index
    %c34 = arith.constant 34 : index
    %7 = vector.load %arg9[%c0_4, %c34] : memref<4x324xf32, #tpu.memory_space<vmem>>, vector<4x256xf32>
    tpu.vector_store %arg9[%c0_4, %c34], %4 {strides = array<i32>} : memref<4x324xf32, #tpu.memory_space<vmem>>, vector<4x256xf32>,
    %8 = tpu.iota {dimensions = array<i32: 1>} : vector<1x256xi32>
    %c16_i32 = arith.constant 16 : i32
    %c0_i32_5 = arith.constant 0 : i32
    %9 = arith.cmpi eq, %c16_i32, %c0_i32_5 : i32
    %c1_i32 = arith.constant 1 : i32
    %10 = arith.select %9, %c1_i32, %c16_i32 : i32
    %11 = vector.broadcast %10 : i32 to vector<1x256xi32>
    %12 = arith.remsi %8, %11 : vector<1x256xi32>
    %c0_i32_6 = arith.constant 0 : i32
    %13 = vector.broadcast %c0_i32_6 : i32 to vector<1x256xi32>
    %14 = arith.cmpi ne, %12, %13 : vector<1x256xi32>
    %c0_i32_7 = arith.constant 0 : i32
    %15 = vector.broadcast %c0_i32_7 : i32 to vector<1x256xi32>
    %16 = arith.cmpi slt, %12, %15 : vector<1x256xi32>
    %c0_i32_8 = arith.constant 0 : i32
    %17 = arith.cmpi slt, %10, %c0_i32_8 : i32
    %18 = vector.broadcast %17 : i1 to vector<1x256xi1>
    %19 = vector.broadcast %18 : vector<1x256xi1> to vector<1x256xi1>
    %20 = arith.xori %16, %19 : vector<1x256xi1>
    %21 = arith.andi %20, %14 : vector<1x256xi1>
    %22 = vector.broadcast %10 : i32 to vector<1x256xi32>
    %23 = arith.addi %12, %22 : vector<1x256xi32>
    %24 = arith.select %21, %23, %12 : vector<1x256xi1>, vector<1x256xi32>
    %c-2_i32 = arith.constant -2 : i32
    %25 = vector.broadcast %c-2_i32 : i32 to vector<1x256xi32>
    %26 = arith.addi %24, %25 : vector<1x256xi32>
    %c0_i32_9 = arith.constant 0 : i32
    %27 = vector.broadcast %c0_i32_9 : i32 to vector<1x256xi32>
    %28 = arith.cmpi sge, %26, %27 : vector<1x256xi32>
    %c-2_i32_10 = arith.constant -2 : i32
    %29 = vector.broadcast %c-2_i32_10 : i32 to vector<1x256xi32>
    %30 = arith.addi %24, %29 : vector<1x256xi32>
    %c16_i32_11 = arith.constant 16 : i32
    %31 = vector.broadcast %c16_i32_11 : i32 to vector<1x256xi32>
    %32 = arith.cmpi slt, %30, %31 : vector<1x256xi32>
    %33 = arith.andi %28, %32 : vector<1x256xi1>
    %c-1_i32 = arith.constant -1 : i32
    %34 = vector.broadcast %c-1_i32 : i32 to vector<1x256xi32>
    %35 = arith.addi %24, %34 : vector<1x256xi32>
    %c0_i32_12 = arith.constant 0 : i32
    %36 = vector.broadcast %c0_i32_12 : i32 to vector<1x256xi32>
    %37 = arith.cmpi sge, %35, %36 : vector<1x256xi32>
    %c-1_i32_13 = arith.constant -1 : i32
    %38 = vector.broadcast %c-1_i32_13 : i32 to vector<1x256xi32>
    %39 = arith.addi %24, %38 : vector<1x256xi32>
    %c16_i32_14 = arith.constant 16 : i32
    %40 = vector.broadcast %c16_i32_14 : i32 to vector<1x256xi32>
    %41 = arith.cmpi slt, %39, %40 : vector<1x256xi32>
    %42 = arith.andi %37, %41 : vector<1x256xi1>
    %c1_i32_15 = arith.constant 1 : i32
    %43 = vector.broadcast %c1_i32_15 : i32 to vector<1x256xi32>
    %44 = arith.addi %24, %43 : vector<1x256xi32>
    %c0_i32_16 = arith.constant 0 : i32
    %45 = vector.broadcast %c0_i32_16 : i32 to vector<1x256xi32>
    %46 = arith.cmpi sge, %44, %45 : vector<1x256xi32>
    %c1_i32_17 = arith.constant 1 : i32
    %47 = vector.broadcast %c1_i32_17 : i32 to vector<1x256xi32>
    %48 = arith.addi %24, %47 : vector<1x256xi32>
    %c16_i32_18 = arith.constant 16 : i32
    %49 = vector.broadcast %c16_i32_18 : i32 to vector<1x256xi32>
    %50 = arith.cmpi slt, %48, %49 : vector<1x256xi32>
    %51 = arith.andi %46, %50 : vector<1x256xi1>
    %c2_i32 = arith.constant 2 : i32
    %52 = vector.broadcast %c2_i32 : i32 to vector<1x256xi32>
    %53 = arith.addi %24, %52 : vector<1x256xi32>
    %c0_i32_19 = arith.constant 0 : i32
    %54 = vector.broadcast %c0_i32_19 : i32 to vector<1x256xi32>
    %55 = arith.cmpi sge, %53, %54 : vector<1x256xi32>
    %c2_i32_20 = arith.constant 2 : i32
    %56 = vector.broadcast %c2_i32_20 : i32 to vector<1x256xi32>
    %57 = arith.addi %24, %56 : vector<1x256xi32>
    %c16_i32_21 = arith.constant 16 : i32
    %58 = vector.broadcast %c16_i32_21 : i32 to vector<1x256xi32>
    %59 = arith.cmpi slt, %57, %58 : vector<1x256xi32>
    %60 = arith.andi %55, %59 : vector<1x256xi1>
    %c0_22 = arith.constant 0 : index
    %c0_23 = arith.constant 0 : index
    %61 = vector.load %arg2[%c0_22, %c0_23] : memref<4x4xf32, #tpu.memory_space<vmem>>, vector<4x4xf32>
    %c0_24 = arith.constant 0 : index
    %c0_25 = arith.constant 0 : index
    %62 = vector.load %arg3[%c0_24, %c0_25] : memref<4x36xf32, #tpu.memory_space<vmem>>, vector<4x36xf32>
    %c0_26 = arith.constant 0 : index
    %c0_27 = arith.constant 0 : index
    %63 = vector.load %arg4[%c0_26, %c0_27] : memref<4x36xf32, #tpu.memory_space<vmem>>, vector<4x36xf32>
    %cst = arith.constant dense<0.000000e+00> : vector<4x256xf32>
    %64 = tpu.matmul %61, %4, %cst {dimension_numbers = #tpu.dot_dimension_numbers<[1], [0], [0], [1], [0, 0, 1, 1], [], []>} : vector<4x4xf32>, vector<4x256xf32>, vector<4x256xf32> -> vector<4x256xf32>
    %c0_28 = arith.constant 0 : index
    %c17 = arith.constant 17 : index
    %65 = vector.load %arg9[%c0_28, %c17] : memref<4x324xf32, #tpu.memory_space<vmem>>, vector<4x256xf32>
    %cst_29 = arith.constant 0.000000e+00 : f32
    %66 = vector.shape_cast %42 : vector<1x256xi1> to vector<1x256xi1>
    %67 = vector.broadcast %66 : vector<1x256xi1> to vector<4x256xi1>
    %68 = vector.broadcast %cst_29 : f32 to vector<4x256xf32>
    %69 = arith.select %67, %65, %68 : vector<4x256xi1>, vector<4x256xf32>
    %c0_30 = arith.constant 0 : index
    %c0_31 = arith.constant 0 : index
    %70 = vector.load %arg9[%c0_30, %c0_31] : memref<4x324xf32, #tpu.memory_space<vmem>>, vector<4x256xf32>
    %cst_32 = arith.constant 0.000000e+00 : f32
    %71 = vector.shape_cast %33 : vector<1x256xi1> to vector<1x256xi1>
    %72 = vector.broadcast %71 : vector<1x256xi1> to vector<4x256xi1>
    %73 = vector.broadcast %cst_32 : f32 to vector<4x256xf32>
    %74 = arith.select %72, %70, %73 : vector<4x256xi1>, vector<4x256xf32>
    %c0_33 = arith.constant 0 : index
    %c18 = arith.constant 18 : index
    %75 = vector.load %arg9[%c0_33, %c18] : memref<4x324xf32, #tpu.memory_space<vmem>>, vector<4x256xf32>
    %c0_34 = arith.constant 0 : index
    %c2 = arith.constant 2 : index
    %76 = vector.load %arg9[%c0_34, %c2] : memref<4x324xf32, #tpu.memory_space<vmem>>, vector<4x256xf32>
    %c0_35 = arith.constant 0 : index
    %c19 = arith.constant 19 : index
    %77 = vector.load %arg9[%c0_35, %c19] : memref<4x324xf32, #tpu.memory_space<vmem>>, vector<4x256xf32>
    %cst_36 = arith.constant 0.000000e+00 : f32
    %78 = vector.shape_cast %51 : vector<1x256xi1> to vector<1x256xi1>
    %79 = vector.broadcast %78 : vector<1x256xi1> to vector<4x256xi1>
    %80 = vector.broadcast %cst_36 : f32 to vector<4x256xf32>
    %81 = arith.select %79, %77, %80 : vector<4x256xi1>, vector<4x256xf32>
    %c0_37 = arith.constant 0 : index
    %c4 = arith.constant 4 : index
    %82 = vector.load %arg9[%c0_37, %c4] : memref<4x324xf32, #tpu.memory_space<vmem>>, vector<4x256xf32>
    %cst_38 = arith.constant 0.000000e+00 : f32
    %83 = vector.shape_cast %60 : vector<1x256xi1> to vector<1x256xi1>
    %84 = vector.broadcast %83 : vector<1x256xi1> to vector<4x256xi1>
    %85 = vector.broadcast %cst_38 : f32 to vector<4x256xf32>
    %86 = arith.select %84, %82, %85 : vector<4x256xi1>, vector<4x256xf32>
    %c0_39 = arith.constant 0 : index
    %c33 = arith.constant 33 : index
    %87 = vector.load %arg9[%c0_39, %c33] : memref<4x324xf32, #tpu.memory_space<vmem>>, vector<4x256xf32>
    %cst_40 = arith.constant 0.000000e+00 : f32
    %88 = vector.shape_cast %42 : vector<1x256xi1> to vector<1x256xi1>
    %89 = vector.broadcast %88 : vector<1x256xi1> to vector<4x256xi1>
    %90 = vector.broadcast %cst_40 : f32 to vector<4x256xf32>
    %91 = arith.select %89, %87, %90 : vector<4x256xi1>, vector<4x256xf32>
    %c0_41 = arith.constant 0 : index
    %c32 = arith.constant 32 : index
    %92 = vector.load %arg9[%c0_41, %c32] : memref<4x324xf32, #tpu.memory_space<vmem>>, vector<4x256xf32>
    %cst_42 = arith.constant 0.000000e+00 : f32
    %93 = vector.shape_cast %33 : vector<1x256xi1> to vector<1x256xi1>
    %94 = vector.broadcast %93 : vector<1x256xi1> to vector<4x256xi1>
    %95 = vector.broadcast %cst_42 : f32 to vector<4x256xf32>
    %96 = arith.select %94, %92, %95 : vector<4x256xi1>, vector<4x256xf32>
    %c0_43 = arith.constant 0 : index
    %c35 = arith.constant 35 : index
    %97 = vector.load %arg9[%c0_43, %c35] : memref<4x324xf32, #tpu.memory_space<vmem>>, vector<4x256xf32>
    %cst_44 = arith.constant 0.000000e+00 : f32
    %98 = vector.shape_cast %51 : vector<1x256xi1> to vector<1x256xi1>
    %99 = vector.broadcast %98 : vector<1x256xi1> to vector<4x256xi1>
    %100 = vector.broadcast %cst_44 : f32 to vector<4x256xf32>
    %101 = arith.select %99, %97, %100 : vector<4x256xi1>, vector<4x256xf32>
    %c0_45 = arith.constant 0 : index
    %c36 = arith.constant 36 : index
    %102 = vector.load %arg9[%c0_45, %c36] : memref<4x324xf32, #tpu.memory_space<vmem>>, vector<4x256xf32>
    %cst_46 = arith.constant 0.000000e+00 : f32
    %103 = vector.shape_cast %60 : vector<1x256xi1> to vector<1x256xi1>
    %104 = vector.broadcast %103 : vector<1x256xi1> to vector<4x256xi1>
    %105 = vector.broadcast %cst_46 : f32 to vector<4x256xf32>
    %106 = arith.select %104, %102, %105 : vector<4x256xi1>, vector<4x256xf32>
    %c0_47 = arith.constant 0 : index
    %c49 = arith.constant 49 : index
    %107 = vector.load %arg9[%c0_47, %c49] : memref<4x324xf32, #tpu.memory_space<vmem>>, vector<4x256xf32>
    %cst_48 = arith.constant 0.000000e+00 : f32
    %108 = vector.shape_cast %42 : vector<1x256xi1> to vector<1x256xi1>
    %109 = vector.broadcast %108 : vector<1x256xi1> to vector<4x256xi1>
    %110 = vector.broadcast %cst_48 : f32 to vector<4x256xf32>
    %111 = arith.select %109, %107, %110 : vector<4x256xi1>, vector<4x256xf32>
    %c0_49 = arith.constant 0 : index
    %c64 = arith.constant 64 : index
    %112 = vector.load %arg9[%c0_49, %c64] : memref<4x324xf32, #tpu.memory_space<vmem>>, vector<4x256xf32>
    %cst_50 = arith.constant 0.000000e+00 : f32
    %113 = vector.shape_cast %33 : vector<1x256xi1> to vector<1x256xi1>
    %114 = vector.broadcast %113 : vector<1x256xi1> to vector<4x256xi1>
    %115 = vector.broadcast %cst_50 : f32 to vector<4x256xf32>
    %116 = arith.select %114, %112, %115 : vector<4x256xi1>, vector<4x256xf32>
    %c0_51 = arith.constant 0 : index
    %c50 = arith.constant 50 : index
    %117 = vector.load %arg9[%c0_51, %c50] : memref<4x324xf32, #tpu.memory_space<vmem>>, vector<4x256xf32>
    %c0_52 = arith.constant 0 : index
    %c66 = arith.constant 66 : index
    %118 = vector.load %arg9[%c0_52, %c66] : memref<4x324xf32, #tpu.memory_space<vmem>>, vector<4x256xf32>
    %c0_53 = arith.constant 0 : index
    %c51 = arith.constant 51 : index
    %119 = vector.load %arg9[%c0_53, %c51] : memref<4x324xf32, #tpu.memory_space<vmem>>, vector<4x256xf32>
    %cst_54 = arith.constant 0.000000e+00 : f32
    %120 = vector.shape_cast %51 : vector<1x256xi1> to vector<1x256xi1>
    %121 = vector.broadcast %120 : vector<1x256xi1> to vector<4x256xi1>
    %122 = vector.broadcast %cst_54 : f32 to vector<4x256xf32>
    %123 = arith.select %121, %119, %122 : vector<4x256xi1>, vector<4x256xf32>
    %c0_55 = arith.constant 0 : index
    %c68 = arith.constant 68 : index
    %124 = vector.load %arg9[%c0_55, %c68] : memref<4x324xf32, #tpu.memory_space<vmem>>, vector<4x256xf32>
    %cst_56 = arith.constant 0.000000e+00 : f32
    %125 = vector.shape_cast %60 : vector<1x256xi1> to vector<1x256xi1>
    %126 = vector.broadcast %125 : vector<1x256xi1> to vector<4x256xi1>
    %127 = vector.broadcast %cst_56 : f32 to vector<4x256xf32>
    %128 = arith.select %126, %124, %127 : vector<4x256xi1>, vector<4x256xf32>
    %129 = tpu.concatenate %69, %75, %81, %91, %4, %101, %111, %117, %123 in 0 : vector<4x256xf32>, vector<4x256xf32>, vector<4x256xf32>, vector<4x256xf32>, vector<4x256xf32>, vector<4x256xf32>, vector<4x256xf32>, vector<4x256xf32>, vector<4x256xf32> -> vector<36x256xf32>
    %cst_57 = arith.constant dense<0.000000e+00> : vector<4x256xf32>
    %130 = tpu.matmul %62, %129, %cst_57 {dimension_numbers = #tpu.dot_dimension_numbers<[1], [0], [0], [1], [0, 0, 1, 1], [], []>} : vector<4x36xf32>, vector<36x256xf32>, vector<4x256xf32> -> vector<4x256xf32>
    %131 = tpu.concatenate %74, %76, %86, %96, %4, %106, %116, %118, %128 in 0 : vector<4x256xf32>, vector<4x256xf32>, vector<4x256xf32>, vector<4x256xf32>, vector<4x256xf32>, vector<4x256xf32>, vector<4x256xf32>, vector<4x256xf32>, vector<4x256xf32> -> vector<36x256xf32>
    %cst_58 = arith.constant dense<0.000000e+00> : vector<4x256xf32>
    %132 = tpu.matmul %63, %131, %cst_58 {dimension_numbers = #tpu.dot_dimension_numbers<[1], [0], [0], [1], [0, 0, 1, 1], [], []>} : vector<4x36xf32>, vector<36x256xf32>, vector<4x256xf32> -> vector<4x256xf32>
    %c0_59 = arith.constant 0 : index
    %c0_60 = arith.constant 0 : index
    %133 = vector.load %arg6[%c0_59, %c0_60] : memref<4x6xf32, #tpu.memory_space<vmem>>, vector<4x1xf32>
    %134 = vector.broadcast %133 : vector<4x1xf32> to vector<4x256xf32>
    %135 = arith.mulf %64, %134 : vector<4x256xf32>
    %c0_61 = arith.constant 0 : index
    %c3 = arith.constant 3 : index
    %136 = vector.load %arg6[%c0_61, %c3] : memref<4x6xf32, #tpu.memory_space<vmem>>, vector<4x1xf32>
    %137 = vector.broadcast %136 : vector<4x1xf32> to vector<4x256xf32>
    %138 = arith.addf %135, %137 : vector<4x256xf32>
    %cst_62 = arith.constant 0.000000e+00 : f32
    %139 = vector.broadcast %cst_62 : f32 to vector<4x256xf32>
    %140 = arith.maximumf %138, %139 : vector<4x256xf32>
    %c0_63 = arith.constant 0 : index
    %c1 = arith.constant 1 : index
    %141 = vector.load %arg6[%c0_63, %c1] : memref<4x6xf32, #tpu.memory_space<vmem>>, vector<4x1xf32>
    %142 = vector.broadcast %141 : vector<4x1xf32> to vector<4x256xf32>
    %143 = arith.mulf %130, %142 : vector<4x256xf32>
    %c0_64 = arith.constant 0 : index
    %c4_65 = arith.constant 4 : index
    %144 = vector.load %arg6[%c0_64, %c4_65] : memref<4x6xf32, #tpu.memory_space<vmem>>, vector<4x1xf32>
    %145 = vector.broadcast %144 : vector<4x1xf32> to vector<4x256xf32>
    %146 = arith.addf %143, %145 : vector<4x256xf32>
    %cst_66 = arith.constant 0.000000e+00 : f32
    %147 = vector.broadcast %cst_66 : f32 to vector<4x256xf32>
    %148 = arith.maximumf %146, %147 : vector<4x256xf32>
    %c0_67 = arith.constant 0 : index
    %c2_68 = arith.constant 2 : index
    %149 = vector.load %arg6[%c0_67, %c2_68] : memref<4x6xf32, #tpu.memory_space<vmem>>, vector<4x1xf32>
    %150 = vector.broadcast %149 : vector<4x1xf32> to vector<4x256xf32>
    %151 = arith.mulf %132, %150 : vector<4x256xf32>
    %c0_69 = arith.constant 0 : index
    %c5 = arith.constant 5 : index
    %152 = vector.load %arg6[%c0_69, %c5] : memref<4x6xf32, #tpu.memory_space<vmem>>, vector<4x1xf32>
    %153 = vector.broadcast %152 : vector<4x1xf32> to vector<4x256xf32>
    %154 = arith.addf %151, %153 : vector<4x256xf32>
    %cst_70 = arith.constant 0.000000e+00 : f32
    %155 = vector.broadcast %cst_70 : f32 to vector<4x256xf32>
    %156 = arith.maximumf %154, %155 : vector<4x256xf32>
    %c0_71 = arith.constant 0 : index
    %c0_72 = arith.constant 0 : index
    %157 = vector.load %arg5[%c0_71, %c0_72] : memref<4x12xf32, #tpu.memory_space<vmem>>, vector<4x12xf32>
    %158 = tpu.concatenate %140, %148, %156 in 0 : vector<4x256xf32>, vector<4x256xf32>, vector<4x256xf32> -> vector<12x256xf32>
    %cst_73 = arith.constant dense<0.000000e+00> : vector<4x256xf32>
    %159 = tpu.matmul %157, %158, %cst_73 {dimension_numbers = #tpu.dot_dimension_numbers<[1], [0], [0], [1], [0, 0, 1, 1], [], []>} : vector<4x12xf32>, vector<12x256xf32>, vector<4x256xf32> -> vector<4x256xf32>
    %c0_74 = arith.constant 0 : index
    %c0_75 = arith.constant 0 : index
    %c0_76 = arith.constant 0 : index
    %160 = vector.load %arg7[%c0_74, %c0_75, %c0_76] : memref<1x4x256xf32, #tpu.memory_space<vmem>>, vector<1x4x256xf32>
    %161 = vector.shape_cast %160 : vector<1x4x256xf32> to vector<4x256xf32>
    %162 = vector.shape_cast %159 : vector<4x256xf32> to vector<1x4x256xf32>
    tpu.vector_store %arg7[%c0_74, %c0_75, %c0_76], %162 {strides = array<i32>} : memref<1x4x256xf32, #tpu.memory_space<vmem>>, vector<1x4x256xf32>,
    %c0_77 = arith.constant 0 : index
    %c0_78 = arith.constant 0 : index
    %163 = vector.load %arg8[%c0_77, %c0_78] : memref<4x2xf32, #tpu.memory_space<vmem>>, vector<4x2xf32>
    %cst_79 = arith.constant dense<0.000000e+00> : vector<4xf32>
    %164 = vector.multi_reduction <add>, %159, %cst_79 [1] : vector<4x256xf32> to vector<4xf32>
    %165 = vector.shape_cast %164 : vector<4xf32> to vector<4x1xf32>
    %166 = arith.mulf %159, %159 : vector<4x256xf32>
    %cst_80 = arith.constant dense<0.000000e+00> : vector<4xf32>
    %167 = vector.multi_reduction <add>, %166, %cst_80 [1] : vector<4x256xf32> to vector<4xf32>
    %168 = vector.shape_cast %167 : vector<4xf32> to vector<4x1xf32>
    %169 = tpu.concatenate %165, %168 in 1 : vector<4x1xf32>, vector<4x1xf32> -> vector<4x2xf32>
    %170 = arith.addf %163, %169 : vector<4x2xf32>
    %c0_81 = arith.constant 0 : index
    %c0_82 = arith.constant 0 : index
    %171 = vector.load %arg8[%c0_81, %c0_82] : memref<4x2xf32, #tpu.memory_space<vmem>>, vector<4x2xf32>
    tpu.vector_store %arg8[%c0_81, %c0_82], %170 {strides = array<i32>} : memref<4x2xf32, #tpu.memory_space<vmem>>, vector<4x2xf32>,
    return
  }
  func.func @transform_0(%arg0: i32) -> (i32, i32, i32) {
    %c0_i32 = arith.constant 0 : i32
    %c0_i32_0 = arith.constant 0 : i32
    %c0_i32_1 = arith.constant 0 : i32
    return %arg0, %c0_i32, %c0_i32_0 : i32, i32, i32
  }
  func.func @transform_1(%arg0: i32) -> (i32, i32) {
    %c0_i32 = arith.constant 0 : i32
    %c0_i32_0 = arith.constant 0 : i32
    %c0_i32_1 = arith.constant 0 : i32
    return %c0_i32, %c0_i32_0 : i32, i32
  }
  func.func @transform_2(%arg0: i32) -> (i32, i32) {
    %c0_i32 = arith.constant 0 : i32
    %c0_i32_0 = arith.constant 0 : i32
    %c0_i32_1 = arith.constant 0 : i32
    return %c0_i32, %c0_i32_0 : i32, i32
  }
  func.func @transform_3(%arg0: i32) -> (i32, i32) {
    %c0_i32 = arith.constant 0 : i32
    %c0_i32_0 = arith.constant 0 : i32
    %c0_i32_1 = arith.constant 0 : i32
    return %c0_i32, %c0_i32_0 : i32, i32
  }
  func.func @transform_4(%arg0: i32) -> (i32, i32) {
    %c0_i32 = arith.constant 0 : i32
    %c0_i32_0 = arith.constant 0 : i32
    %c0_i32_1 = arith.constant 0 : i32
    return %c0_i32, %c0_i32_0 : i32, i32
  }
  func.func @transform_5(%arg0: i32) -> (i32, i32) {
    %c0_i32 = arith.constant 0 : i32
    %c0_i32_0 = arith.constant 0 : i32
    %c0_i32_1 = arith.constant 0 : i32
    return %c0_i32, %c0_i32_0 : i32, i32
  }
  func.func @transform_6(%arg0: i32) -> (i32, i32, i32) {
    %c0_i32 = arith.constant 0 : i32
    %c0_i32_0 = arith.constant 0 : i32
    %c0_i32_1 = arith.constant 0 : i32
    return %arg0, %c0_i32, %c0_i32_0 : i32, i32, i32
  }
  func.func @transform_7(%arg0: i32) -> (i32, i32) {
    %c0_i32 = arith.constant 0 : i32
    %c0_i32_0 = arith.constant 0 : i32
    %c0_i32_1 = arith.constant 0 : i32
    return %c0_i32, %c0_i32_0 : i32, i32
  }
}

module attributes {stable_mosaic.version = 11 : i64} {
  func.func @_gate_kernel(%arg0: i32, %arg1: memref<1x4x256xf32, #tpu.memory_space<vmem>>, %arg2: memref<1x4x256xf32, #tpu.memory_space<vmem>>, %arg3: memref<4x2xf32, #tpu.memory_space<vmem>>, %arg4: memref<1x4x256xf32, #tpu.memory_space<vmem>>) attributes {dimension_semantics = [#tpu.dimension_semantics<parallel>], iteration_bounds = array<i64: 2>, scalar_prefetch = 0 : i64, scratch_operands = 0 : i64, tpu.core_type = #tpu.core_type<tc>, window_params = [{transform_indices = @transform_0, window_bounds = array<i64: 1, 4, 256>}, {transform_indices = @transform_1, window_bounds = array<i64: 1, 4, 256>}, {pipeline_mode = #tpu.pipeline_mode<synchronous>, transform_indices = @transform_2, window_bounds = array<i64: 4, 2>}, {transform_indices = @transform_3, window_bounds = array<i64: 1, 4, 256>}]} {
    %c0 = arith.constant 0 : index
    %c0_0 = arith.constant 0 : index
    %0 = vector.load %arg3[%c0, %c0_0] : memref<4x2xf32, #tpu.memory_space<vmem>>, vector<4x1xf32>
    %c0_1 = arith.constant 0 : index
    %c1 = arith.constant 1 : index
    %1 = vector.load %arg3[%c0_1, %c1] : memref<4x2xf32, #tpu.memory_space<vmem>>, vector<4x1xf32>
    %c0_2 = arith.constant 0 : index
    %c0_3 = arith.constant 0 : index
    %c0_4 = arith.constant 0 : index
    %2 = vector.load %arg1[%c0_2, %c0_3, %c0_4] : memref<1x4x256xf32, #tpu.memory_space<vmem>>, vector<1x4x256xf32>
    %3 = vector.shape_cast %2 : vector<1x4x256xf32> to vector<4x256xf32>
    %c0_5 = arith.constant 0 : index
    %c0_6 = arith.constant 0 : index
    %c0_7 = arith.constant 0 : index
    %4 = vector.load %arg2[%c0_5, %c0_6, %c0_7] : memref<1x4x256xf32, #tpu.memory_space<vmem>>, vector<1x4x256xf32>
    %5 = vector.shape_cast %4 : vector<1x4x256xf32> to vector<4x256xf32>
    %6 = vector.broadcast %0 : vector<4x1xf32> to vector<4x256xf32>
    %7 = arith.mulf %5, %6 : vector<4x256xf32>
    %8 = vector.broadcast %1 : vector<4x1xf32> to vector<4x256xf32>
    %9 = arith.addf %7, %8 : vector<4x256xf32>
    %cst = arith.constant 5.000000e-01 : f32
    %10 = vector.broadcast %cst : f32 to vector<4x256xf32>
    %11 = arith.mulf %10, %9 : vector<4x256xf32>
    %cst_8 = arith.constant 0.707106769 : f32
    %12 = vector.broadcast %cst_8 : f32 to vector<4x256xf32>
    %13 = arith.mulf %9, %12 : vector<4x256xf32>
    %cst_9 = arith.constant -4.000000e+00 : f32
    %cst_10 = arith.constant 4.000000e+00 : f32
    %14 = vector.broadcast %cst_9 : f32 to vector<4x256xf32>
    %15 = arith.maximumf %14, %13 : vector<4x256xf32>
    %16 = vector.broadcast %cst_10 : f32 to vector<4x256xf32>
    %17 = arith.minimumf %16, %15 : vector<4x256xf32>
    %18 = arith.mulf %17, %17 : vector<4x256xf32>
    %cst_11 = arith.constant -2.72614237E-10 : f32
    %19 = vector.broadcast %cst_11 : f32 to vector<4x256xf32>
    %20 = arith.mulf %19, %18 : vector<4x256xf32>
    %cst_12 = arith.constant 2.77068146E-8 : f32
    %21 = vector.broadcast %cst_12 : f32 to vector<4x256xf32>
    %22 = arith.addf %20, %21 : vector<4x256xf32>
    %23 = arith.mulf %22, %18 : vector<4x256xf32>
    %cst_13 = arith.constant -2.10102394E-6 : f32
    %24 = vector.broadcast %cst_13 : f32 to vector<4x256xf32>
    %25 = arith.addf %23, %24 : vector<4x256xf32>
    %26 = arith.mulf %25, %18 : vector<4x256xf32>
    %cst_14 = arith.constant -5.69250624E-5 : f32
    %27 = vector.broadcast %cst_14 : f32 to vector<4x256xf32>
    %28 = arith.addf %26, %27 : vector<4x256xf32>
    %29 = arith.mulf %28, %18 : vector<4x256xf32>
    %cst_15 = arith.constant -7.34990637E-4 : f32
    %30 = vector.broadcast %cst_15 : f32 to vector<4x256xf32>
    %31 = arith.addf %29, %30 : vector<4x256xf32>
    %32 = arith.mulf %31, %18 : vector<4x256xf32>
    %cst_16 = arith.constant -2.954600e-03 : f32
    %33 = vector.broadcast %cst_16 : f32 to vector<4x256xf32>
    %34 = arith.addf %32, %33 : vector<4x256xf32>
    %35 = arith.mulf %34, %18 : vector<4x256xf32>
    %cst_17 = arith.constant -0.0160960332 : f32
    %36 = vector.broadcast %cst_17 : f32 to vector<4x256xf32>
    %37 = arith.addf %35, %36 : vector<4x256xf32>
    %38 = arith.mulf %17, %37 : vector<4x256xf32>
    %cst_18 = arith.constant -1.45660715E-5 : f32
    %39 = vector.broadcast %cst_18 : f32 to vector<4x256xf32>
    %40 = arith.mulf %39, %18 : vector<4x256xf32>
    %cst_19 = arith.constant -2.13374049E-4 : f32
    %41 = vector.broadcast %cst_19 : f32 to vector<4x256xf32>
    %42 = arith.addf %40, %41 : vector<4x256xf32>
    %43 = arith.mulf %42, %18 : vector<4x256xf32>
    %cst_20 = arith.constant -0.00168282702 : f32
    %44 = vector.broadcast %cst_20 : f32 to vector<4x256xf32>
    %45 = arith.addf %43, %44 : vector<4x256xf32>
    %46 = arith.mulf %45, %18 : vector<4x256xf32>
    %cst_21 = arith.constant -0.00737332925 : f32
    %47 = vector.broadcast %cst_21 : f32 to vector<4x256xf32>
    %48 = arith.addf %46, %47 : vector<4x256xf32>
    %49 = arith.mulf %48, %18 : vector<4x256xf32>
    %cst_22 = arith.constant -0.0142647391 : f32
    %50 = vector.broadcast %cst_22 : f32 to vector<4x256xf32>
    %51 = arith.addf %49, %50 : vector<4x256xf32>
    %52 = arith.divf %38, %51 : vector<4x256xf32>
    %cst_23 = arith.constant 1.000000e+00 : f32
    %53 = vector.broadcast %cst_23 : f32 to vector<4x256xf32>
    %54 = arith.addf %53, %52 : vector<4x256xf32>
    %55 = arith.mulf %11, %54 : vector<4x256xf32>
    %56 = arith.mulf %3, %55 : vector<4x256xf32>
    %57 = arith.addf %3, %56 : vector<4x256xf32>
    %c0_24 = arith.constant 0 : index
    %c0_25 = arith.constant 0 : index
    %c0_26 = arith.constant 0 : index
    %58 = vector.load %arg4[%c0_24, %c0_25, %c0_26] : memref<1x4x256xf32, #tpu.memory_space<vmem>>, vector<1x4x256xf32>
    %59 = vector.shape_cast %58 : vector<1x4x256xf32> to vector<4x256xf32>
    %60 = vector.shape_cast %57 : vector<4x256xf32> to vector<1x4x256xf32>
    tpu.vector_store %arg4[%c0_24, %c0_25, %c0_26], %60 {strides = array<i32>} : memref<1x4x256xf32, #tpu.memory_space<vmem>>, vector<1x4x256xf32>,
    return
  }
  func.func @transform_0(%arg0: i32) -> (i32, i32, i32) {
    %c0_i32 = arith.constant 0 : i32
    %c0_i32_0 = arith.constant 0 : i32
    %c0_i32_1 = arith.constant 0 : i32
    return %arg0, %c0_i32, %c0_i32_0 : i32, i32, i32
  }
  func.func @transform_1(%arg0: i32) -> (i32, i32, i32) {
    %c0_i32 = arith.constant 0 : i32
    %c0_i32_0 = arith.constant 0 : i32
    %c0_i32_1 = arith.constant 0 : i32
    return %arg0, %c0_i32, %c0_i32_0 : i32, i32, i32
  }
  func.func @transform_2(%arg0: i32) -> (i32, i32) {
    %c0_i32 = arith.constant 0 : i32
    %c0_i32_0 = arith.constant 0 : i32
    %c0_i32_1 = arith.constant 0 : i32
    return %c0_i32, %c0_i32_0 : i32, i32
  }
  func.func @transform_3(%arg0: i32) -> (i32, i32, i32) {
    %c0_i32 = arith.constant 0 : i32
    %c0_i32_0 = arith.constant 0 : i32
    %c0_i32_1 = arith.constant 0 : i32
    return %arg0, %c0_i32, %c0_i32_0 : i32, i32, i32
  }
}

</mosaic_0001>

<llo_original>
// kernel: multi_scale_attention_gate.5
$region0: #{multi_scale_attention_gate.5}
  #allocation0 [shape = 'u32[]', space=smem, size = 0x4, offset = 0x4, fixed_abs, tag = 'smem constant byte address 0x4 - core index']
  #allocation1 [shape = 'u32[144,128]{1,0:T(1,128)}', space=vmem, size = 0x12000, scoped, tag = 'internal scratch']
  %s0 = inlined_call_operand.vmem [shape: f32[2,4,256], index: 0, kind: input, shape index: {}]
  %s1 = inlined_call_operand.vmem [shape: f32[2,4,256], index: 1, kind: input, shape index: {}, may-alias: {1,3}]
  %s2 = inlined_call_operand.vmem [shape: f32[4,2], index: 2, kind: input, shape index: {}]
  %s3 = inlined_call_operand.vmem [shape: f32[2,4,256], index: 3, kind: output, shape index: {}, may-alias: {1,3}]
  %s4 = sld [smem:[#allocation0]]
  $region45: #{multi_scale_attention_gate.5} parent=0
    _
  %s6 = ssub.s32 1, %s4
  %s7 = scalar_select 0, %s6, %s4
  loop: start=0, step=1, limit=4
  $region2: #{multi_scale_attention_gate.5} parent=0 // loop_pre_header
    _
  $region3: #{multi_scale_attention_gate.5} parent=0 // loop_header
    %s9 = sphi 0, %s13
    %p10 = scmp.ge.s32.totalorder %s9, 4
    %s19 = sphi 0, %s21
    %s22 = sphi 0, %s19
    %s23 = sphi 0, %s22
    %s39 = sphi 0, %s23
    %s45 = sphi 0, %s47
    %s48 = sphi 0, %s45
    %s49 = sphi 0, %s48
    %s65 = sphi 0, %s49
    %s69 = sphi 0, %s69
    %s71 = sphi 0, %s69
    %s72 = sphi 0, %s71
    %s86 = sphi 0, %s72
    %s92 = sphi 0, %s94
    %s95 = sphi 0, %s92
    %s96 = sphi 0, %s95
    %s112 = sphi 0, %s96
  $region4: #{multi_scale_attention_gate.5} parent=0 // loop_header_branch
    %12 = sbr.rel (%p10) target = $region8
  $region5: #{multi_scale_attention_gate.5} parent=0 // loop_body
    %s14 = ssub.s32 %s9, 1
    %s15 = ssub.s32 %s9, 2
    %s16 = sadd.s32 %s9, 1
    %s17 = ssub.s32 %s9, %s16
    %p18 = scmp.eq.s32.totalorder %s17, 0
    %s20 = sadd.s32 %s19, 1
    %s21 = scalar_select %p18, %s19, %s20
    %p24 = pneg %p18
    %p25 = scmp.eq.s32.totalorder %s9, 1
    %p26 = por %p24, %p25
    %p27 = scmp.ne.s32.totalorder %s19, %s22
    %p28 = scmp.eq.s32.totalorder %s9, 0
    %p29 = por %p27, %p28
    %p30 = scmp.ne.s32.totalorder %s19, %s22
    %p31 = scmp.eq.s32.totalorder %s14, 1
    %p32 = por %p30, %p31
    %p33 = scmp.ne.s32.totalorder %s22, %s23
    %p34 = scmp.eq.s32.totalorder %s14, 0
    %p35 = por %p33, %p34
    %p36 = scmp.ne.s32.totalorder %s22, %s23
    %p37 = scmp.eq.s32.totalorder %s15, 1
    %p38 = por %p36, %p37
    %p40 = scmp.ne.s32.totalorder %s23, %s39
    %p41 = scmp.eq.s32.totalorder %s15, 0
    %p42 = por %p40, %p41
    %s43 = ssub.s32 %s9, %s16
    %p44 = scmp.eq.s32.totalorder %s43, 0
    %s46 = sadd.s32 %s45, 1
    %s47 = scalar_select %p44, %s45, %s46
    %p50 = pneg %p44
    %p51 = scmp.eq.s32.totalorder %s9, 1
    %p52 = por %p50, %p51
    %p53 = scmp.ne.s32.totalorder %s45, %s48
    %p54 = scmp.eq.s32.totalorder %s9, 0
    %p55 = por %p53, %p54
    %p56 = scmp.ne.s32.totalorder %s45, %s48
    %p57 = scmp.eq.s32.totalorder %s14, 1
    %p58 = por %p56, %p57
    %p59 = scmp.ne.s32.totalorder %s48, %s49
    %p60 = scmp.eq.s32.totalorder %s14, 0
    %p61 = por %p59, %p60
    %p62 = scmp.ne.s32.totalorder %s48, %s49
    %p63 = scmp.eq.s32.totalorder %s15, 1
    %p64 = por %p62, %p63
    %p66 = scmp.ne.s32.totalorder %s49, %s65
    %p67 = scmp.eq.s32.totalorder %s15, 0
    %p68 = por %p66, %p67
    %s70 = sadd.s32 %s69, 1
    %p73 = scmp.eq.s32.totalorder %s9, 1
    %p74 = scmp.ne.s32.totalorder %s69, %s71
    %p75 = scmp.eq.s32.totalorder %s9, 0
    %p76 = por %p74, %p75
    %p77 = scmp.ne.s32.totalorder %s69, %s71
    %p78 = scmp.eq.s32.totalorder %s14, 1
    %p79 = por %p77, %p78
    %p80 = scmp.ne.s32.totalorder %s71, %s72
    %p81 = scmp.eq.s32.totalorder %s14, 0
    %p82 = por %p80, %p81
    %p83 = scmp.ne.s32.totalorder %s71, %s72
    %p84 = scmp.eq.s32.totalorder %s15, 1
    %p85 = por %p83, %p84
    %p87 = scmp.ne.s32.totalorder %s72, %s86
    %p88 = scmp.eq.s32.totalorder %s15, 0
    %p89 = por %p87, %p88
    %s90 = ssub.s32 %s9, %s16
    %p91 = scmp.eq.s32.totalorder %s90, 0
    %s93 = sadd.s32 %s92, 1
    %s94 = scalar_select %p91, %s92, %s93
    %p97 = pneg %p91
    %p98 = scmp.eq.s32.totalorder %s9, 1
    %p99 = por %p97, %p98
    %p100 = scmp.ne.s32.totalorder %s92, %s95
    %p101 = scmp.eq.s32.totalorder %s9, 0
    %p102 = por %p100, %p101
    %p103 = scmp.ne.s32.totalorder %s92, %s95
    %p104 = scmp.eq.s32.totalorder %s14, 1
    %p105 = por %p103, %p104
    %p106 = scmp.ne.s32.totalorder %s95, %s96
    %p107 = scmp.eq.s32.totalorder %s14, 0
    %p108 = por %p106, %p107
    %p109 = scmp.ne.s32.totalorder %s95, %s96
    %p110 = scmp.eq.s32.totalorder %s15, 1
    %p111 = por %p109, %p110
    %p113 = scmp.ne.s32.totalorder %s96, %s112
    %p114 = scmp.eq.s32.totalorder %s15, 0
    %p115 = por %p113, %p114
    %p116 = scmp.le.s32.totalorder 1, %s9
    %p117 = scmp.lt.s32.totalorder %s9, 3
    %p118 = pnand %p116, %p117
    %p119 = pneg %p118
    // Predicated region
    $region9: #{multi_scale_attention_gate.5} parent=5 // pred_check
      _
    $region10: #{multi_scale_attention_gate.5} parent=5 // pred_check_branch
      %121 = sbr.rel (%p118) target = $region12
    $region11: #{multi_scale_attention_gate.5} parent=5 // pred_region
      %s122 = ssub.s32 %s9, 1
      // Predicated region
      $region13: #{multi_scale_attention_gate.5} parent=11 // pred_check
        %p123 = pneg %p82
      $region14: #{multi_scale_attention_gate.5} parent=11 // pred_check_branch
        %125 = sbr.rel (%p123) target = $region16
      $region15: #{multi_scale_attention_gate.5} parent=11 // pred_region
        _
      $region16: #{multi_scale_attention_gate.5} parent=11 // pred_fallthru
        _
    $region12: #{multi_scale_attention_gate.5} parent=5 // pred_fallthru
      _
    %p126 = scmp.lt.s32.totalorder %s9, 2
    // Predicated region
    $region17: #{multi_scale_attention_gate.5} parent=5 // pred_check
      %p127 = pneg %p126
    $region18: #{multi_scale_attention_gate.5} parent=5 // pred_check_branch
      %129 = sbr.rel (%p127) target = $region20
    $region19: #{multi_scale_attention_gate.5} parent=5 // pred_region
      // Predicated region
      $region21: #{multi_scale_attention_gate.5} parent=19 // pred_check
        %p130 = pneg %p29
      $region22: #{multi_scale_attention_gate.5} parent=19 // pred_check_branch
        %132 = sbr.rel (%p130) target = $region24
      $region23: #{multi_scale_attention_gate.5} parent=19 // pred_region
        %p133 = scmp.lt.s32.totalorder %s9, 1
        %s134 = scalar_select %p133, %s9, 1
        %s135 = smul.addr %s134, 2
        %s136 = smul.addr %s135, 4
        %s137 = scalar_lea.vmem %s0, %s136
      $region24: #{multi_scale_attention_gate.5} parent=19 // pred_fallthru
        _
      // Predicated region
      $region25: #{multi_scale_attention_gate.5} parent=19 // pred_check
        %p138 = pneg %p55
      $region26: #{multi_scale_attention_gate.5} parent=19 // pred_check_branch
        %140 = sbr.rel (%p138) target = $region28
      $region27: #{multi_scale_attention_gate.5} parent=19 // pred_region
        %p141 = scmp.lt.s32.totalorder %s9, 1
        %s142 = scalar_select %p141, %s9, 1
        %s143 = smul.addr %s142, 2
        %s144 = smul.addr %s143, 4
        %s145 = scalar_lea.vmem %s1, %s144
      $region28: #{multi_scale_attention_gate.5} parent=19 // pred_fallthru
        _
    $region20: #{multi_scale_attention_gate.5} parent=5 // pred_fallthru
      _
    %p146 = scmp.le.s32.totalorder 1, %s9
    %p147 = scmp.lt.s32.totalorder %s9, 3
    %p148 = pnand %p146, %p147
    %p149 = pneg %p148
    // Predicated region
    $region29: #{multi_scale_attention_gate.5} parent=5 // pred_check
      _
    $region30: #{multi_scale_attention_gate.5} parent=5 // pred_check_branch
      %151 = sbr.rel (%p148) target = $region32
    $region31: #{multi_scale_attention_gate.5} parent=5 // pred_region
      %s152 = ssub.s32 %s9, 1
      %p153 = scmp.lt.s32.totalorder %s14, 1
      %s154 = scalar_select %p153, %s14, 1
      %s155 = smul.addr %s154, 2
      %s156 = smul.addr %s155, 4
      %s157 = scalar_lea.vmem %s0, %s156
      %p158 = pneg %p35
      %p159 = pneg %p32
      %p160 = scmp.lt.s32.totalorder %s14, 1
      %s161 = scalar_select %p160, %s14, 1
      %s162 = smul.addr %s161, 2
      %s163 = smul.addr %s162, 4
      %s164 = scalar_lea.vmem %s1, %s163
      %p165 = pneg %p61
      %p166 = pneg %p58
      %p167 = pneg %p82
      %p168 = pneg %p79
      %p169 = pneg %p108
      %p170 = pneg %p105
      %p171 = scmp.lt.s32.totalorder %s14, 1
      %s172 = scalar_select %p171, %s14, 1
      %s173 = smul.addr %s172, 2
      %s174 = smul.addr %s173, 4
      %s175 = scalar_lea.vmem %s3, %s174
      %p176 = scmp.lt.s32.totalorder %s14, 1
      %s177 = scalar_select %p176, %s14, 1
      %s178 = smul.addr %s177, 2
      %s179 = smul.addr %s178, 4
      %s180 = scalar_lea.vmem %s0, %s179
      %p181 = scmp.lt.s32.totalorder %s14, 1
      %s182 = scalar_select %p181, %s14, 1
      %s183 = smul.addr %s182, 2
      %s184 = smul.addr %s183, 4
      %s185 = scalar_lea.vmem %s1, %s184
      %p186 = scmp.lt.s32.totalorder %s14, 1
      %s187 = scalar_select %p186, %s14, 1
      %s188 = smul.addr %s187, 2
      %s189 = smul.addr %s188, 4
      %s190 = scalar_lea.vmem %s3, %s189
      %v191 = vld [vmem:[%s2] sm:$0xf]
      %v192 = vld [vmem:[%s180] sm:$0xff]
      %v193 = vld [vmem:[%s185] sm:$0xff]
      %195 = vset.pattern.permute.xlu0 0
      %196 = vperm.xlu0 %195, %v191
      %v197 = vpop.permute.xlu0 %196
      %v199 = vunpack.c.l.s4 839922192
      %v200 = vunpack.c.0.s8 %v199
      %v201 = vlaneseq
      %v202 = vshrl.u32 %v201, 7
      %v203 = vsub.s32 %v200, %v202
      %v204 = vrot.slane %v197, %v203
      %v206 = vmul.f32 %v193, %v204
      %207 = vset.pattern.permute.xlu0 1
      %208 = vperm.xlu0 %207, %v191
      %v209 = vpop.permute.xlu0 %208
      %v211 = vunpack.c.l.s4 839922192
      %v212 = vunpack.c.0.s8 %v211
      %v213 = vlaneseq
      %v214 = vshrl.u32 %v213, 7
      %v215 = vsub.s32 %v212, %v214
      %v216 = vrot.slane %v209, %v215
      %v218 = vadd.f32 %v206, %v216
      %v219 = vmul.f32 %v218, 0.5
      %v220 = vmul.f32 %v218, 0.70710677
      %v221 = vmax.f32 %v220, -4.0
      %v222 = vmin.f32 %v221, 4.0
      %v223 = vmul.f32 %v222, %v222
      %v224 = vmul.f32 %v223, -2.7261424e-10
      %v225 = vadd.f32 %v224, 2.7706815e-08
      %v226 = vmul.f32 %v225, %v223
      %v227 = vadd.f32 %v226, -2.101024e-06
      %v228 = vmul.f32 %v227, %v223
      %v229 = vadd.f32 %v228, -5.6925062e-05
      %v230 = vmul.f32 %v229, %v223
      %v231 = vadd.f32 %v230, -0.00073499064
      %v232 = vmul.f32 %v231, %v223
      %v233 = vadd.f32 %v232, -0.0029546
      %v234 = vmul.f32 %v233, %v223
      %v235 = vadd.f32 %v234, -0.016096033
      %v236 = vmul.f32 %v222, %v235
      %v237 = vmul.f32 %v223, -1.45660715e-05
      %v238 = vadd.f32 %v237, -0.00021337405
      %v239 = vmul.f32 %v238, %v223
      %v240 = vadd.f32 %v239, -0.001682827
      %v241 = vmul.f32 %v240, %v223
      %v242 = vadd.f32 %v241, -0.0073733293
      %v243 = vmul.f32 %v242, %v223
      %v244 = vadd.f32 %v243, -0.014264739
      %v245 = vrcp.pop %v244
      %v246 = vmul.f32 %v236, %v245
      %v247 = vadd.f32 %v246, 1.0
      %v248 = vmul.f32 %v219, %v247
      %v249 = vmul.f32 %v192, %v248
      %v250 = vadd.f32 %v192, %v249
      %251 = vst [vmem:[%s190] sm:$0xff] %v250
      %p252 = scmp.lt.s32.totalorder %s14, 1
      %s253 = scalar_select %p252, %s14, 1
      %s254 = smul.addr %s253, 2
      %s255 = smul.addr %s254, 4
      %s256 = scalar_lea.vmem %s3, %s255
      // Predicated region
      $region33: #{multi_scale_attention_gate.5} parent=31 // pred_check
        %p257 = pneg %p105
      $region34: #{multi_scale_attention_gate.5} parent=31 // pred_check_branch
        %259 = sbr.rel (%p257) target = $region36
      $region35: #{multi_scale_attention_gate.5} parent=31 // pred_region
        _
      $region36: #{multi_scale_attention_gate.5} parent=31 // pred_fallthru
        _
    $region32: #{multi_scale_attention_gate.5} parent=5 // pred_fallthru
      _
    %p260 = scmp.le.s32.totalorder 2, %s9
    // Predicated region
    $region37: #{multi_scale_attention_gate.5} parent=5 // pred_check
      %p261 = pneg %p260
    $region38: #{multi_scale_attention_gate.5} parent=5 // pred_check_branch
      %263 = sbr.rel (%p261) target = $region40
    $region39: #{multi_scale_attention_gate.5} parent=5 // pred_region
      %s264 = ssub.s32 %s9, 2
      // Predicated region
      $region41: #{multi_scale_attention_gate.5} parent=39 // pred_check
        %p265 = pneg %p111
      $region42: #{multi_scale_attention_gate.5} parent=39 // pred_check_branch
        %267 = sbr.rel (%p265) target = $region44
      $region43: #{multi_scale_attention_gate.5} parent=39 // pred_region
        %p268 = scmp.lt.s32.totalorder %s15, 1
        %s269 = scalar_select %p268, %s15, 1
        %s270 = smul.addr %s269, 2
        %s271 = smul.addr %s270, 4
        %s272 = scalar_lea.vmem %s3, %s271
      $region44: #{multi_scale_attention_gate.5} parent=39 // pred_fallthru
        _
    $region40: #{multi_scale_attention_gate.5} parent=5 // pred_fallthru
      _
  $region6: #{multi_scale_attention_gate.5} parent=0 // loop_footer
    %s13 = sadd.s32 1, %s9
  $region7: #{multi_scale_attention_gate.5} parent=0 // loop_footer_branch
    %8 = sbr.rel target = $region3
  $region8: #{multi_scale_attention_gate.5} parent=0 // loop_exit
    _

// kernel: multi_scale_attention_gate.3
$region0: #{multi_scale_attention_gate.3}
  #allocation0 [shape = 'u32[]', space=smem, size = 0x4, offset = 0x4, fixed_abs, tag = 'smem constant byte address 0x4 - core index']
  #allocation1 [shape = 'u32[144,128]{1,0:T(1,128)}', space=vmem, size = 0x12000, scoped, tag = 'internal scratch']
  #allocation2 [shape = 'f32[4,324]{1,0:T(4,128)}', space=vmem, size = 0x1800, scoped, tag = 'scratch operand']
  %s0 = inlined_call_operand.vmem [shape: f32[2,4,256], index: 0, kind: input, shape index: {}]
  %s1 = inlined_call_operand.vmem [shape: f32[4,4], index: 1, kind: input, shape index: {}]
  %s2 = inlined_call_operand.vmem [shape: f32[4,36], index: 2, kind: input, shape index: {}]
  %s3 = inlined_call_operand.vmem [shape: f32[4,36], index: 3, kind: input, shape index: {}]
  %s4 = inlined_call_operand.vmem [shape: f32[4,6], index: 4, kind: output, shape index: {}]
  %s5 = sld [smem:[#allocation0]]
  $region57: #{multi_scale_attention_gate.3} parent=0
    _
  %s7 = ssub.s32 1, %s5
  %s8 = scalar_select 0, %s7, %s5
  loop: start=0, step=1, limit=4
  $region2: #{multi_scale_attention_gate.3} parent=0 // loop_pre_header
    _
  $region3: #{multi_scale_attention_gate.3} parent=0 // loop_header
    %s10 = sphi 0, %s14
    %p11 = scmp.ge.s32.totalorder %s10, 4
    %s20 = sphi 0, %s22
    %s23 = sphi 0, %s20
    %s24 = sphi 0, %s23
    %s40 = sphi 0, %s24
    %s44 = sphi 0, %s44
    %s46 = sphi 0, %s44
    %s47 = sphi 0, %s46
    %s61 = sphi 0, %s47
    %s65 = sphi 0, %s65
    %s67 = sphi 0, %s65
    %s68 = sphi 0, %s67
    %s82 = sphi 0, %s68
    %s86 = sphi 0, %s86
    %s88 = sphi 0, %s86
    %s89 = sphi 0, %s88
    %s103 = sphi 0, %s89
    %s107 = sphi 0, %s107
    %s109 = sphi 0, %s107
    %s110 = sphi 0, %s109
    %s124 = sphi 0, %s110
  $region4: #{multi_scale_attention_gate.3} parent=0 // loop_header_branch
    %13 = sbr.rel (%p11) target = $region8
  $region5: #{multi_scale_attention_gate.3} parent=0 // loop_body
    %s15 = ssub.s32 %s10, 1
    %s16 = ssub.s32 %s10, 2
    %s17 = sadd.s32 %s10, 1
    %s18 = ssub.s32 %s10, %s17
    %p19 = scmp.eq.s32.totalorder %s18, 0
    %s21 = sadd.s32 %s20, 1
    %s22 = scalar_select %p19, %s20, %s21
    %p25 = pneg %p19
    %p26 = scmp.eq.s32.totalorder %s10, 1
    %p27 = por %p25, %p26
    %p28 = scmp.ne.s32.totalorder %s20, %s23
    %p29 = scmp.eq.s32.totalorder %s10, 0
    %p30 = por %p28, %p29
    %p31 = scmp.ne.s32.totalorder %s20, %s23
    %p32 = scmp.eq.s32.totalorder %s15, 1
    %p33 = por %p31, %p32
    %p34 = scmp.ne.s32.totalorder %s23, %s24
    %p35 = scmp.eq.s32.totalorder %s15, 0
    %p36 = por %p34, %p35
    %p37 = scmp.ne.s32.totalorder %s23, %s24
    %p38 = scmp.eq.s32.totalorder %s16, 1
    %p39 = por %p37, %p38
    %p41 = scmp.ne.s32.totalorder %s24, %s40
    %p42 = scmp.eq.s32.totalorder %s16, 0
    %p43 = por %p41, %p42
    %s45 = sadd.s32 %s44, 1
    %p48 = scmp.eq.s32.totalorder %s10, 1
    %p49 = scmp.ne.s32.totalorder %s44, %s46
    %p50 = scmp.eq.s32.totalorder %s10, 0
    %p51 = por %p49, %p50
    %p52 = scmp.ne.s32.totalorder %s44, %s46
    %p53 = scmp.eq.s32.totalorder %s15, 1
    %p54 = por %p52, %p53
    %p55 = scmp.ne.s32.totalorder %s46, %s47
    %p56 = scmp.eq.s32.totalorder %s15, 0
    %p57 = por %p55, %p56
    %p58 = scmp.ne.s32.totalorder %s46, %s47
    %p59 = scmp.eq.s32.totalorder %s16, 1
    %p60 = por %p58, %p59
    %p62 = scmp.ne.s32.totalorder %s47, %s61
    %p63 = scmp.eq.s32.totalorder %s16, 0
    %p64 = por %p62, %p63
    %s66 = sadd.s32 %s65, 1
    %p69 = scmp.eq.s32.totalorder %s10, 1
    %p70 = scmp.ne.s32.totalorder %s65, %s67
    %p71 = scmp.eq.s32.totalorder %s10, 0
    %p72 = por %p70, %p71
    %p73 = scmp.ne.s32.totalorder %s65, %s67
    %p74 = scmp.eq.s32.totalorder %s15, 1
    %p75 = por %p73, %p74
    %p76 = scmp.ne.s32.totalorder %s67, %s68
    %p77 = scmp.eq.s32.totalorder %s15, 0
    %p78 = por %p76, %p77
    %p79 = scmp.ne.s32.totalorder %s67, %s68
    %p80 = scmp.eq.s32.totalorder %s16, 1
    %p81 = por %p79, %p80
    %p83 = scmp.ne.s32.totalorder %s68, %s82
    %p84 = scmp.eq.s32.totalorder %s16, 0
    %p85 = por %p83, %p84
    %s87 = sadd.s32 %s86, 1
    %p90 = scmp.eq.s32.totalorder %s10, 1
    %p91 = scmp.ne.s32.totalorder %s86, %s88
    %p92 = scmp.eq.s32.totalorder %s10, 0
    %p93 = por %p91, %p92
    %p94 = scmp.ne.s32.totalorder %s86, %s88
    %p95 = scmp.eq.s32.totalorder %s15, 1
    %p96 = por %p94, %p95
    %p97 = scmp.ne.s32.totalorder %s88, %s89
    %p98 = scmp.eq.s32.totalorder %s15, 0
    %p99 = por %p97, %p98
    %p100 = scmp.ne.s32.totalorder %s88, %s89
    %p101 = scmp.eq.s32.totalorder %s16, 1
    %p102 = por %p100, %p101
    %p104 = scmp.ne.s32.totalorder %s89, %s103
    %p105 = scmp.eq.s32.totalorder %s16, 0
    %p106 = por %p104, %p105
    %s108 = sadd.s32 %s107, 1
    %p111 = scmp.eq.s32.totalorder %s10, 1
    %p112 = scmp.ne.s32.totalorder %s107, %s109
    %p113 = scmp.eq.s32.totalorder %s10, 0
    %p114 = por %p112, %p113
    %p115 = scmp.ne.s32.totalorder %s107, %s109
    %p116 = scmp.eq.s32.totalorder %s15, 1
    %p117 = por %p115, %p116
    %p118 = scmp.ne.s32.totalorder %s109, %s110
    %p119 = scmp.eq.s32.totalorder %s15, 0
    %p120 = por %p118, %p119
    %p121 = scmp.ne.s32.totalorder %s109, %s110
    %p122 = scmp.eq.s32.totalorder %s16, 1
    %p123 = por %p121, %p122
    %p125 = scmp.ne.s32.totalorder %s110, %s124
    %p126 = scmp.eq.s32.totalorder %s16, 0
    %p127 = por %p125, %p126
    %p128 = scmp.le.s32.totalorder 1, %s10
    %p129 = scmp.lt.s32.totalorder %s10, 3
    %p130 = pnand %p128, %p129
    %p131 = pneg %p130
    // Predicated region
    $region9: #{multi_scale_attention_gate.3} parent=5 // pred_check
      _
    $region10: #{multi_scale_attention_gate.3} parent=5 // pred_check_branch
      %133 = sbr.rel (%p130) target = $region12
    $region11: #{multi_scale_attention_gate.3} parent=5 // pred_region
      %s134 = ssub.s32 %s10, 1
      // Predicated region
      $region13: #{multi_scale_attention_gate.3} parent=11 // pred_check
        %p135 = pneg %p57
      $region14: #{multi_scale_attention_gate.3} parent=11 // pred_check_branch
        %137 = sbr.rel (%p135) target = $region16
      $region15: #{multi_scale_attention_gate.3} parent=11 // pred_region
        _
      $region16: #{multi_scale_attention_gate.3} parent=11 // pred_fallthru
        _
      // Predicated region
      $region17: #{multi_scale_attention_gate.3} parent=11 // pred_check
        %p138 = pneg %p78
      $region18: #{multi_scale_attention_gate.3} parent=11 // pred_check_branch
        %140 = sbr.rel (%p138) target = $region20
      $region19: #{multi_scale_attention_gate.3} parent=11 // pred_region
        _
      $region20: #{multi_scale_attention_gate.3} parent=11 // pred_fallthru
        _
      // Predicated region
      $region21: #{multi_scale_attention_gate.3} parent=11 // pred_check
        %p141 = pneg %p99
      $region22: #{multi_scale_attention_gate.3} parent=11 // pred_check_branch
        %143 = sbr.rel (%p141) target = $region24
      $region23: #{multi_scale_attention_gate.3} parent=11 // pred_region
        _
      $region24: #{multi_scale_attention_gate.3} parent=11 // pred_fallthru
        _
    $region12: #{multi_scale_attention_gate.3} parent=5 // pred_fallthru
      _
    %p144 = scmp.lt.s32.totalorder %s10, 2
    // Predicated region
    $region25: #{multi_scale_attention_gate.3} parent=5 // pred_check
      %p145 = pneg %p144
    $region26: #{multi_scale_attention_gate.3} parent=5 // pred_check_branch
      %147 = sbr.rel (%p145) target = $region28
    $region27: #{multi_scale_attention_gate.3} parent=5 // pred_region
      // Predicated region
      $region29: #{multi_scale_attention_gate.3} parent=27 // pred_check
        %p148 = pneg %p30
      $region30: #{multi_scale_attention_gate.3} parent=27 // pred_check_branch
        %150 = sbr.rel (%p148) target = $region32
      $region31: #{multi_scale_attention_gate.3} parent=27 // pred_region
        %p151 = scmp.lt.s32.totalorder %s10, 1
        %s152 = scalar_select %p151, %s10, 1
        %s153 = smul.addr %s152, 2
        %s154 = smul.addr %s153, 4
        %s155 = scalar_lea.vmem %s0, %s154
      $region32: #{multi_scale_attention_gate.3} parent=27 // pred_fallthru
        _
    $region28: #{multi_scale_attention_gate.3} parent=5 // pred_fallthru
      _
    %p156 = scmp.le.s32.totalorder 1, %s10
    %p157 = scmp.lt.s32.totalorder %s10, 3
    %p158 = pnand %p156, %p157
    %p159 = pneg %p158
    // Predicated region
    $region33: #{multi_scale_attention_gate.3} parent=5 // pred_check
      _
    $region34: #{multi_scale_attention_gate.3} parent=5 // pred_check_branch
      %161 = sbr.rel (%p158) target = $region36
    $region35: #{multi_scale_attention_gate.3} parent=5 // pred_region
      %s162 = ssub.s32 %s10, 1
      %p163 = scmp.lt.s32.totalorder %s15, 1
      %s164 = scalar_select %p163, %s15, 1
      %s165 = smul.addr %s164, 2
      %s166 = smul.addr %s165, 4
      %s167 = scalar_lea.vmem %s0, %s166
      %p168 = pneg %p36
      %p169 = pneg %p33
      %p170 = pneg %p57
      %p171 = pneg %p54
      %p172 = pneg %p78
      %p173 = pneg %p75
      %p174 = pneg %p99
      %p175 = pneg %p96
      %p176 = pneg %p120
      %p177 = pneg %p117
      %p178 = scmp.lt.s32.totalorder %s15, 1
      %s179 = scalar_select %p178, %s15, 1
      %s180 = smul.addr %s179, 2
      %s181 = smul.addr %s180, 4
      %s182 = scalar_lea.vmem %s0, %s181
      %p183 = scmp.eq.s32.totalorder %s15, 0
      // Predicated region
      $region37: #{multi_scale_attention_gate.3} parent=35 // pred_check
        %p184 = pneg %p183
      $region38: #{multi_scale_attention_gate.3} parent=35 // pred_check_branch
        %186 = sbr.rel (%p184) target = $region40
      $region39: #{multi_scale_attention_gate.3} parent=35 // pred_region
        %vm187 = vcmask 44032
        %188 = vst.msk [vmem:[%s4] sm:$0xf] %vm187, 0.0
      $region40: #{multi_scale_attention_gate.3} parent=35 // pred_fallthru
        _
      %v189 = vld [vmem:[%s182] sm:$0xff]
      // Predicated region
      $region41: #{multi_scale_attention_gate.3} parent=35 // pred_check
        %p190 = pneg %p183
      $region42: #{multi_scale_attention_gate.3} parent=35 // pred_check_branch
        %192 = sbr.rel (%p190) target = $region44
      $region43: #{multi_scale_attention_gate.3} parent=35 // pred_region
        %193 = vst [vmem:[#allocation2] sm:$0xff] 0.0
        %vm194 = vcmask 551936
        %195 = vst.msk [vmem:[#allocation2 + $0x8] sm:$0xf] %vm194, 0.0
      $region44: #{multi_scale_attention_gate.3} parent=35 // pred_fallthru
        _
      %197 = vrot.lane.b32.xlu0 %v189, 34
      %v198 = vpop.permute.xlu0 %197
      %v199 = vrot.slane %v198, 4
      %vm200 = vcmask 277504
      %v201 = vsel %vm200, %v199, %v198
      %vm204 = vcmask 1043728
      %vm205 = vcmask 1047556
      %vm206 = vmor %vm205, %vm204
      %207 = vst.msk [vmem:[#allocation2] sm:$0xff] %vm206, %v201
      %vm208 = vcmask 273408
      %209 = vst.msk [vmem:[#allocation2 + $0x8] sm:$0xf] %vm208, %v199
      %v210 = vlaneseq
      %v211 = vand.u32 %v210, 127
      %v212 = vadd.s32 %v211, 128
      %vm213 = vcmp.lt.s32.totalorder %v211, 0
      %v214 = vsub.s32 0, %v211
      %v215 = vsel %vm213, %v214, %v211
      %v216 = vshrl.u32 %v215, 4
      %v217 = vand.u32 %v215, 15
      %v218 = vsub.s32 0, %v217
      %v219 = vsel %vm213, %v218, %v217
      %vm220 = vcmp.lt.s32.totalorder %v212, 0
      %v221 = vsub.s32 0, %v212
      %v222 = vsel %vm220, %v221, %v212
      %v223 = vshrl.u32 %v222, 4
      %v224 = vand.u32 %v222, 15
      %v225 = vsub.s32 0, %v224
      %v226 = vsel %vm220, %v225, %v224
      %vm227 = vcmp.ne.s32.totalorder %v219, 0
      %vm228 = vcmp.ne.s32.totalorder %v226, 0
      %vm229 = vcmp.lt.s32.totalorder %v219, 0
      %vm230 = vcmp.lt.s32.totalorder %v226, 0
      %vm231 = vmand %vm229, %vm227
      %vm232 = vmand %vm230, %vm228
      %v233 = vadd.s32 %v219, 16
      %v234 = vadd.s32 %v226, 16
      %v235 = vsel %vm231, %v233, %v219
      %v236 = vsel %vm232, %v234, %v226
      %v237 = vadd.s32 %v235, 4294967294
      %v238 = vadd.s32 %v236, 4294967294
      %vm239 = vcmp.ge.s32.totalorder %v237, 0
      %vm240 = vcmp.ge.s32.totalorder %v238, 0
      %vm241 = vcmp.lt.s32.totalorder %v237, 16
      %vm242 = vcmp.lt.s32.totalorder %v238, 16
      %vm243 = vmand %vm239, %vm241
      %vm244 = vmand %vm240, %vm242
      %v245 = vadd.s32 %v235, 4294967295
      %v246 = vadd.s32 %v236, 4294967295
      %vm247 = vcmp.ge.s32.totalorder %v245, 0
      %vm248 = vcmp.ge.s32.totalorder %v246, 0
      %vm249 = vcmp.lt.s32.totalorder %v245, 16
      %vm250 = vcmp.lt.s32.totalorder %v246, 16
      %vm251 = vmand %vm247, %vm249
      %vm252 = vmand %vm248, %vm250
      %v253 = vadd.s32 %v235, 1
      %v254 = vadd.s32 %v236, 1
      %vm255 = vcmp.ge.s32.totalorder %v253, 0
      %vm256 = vcmp.ge.s32.totalorder %v254, 0
      %vm257 = vcmp.lt.s32.totalorder %v253, 16
      %vm258 = vcmp.lt.s32.totalorder %v254, 16
      %vm259 = vmand %vm255, %vm257
      %vm260 = vmand %vm256, %vm258
      %v261 = vadd.s32 %v235, 2
      %v262 = vadd.s32 %v236, 2
      %vm263 = vcmp.ge.s32.totalorder %v261, 0
      %vm264 = vcmp.ge.s32.totalorder %v262, 0
      %vm265 = vcmp.lt.s32.totalorder %v261, 16
      %vm266 = vcmp.lt.s32.totalorder %v262, 16
      %vm267 = vmand %vm263, %vm265
      %vm268 = vmand %vm264, %vm266
      %v269 = vld [vmem:[%s1] sm:$0xf]
      %v270 = vld [vmem:[%s2] sm:$0xf]
      %v271 = vld [vmem:[%s3] sm:$0xf]
      %v272 = vcombine.high %v189, %v189
      %vm273 = vcmask 31744
      %v275 = vsel %vm273, %v269, 0
      %vm277 = vcmask 1043456
      %v278 = vsel %vm277, %v189, 0
      %v280 = vsel %vm277, %v272, 0
      %282 = vmatprep.subr.mxu0 0.0
      %283 = vmatpush1.msra.mxu0 0.0
      %284 = vmatprep.subr.mxu0 0.0
      %285 = vmatpush1.msra.mxu0 0.0
      %286 = vmatprep.subr.mxu0 0.0
      %287 = vmatpush1.msra.mxu0 0.0
      %288 = vmatprep.subr.mxu0 0.0
      %289 = vmatpush1.msra.mxu0 0.0
      %290 = vmatprep.subr.mxu0 0.0
      %291 = vmatpush1.msra.mxu0 0.0
      %292 = vmatprep.subr.mxu0 0.0
      %293 = vmatpush1.msra.mxu0 0.0
      %294 = vmatprep.subr.mxu0 0.0
      %295 = vmatpush1.msra.mxu0 0.0
      %296 = vmatprep.subr.mxu0 0.0
      %297 = vmatpush1.msra.mxu0 0.0
      %298 = vmatprep.subr.mxu0 0.0
      %299 = vmatpush1.msra.mxu0 0.0
      %300 = vmatprep.subr.mxu0 0.0
      %301 = vmatpush1.msra.mxu0 0.0
      %302 = vmatprep.subr.mxu0 0.0
      %303 = vmatpush1.msra.mxu0 0.0
      %304 = vmatprep.subr.mxu0 0.0
      %305 = vmatpush1.msra.mxu0 0.0
      %306 = vmatprep.subr.mxu0 0.0
      %307 = vmatpush1.msra.mxu0 0.0
      %308 = vmatprep.subr.mxu0 0.0
      %309 = vmatpush1.msra.mxu0 0.0
      %310 = vmatprep.subr.mxu0 0.0
      %311 = vmatpush1.msra.mxu0 0.0
      %312 = vmatprep.subr.mxu0 %v280
      %313 = vmatpush1.msra.mxu0 %v278
      %314 = vmatprep.subr.mxu0 0.0
      %315 = vmatpush2.msra.mxu0 0.0
      %316 = vmatprep.subr.mxu0 0.0
      %317 = vmatpush2.msra.mxu0 0.0
      %318 = vmatprep.subr.mxu0 0.0
      %319 = vmatpush2.msra.mxu0 0.0
      %320 = vmatprep.subr.mxu0 0.0
      %321 = vmatpush2.msra.mxu0 0.0
      %322 = vmatprep.subr.mxu0 0.0
      %323 = vmatpush2.msra.mxu0 0.0
      %324 = vmatprep.subr.mxu0 0.0
      %325 = vmatpush2.msra.mxu0 0.0
      %326 = vmatprep.subr.mxu0 0.0
      %327 = vmatpush2.msra.mxu0 0.0
      %328 = vmatprep.subr.mxu0 0.0
      %329 = vmatpush2.msra.mxu0 0.0
      %330 = vmatprep.subr.mxu0 0.0
      %331 = vmatpush2.msra.mxu0 0.0
      %332 = vmatprep.subr.mxu0 0.0
      %333 = vmatpush2.msra.mxu0 0.0
      %334 = vmatprep.subr.mxu0 0.0
      %335 = vmatpush2.msra.mxu0 0.0
      %336 = vmatprep.subr.mxu0 0.0
      %337 = vmatpush2.msra.mxu0 0.0
      %338 = vmatprep.subr.mxu0 0.0
      %339 = vmatpush2.msra.mxu0 0.0
      %340 = vmatprep.subr.mxu0 0.0
      %341 = vmatpush2.msra.mxu0 0.0
      %342 = vmatprep.subr.mxu0 0.0
      %343 = vmatpush2.msra.mxu0 0.0
      %344 = vmatprep.subr.mxu0 0.0
      %345 = vmatpush2.msra.mxu0 0.0
      %346 = vmatprep.mubr.f32.mxu0 0.0
      %347 = vmatmul.mubr.f32.gmra.mxu0 %v275
      %v348 = vpop.f32.mrf.mxu0
      %v349 = vadd.f32 0.0, %v348
      %v350 = vpop.f32.mrf.mxu0
      %v351 = vadd.f32 0.0, %v350
      %352 = vdwg.mxu0
      %v353 = vld [vmem:[#allocation2] sm:$0xff]
      %v354 = vld [vmem:[#allocation2 + $0x8] sm:$0xf]
      %v355 = vsel %vm251, 1, 0
      %v356 = vsel %vm252, 1, 0
      %vm357 = vcmp.eq.s32.totalorder %v355, 1
      %vm358 = vcmp.eq.s32.totalorder %v356, 1
      %v361 = vcombine.high %v353, %v353
      %362 = vrot.lane.b32.xlu0 %v353, 111
      %v363 = vpop.permute.xlu0 %362
      %364 = vrot.lane.b32.xlu0 %v361, 111
      %v365 = vpop.permute.xlu0 %364
      %366 = vrot.lane.b32.xlu0 %v354, 111
      %v367 = vpop.permute.xlu0 %366
      %vm368 = vcmask 908288
      %v369 = vsel %vm368, %v363, %v365
      %v370 = vsel %vm368, %v365, %v367
      %v373 = vsel %vm357, %v369, 0.0
      %v374 = vsel %vm358, %v370, 0.0
      %v375 = vsel %vm243, 1, 0
      %v376 = vsel %vm244, 1, 0
      %vm377 = vcmp.eq.s32.totalorder %v375, 1
      %vm378 = vcmp.eq.s32.totalorder %v376, 1
      %v380 = vsel %vm377, %v353, 0.0
      %v381 = vsel %vm378, %v361, 0.0
      %v382 = vsel %vm259, 1, 0
      %v383 = vsel %vm260, 1, 0
      %vm384 = vcmp.eq.s32.totalorder %v382, 1
      %vm385 = vcmp.eq.s32.totalorder %v383, 1
      %386 = vrot.lane.b32.xlu0 %v353, 109
      %v387 = vpop.permute.xlu0 %386
      %388 = vrot.lane.b32.xlu0 %v361, 109
      %v389 = vpop.permute.xlu0 %388
      %390 = vrot.lane.b32.xlu0 %v354, 109
      %v391 = vpop.permute.xlu0 %390
      %vm392 = vcmask 891904
      %v393 = vsel %vm392, %v387, %v389
      %v394 = vsel %vm392, %v389, %v391
      %v397 = vsel %vm384, %v393, 0.0
      %v398 = vsel %vm385, %v394, 0.0
      %v399 = vsel %vm267, 1, 0
      %v400 = vsel %vm268, 1, 0
      %vm401 = vcmp.eq.s32.totalorder %v399, 1
      %vm402 = vcmp.eq.s32.totalorder %v400, 1
      %403 = vrot.lane.b32.xlu0 %v353, 124
      %v404 = vpop.permute.xlu0 %403
      %405 = vrot.lane.b32.xlu0 %v361, 124
      %v406 = vpop.permute.xlu0 %405
      %407 = vrot.lane.b32.xlu0 %v354, 124
      %v408 = vpop.permute.xlu0 %407
      %vm409 = vcmask 1014784
      %v410 = vsel %vm409, %v404, %v406
      %v411 = vsel %vm409, %v406, %v408
      %v414 = vsel %vm401, %v410, 0.0
      %v415 = vsel %vm402, %v411, 0.0
      %416 = vrot.lane.b32.xlu0 %v353, 95
      %v417 = vpop.permute.xlu0 %416
      %418 = vrot.lane.b32.xlu0 %v361, 95
      %v419 = vpop.permute.xlu0 %418
      %420 = vrot.lane.b32.xlu0 %v354, 95
      %v421 = vpop.permute.xlu0 %420
      %vm422 = vcmask 777216
      %v423 = vsel %vm422, %v417, %v419
      %v424 = vsel %vm422, %v419, %v421
      %v427 = vsel %vm357, %v423, 0.0
      %v428 = vsel %vm358, %v424, 0.0
      %429 = vrot.lane.b32.xlu0 %v353, 96
      %v430 = vpop.permute.xlu0 %429
      %431 = vrot.lane.b32.xlu0 %v361, 96
      %v432 = vpop.permute.xlu0 %431
      %433 = vrot.lane.b32.xlu0 %v354, 96
      %v434 = vpop.permute.xlu0 %433
      %vm435 = vcmask 785408
      %v436 = vsel %vm435, %v430, %v432
      %v437 = vsel %vm435, %v432, %v434
      %v440 = vsel %vm377, %v436, 0.0
      %v441 = vsel %vm378, %v437, 0.0
      %442 = vrot.lane.b32.xlu0 %v353, 93
      %v443 = vpop.permute.xlu0 %442
      %444 = vrot.lane.b32.xlu0 %v361, 93
      %v445 = vpop.permute.xlu0 %444
      %446 = vrot.lane.b32.xlu0 %v354, 93
      %v447 = vpop.permute.xlu0 %446
      %vm448 = vcmask 760832
      %v449 = vsel %vm448, %v443, %v445
      %v450 = vsel %vm448, %v445, %v447
      %v453 = vsel %vm384, %v449, 0.0
      %v454 = vsel %vm385, %v450, 0.0
      %455 = vrot.lane.b32.xlu0 %v353, 92
      %v456 = vpop.permute.xlu0 %455
      %457 = vrot.lane.b32.xlu0 %v361, 92
      %v458 = vpop.permute.xlu0 %457
      %459 = vrot.lane.b32.xlu0 %v354, 92
      %v460 = vpop.permute.xlu0 %459
      %vm461 = vcmask 752640
      %v462 = vsel %vm461, %v456, %v458
      %v463 = vsel %vm461, %v458, %v460
      %v466 = vsel %vm401, %v462, 0.0
      %v467 = vsel %vm402, %v463, 0.0
      %468 = vrot.lane.b32.xlu0 %v353, 79
      %v469 = vpop.permute.xlu0 %468
      %470 = vrot.lane.b32.xlu0 %v361, 79
      %v471 = vpop.permute.xlu0 %470
      %472 = vrot.lane.b32.xlu0 %v354, 79
      %v473 = vpop.permute.xlu0 %472
      %vm474 = vcmask 646144
      %v475 = vsel %vm474, %v469, %v471
      %v476 = vsel %vm474, %v471, %v473
      %v479 = vsel %vm357, %v475, 0.0
      %v480 = vsel %vm358, %v476, 0.0
      %481 = vrot.lane.b32.xlu0 %v353, 64
      %v482 = vpop.permute.xlu0 %481
      %483 = vrot.lane.b32.xlu0 %v361, 64
      %v484 = vpop.permute.xlu0 %483
      %485 = vrot.lane.b32.xlu0 %v354, 64
      %v486 = vpop.permute.xlu0 %485
      %vm487 = vcmask 523264
      %v488 = vsel %vm487, %v482, %v484
      %v489 = vsel %vm487, %v484, %v486
      %v492 = vsel %vm377, %v488, 0.0
      %v493 = vsel %vm378, %v489, 0.0
      %494 = vrot.lane.b32.xlu0 %v353, 77
      %v495 = vpop.permute.xlu0 %494
      %496 = vrot.lane.b32.xlu0 %v361, 77
      %v497 = vpop.permute.xlu0 %496
      %498 = vrot.lane.b32.xlu0 %v354, 77
      %v499 = vpop.permute.xlu0 %498
      %vm500 = vcmask 629760
      %v501 = vsel %vm500, %v495, %v497
      %v502 = vsel %vm500, %v497, %v499
      %v505 = vsel %vm384, %v501, 0.0
      %v506 = vsel %vm385, %v502, 0.0
      %507 = vrot.lane.b32.xlu0 %v353, 60
      %v508 = vpop.permute.xlu0 %507
      %509 = vrot.lane.b32.xlu0 %v361, 60
      %v510 = vpop.permute.xlu0 %509
      %511 = vrot.lane.b32.xlu0 %v354, 60
      %v512 = vpop.permute.xlu0 %511
      %vm513 = vcmask 490496
      %v514 = vsel %vm513, %v508, %v510
      %v515 = vsel %vm513, %v510, %v512
      %v518 = vsel %vm401, %v514, 0.0
      %v519 = vsel %vm402, %v515, 0.0
      %v520 = vcombine.low %v353, %v353
      %v521 = vcombine.low %v354, %v354
      %522 = vrot.lane.b32.xlu0 %v520, 110
      %v523 = vpop.permute.xlu0 %522
      %524 = vrot.lane.b32.xlu0 %v353, 110
      %v525 = vpop.permute.xlu0 %524
      %526 = vrot.lane.b32.xlu0 %v521, 110
      %v527 = vpop.permute.xlu0 %526
      %vm528 = vcmask 900096
      %v529 = vsel %vm528, %v523, %v525
      %v530 = vsel %vm528, %v525, %v527
      %v535 = vrot.slane %v427, 4
      %v536 = vrot.slane %v428, 4
      %v542 = vrot.slane %v453, 4
      %v543 = vrot.slane %v454, 4
      %546 = vrot.lane.b32.xlu0 %v520, 78
      %v547 = vpop.permute.xlu0 %546
      %548 = vrot.lane.b32.xlu0 %v353, 78
      %v549 = vpop.permute.xlu0 %548
      %550 = vrot.lane.b32.xlu0 %v521, 78
      %v551 = vpop.permute.xlu0 %550
      %vm552 = vcmask 637952
      %v553 = vsel %vm552, %v547, %v549
      %v554 = vsel %vm552, %v549, %v551
      %v557 = vsel %vm277, %v373, %v529
      %v558 = vsel %vm277, %v374, %v530
      %v559 = vsel %vm277, %v397, %v535
      %v560 = vsel %vm277, %v398, %v536
      %v561 = vsel %vm277, %v189, %v542
      %v562 = vsel %vm277, %v272, %v543
      %v563 = vsel %vm277, %v479, %v553
      %v564 = vsel %vm277, %v480, %v554
      %vm565 = vcmask 293888
      %v567 = vsel %vm565, %v270, 0
      %v570 = vsel %vm277, %v505, 0
      %v573 = vsel %vm277, %v506, 0
      %575 = vmatprep.subr.mxu0 0.0
      %576 = vmatpush1.msra.mxu0 0.0
      %577 = vmatprep.subr.mxu0 0.0
      %578 = vmatpush1.msra.mxu0 0.0
      %579 = vmatprep.subr.mxu0 0.0
      %580 = vmatpush1.msra.mxu0 0.0
      %581 = vmatprep.subr.mxu0 0.0
      %582 = vmatpush1.msra.mxu0 0.0
      %583 = vmatprep.subr.mxu0 0.0
      %584 = vmatpush1.msra.mxu0 0.0
      %585 = vmatprep.subr.mxu0 0.0
      %586 = vmatpush1.msra.mxu0 0.0
      %587 = vmatprep.subr.mxu0 0.0
      %588 = vmatpush1.msra.mxu0 0.0
      %589 = vmatprep.subr.mxu0 0.0
      %590 = vmatpush1.msra.mxu0 0.0
      %591 = vmatprep.subr.mxu0 0.0
      %592 = vmatpush1.msra.mxu0 0.0
      %593 = vmatprep.subr.mxu0 0.0
      %594 = vmatpush1.msra.mxu0 0.0
      %595 = vmatprep.subr.mxu0 0.0
      %596 = vmatpush1.msra.mxu0 0.0
      %597 = vmatprep.subr.mxu0 %v573
      %598 = vmatpush1.msra.mxu0 %v570
      %599 = vmatprep.subr.mxu0 %v564
      %600 = vmatpush1.msra.mxu0 %v563
      %601 = vmatprep.subr.mxu0 %v562
      %602 = vmatpush1.msra.mxu0 %v561
      %603 = vmatprep.subr.mxu0 %v560
      %604 = vmatpush1.msra.mxu0 %v559
      %605 = vmatprep.subr.mxu0 %v558
      %606 = vmatpush1.msra.mxu0 %v557
      %607 = vmatprep.subr.mxu0 0.0
      %608 = vmatpush2.msra.mxu0 0.0
      %609 = vmatprep.subr.mxu0 0.0
      %610 = vmatpush2.msra.mxu0 0.0
      %611 = vmatprep.subr.mxu0 0.0
      %612 = vmatpush2.msra.mxu0 0.0
      %613 = vmatprep.subr.mxu0 0.0
      %614 = vmatpush2.msra.mxu0 0.0
      %615 = vmatprep.subr.mxu0 0.0
      %616 = vmatpush2.msra.mxu0 0.0
      %617 = vmatprep.subr.mxu0 0.0
      %618 = vmatpush2.msra.mxu0 0.0
      %619 = vmatprep.subr.mxu0 0.0
      %620 = vmatpush2.msra.mxu0 0.0
      %621 = vmatprep.subr.mxu0 0.0
      %622 = vmatpush2.msra.mxu0 0.0
      %623 = vmatprep.subr.mxu0 0.0
      %624 = vmatpush2.msra.mxu0 0.0
      %625 = vmatprep.subr.mxu0 0.0
      %626 = vmatpush2.msra.mxu0 0.0
      %627 = vmatprep.subr.mxu0 0.0
      %628 = vmatpush2.msra.mxu0 0.0
      %629 = vmatprep.subr.mxu0 0.0
      %630 = vmatpush2.msra.mxu0 0.0
      %631 = vmatprep.subr.mxu0 0.0
      %632 = vmatpush2.msra.mxu0 0.0
      %633 = vmatprep.subr.mxu0 0.0
      %634 = vmatpush2.msra.mxu0 0.0
      %635 = vmatprep.subr.mxu0 0.0
      %636 = vmatpush2.msra.mxu0 0.0
      %637 = vmatprep.subr.mxu0 0.0
      %638 = vmatpush2.msra.mxu0 0.0
      %639 = vmatprep.mubr.f32.mxu0 0.0
      %640 = vmatmul.mubr.f32.gmra.mxu0 %v567
      %v641 = vpop.f32.mrf.mxu0
      %v642 = vadd.f32 0.0, %v641
      %v643 = vpop.f32.mrf.mxu0
      %v644 = vadd.f32 0.0, %v643
      %645 = vdwg.mxu0
      %646 = vrot.lane.b32.xlu0 %v520, 126
      %v647 = vpop.permute.xlu0 %646
      %648 = vrot.lane.b32.xlu0 %v353, 126
      %v649 = vpop.permute.xlu0 %648
      %650 = vrot.lane.b32.xlu0 %v521, 126
      %v651 = vpop.permute.xlu0 %650
      %vm652 = vcmask 1031168
      %v653 = vsel %vm652, %v647, %v649
      %v654 = vsel %vm652, %v649, %v651
      %v659 = vrot.slane %v440, 4
      %v660 = vrot.slane %v441, 4
      %v665 = vrot.slane %v466, 4
      %v666 = vrot.slane %v467, 4
      %669 = vrot.lane.b32.xlu0 %v520, 62
      %v670 = vpop.permute.xlu0 %669
      %671 = vrot.lane.b32.xlu0 %v353, 62
      %v672 = vpop.permute.xlu0 %671
      %673 = vrot.lane.b32.xlu0 %v521, 62
      %v674 = vpop.permute.xlu0 %673
      %vm675 = vcmask 506880
      %v676 = vsel %vm675, %v670, %v672
      %v677 = vsel %vm675, %v672, %v674
      %v680 = vsel %vm277, %v380, %v653
      %v681 = vsel %vm277, %v381, %v654
      %v682 = vsel %vm277, %v414, %v659
      %v683 = vsel %vm277, %v415, %v660
      %v684 = vsel %vm277, %v189, %v665
      %v685 = vsel %vm277, %v272, %v666
      %v686 = vsel %vm277, %v492, %v676
      %v687 = vsel %vm277, %v493, %v677
      %v689 = vsel %vm565, %v271, 0
      %v692 = vsel %vm277, %v518, 0
      %v695 = vsel %vm277, %v519, 0
      %697 = vmatprep.subr.mxu0 0.0
      %698 = vmatpush1.msra.mxu0 0.0
      %699 = vmatprep.subr.mxu0 0.0
      %700 = vmatpush1.msra.mxu0 0.0
      %701 = vmatprep.subr.mxu0 0.0
      %702 = vmatpush1.msra.mxu0 0.0
      %703 = vmatprep.subr.mxu0 0.0
      %704 = vmatpush1.msra.mxu0 0.0
      %705 = vmatprep.subr.mxu0 0.0
      %706 = vmatpush1.msra.mxu0 0.0
      %707 = vmatprep.subr.mxu0 0.0
      %708 = vmatpush1.msra.mxu0 0.0
      %709 = vmatprep.subr.mxu0 0.0
      %710 = vmatpush1.msra.mxu0 0.0
      %711 = vmatprep.subr.mxu0 0.0
      %712 = vmatpush1.msra.mxu0 0.0
      %713 = vmatprep.subr.mxu0 0.0
      %714 = vmatpush1.msra.mxu0 0.0
      %715 = vmatprep.subr.mxu0 0.0
      %716 = vmatpush1.msra.mxu0 0.0
      %717 = vmatprep.subr.mxu0 0.0
      %718 = vmatpush1.msra.mxu0 0.0
      %719 = vmatprep.subr.mxu0 %v695
      %720 = vmatpush1.msra.mxu0 %v692
      %721 = vmatprep.subr.mxu0 %v687
      %722 = vmatpush1.msra.mxu0 %v686
      %723 = vmatprep.subr.mxu0 %v685
      %724 = vmatpush1.msra.mxu0 %v684
      %725 = vmatprep.subr.mxu0 %v683
      %726 = vmatpush1.msra.mxu0 %v682
      %727 = vmatprep.subr.mxu0 %v681
      %728 = vmatpush1.msra.mxu0 %v680
      %729 = vmatprep.subr.mxu0 0.0
      %730 = vmatpush2.msra.mxu0 0.0
      %731 = vmatprep.subr.mxu0 0.0
      %732 = vmatpush2.msra.mxu0 0.0
      %733 = vmatprep.subr.mxu0 0.0
      %734 = vmatpush2.msra.mxu0 0.0
      %735 = vmatprep.subr.mxu0 0.0
      %736 = vmatpush2.msra.mxu0 0.0
      %737 = vmatprep.subr.mxu0 0.0
      %738 = vmatpush2.msra.mxu0 0.0
      %739 = vmatprep.subr.mxu0 0.0
      %740 = vmatpush2.msra.mxu0 0.0
      %741 = vmatprep.subr.mxu0 0.0
      %742 = vmatpush2.msra.mxu0 0.0
      %743 = vmatprep.subr.mxu0 0.0
      %744 = vmatpush2.msra.mxu0 0.0
      %745 = vmatprep.subr.mxu0 0.0
      %746 = vmatpush2.msra.mxu0 0.0
      %747 = vmatprep.subr.mxu0 0.0
      %748 = vmatpush2.msra.mxu0 0.0
      %749 = vmatprep.subr.mxu0 0.0
      %750 = vmatpush2.msra.mxu0 0.0
      %751 = vmatprep.subr.mxu0 0.0
      %752 = vmatpush2.msra.mxu0 0.0
      %753 = vmatprep.subr.mxu0 0.0
      %754 = vmatpush2.msra.mxu0 0.0
      %755 = vmatprep.subr.mxu0 0.0
      %756 = vmatpush2.msra.mxu0 0.0
      %757 = vmatprep.subr.mxu0 0.0
      %758 = vmatpush2.msra.mxu0 0.0
      %759 = vmatprep.subr.mxu0 0.0
      %760 = vmatpush2.msra.mxu0 0.0
      %761 = vmatprep.mubr.f32.mxu0 0.0
      %762 = vmatmul.mubr.f32.gmra.mxu0 %v689
      %v763 = vpop.f32.mrf.mxu0
      %v764 = vadd.f32 0.0, %v763
      %v765 = vpop.f32.mrf.mxu0
      %v766 = vadd.f32 0.0, %v765
      %767 = vdwg.mxu0
      %v768 = vld [vmem:[%s4] sm:$0xf]
      %v769 = vsel %vm277, %v349, 0.0
      %v770 = vsel %vm277, %v351, 0.0
      %v771 = vadd.f32 %v769, %v770
      %772 = vadd.xlane.f32.xlu0 %v771
      %v773 = vpop.xlane.xlu0 %772
      %v774 = vsel %vm277, %v642, 0.0
      %v775 = vsel %vm277, %v644, 0.0
      %v776 = vadd.f32 %v774, %v775
      %777 = vadd.xlane.f32.xlu0 %v776
      %v778 = vpop.xlane.xlu0 %777
      %v779 = vsel %vm277, %v764, 0.0
      %v780 = vsel %vm277, %v766, 0.0
      %v781 = vadd.f32 %v779, %v780
      %782 = vadd.xlane.f32.xlu0 %v781
      %v783 = vpop.xlane.xlu0 %782
      %v784 = vmul.f32 %v349, %v349
      %v785 = vmul.f32 %v351, %v351
      %v786 = vsel %vm277, %v784, 0.0
      %v787 = vsel %vm277, %v785, 0.0
      %v788 = vadd.f32 %v786, %v787
      %789 = vadd.xlane.f32.xlu0 %v788
      %v790 = vpop.xlane.xlu0 %789
      %v791 = vmul.f32 %v642, %v642
      %v792 = vmul.f32 %v644, %v644
      %v793 = vsel %vm277, %v791, 0.0
      %v794 = vsel %vm277, %v792, 0.0
      %v795 = vadd.f32 %v793, %v794
      %796 = vadd.xlane.f32.xlu0 %v795
      %v797 = vpop.xlane.xlu0 %796
      %v798 = vmul.f32 %v764, %v764
      %v799 = vmul.f32 %v766, %v766
      %v800 = vsel %vm277, %v798, 0.0
      %v801 = vsel %vm277, %v799, 0.0
      %v802 = vadd.f32 %v800, %v801
      %803 = vadd.xlane.f32.xlu0 %v802
      %v804 = vpop.xlane.xlu0 %803
      %vm805 = vcmask 7168
      %v806 = vsel %vm805, %v773, %v778
      %vm807 = vcmask 15360
      %v808 = vsel %vm807, %v806, %v783
      %vm809 = vcmask 23552
      %v810 = vsel %vm809, %v808, %v790
      %v811 = vsel %vm273, %v810, %v797
      %vm812 = vcmask 39936
      %v813 = vsel %vm812, %v811, %v804
      %v814 = vadd.f32 %v768, %v813
      %vm815 = vcmask 44032
      %816 = vst.msk [vmem:[%s4] sm:$0xf] %vm815, %v814
      // Predicated region
      $region45: #{multi_scale_attention_gate.3} parent=35 // pred_check
        %p817 = pneg %p117
      $region46: #{multi_scale_attention_gate.3} parent=35 // pred_check_branch
        %819 = sbr.rel (%p817) target = $region48
      $region47: #{multi_scale_attention_gate.3} parent=35 // pred_region
        _
      $region48: #{multi_scale_attention_gate.3} parent=35 // pred_fallthru
        _
      // Predicated region
      $region49: #{multi_scale_attention_gate.3} parent=35 // pred_check
        %p820 = pneg %p117
      $region50: #{multi_scale_attention_gate.3} parent=35 // pred_check_branch
        %822 = sbr.rel (%p820) target = $region52
      $region51: #{multi_scale_attention_gate.3} parent=35 // pred_region
        _
      $region52: #{multi_scale_attention_gate.3} parent=35 // pred_fallthru
        _
    $region36: #{multi_scale_attention_gate.3} parent=5 // pred_fallthru
      _
    %p823 = scmp.le.s32.totalorder 2, %s10
    // Predicated region
    $region53: #{multi_scale_attention_gate.3} parent=5 // pred_check
      %p824 = pneg %p823
    $region54: #{multi_scale_attention_gate.3} parent=5 // pred_check_branch
      %826 = sbr.rel (%p824) target = $region56
    $region55: #{multi_scale_attention_gate.3} parent=5 // pred_region
      %s827 = ssub.s32 %s10, 2
    $region56: #{multi_scale_attention_gate.3} parent=5 // pred_fallthru
      _
  $region6: #{multi_scale_attention_gate.3} parent=0 // loop_footer
    %s14 = sadd.s32 1, %s10
  $region7: #{multi_scale_attention_gate.3} parent=0 // loop_footer_branch
    %9 = sbr.rel target = $region3
  $region8: #{multi_scale_attention_gate.3} parent=0 // loop_exit
    _

// kernel: multi_scale_attention_gate.4
$region0: #{multi_scale_attention_gate.4}
  #allocation0 [shape = 'u32[]', space=smem, size = 0x4, offset = 0x4, fixed_abs, tag = 'smem constant byte address 0x4 - core index']
  #allocation1 [shape = 'u32[144,128]{1,0:T(1,128)}', space=vmem, size = 0x12000, scoped, tag = 'internal scratch']
  #allocation2 [shape = 'f32[4,324]{1,0:T(4,128)}', space=vmem, size = 0x1800, scoped, tag = 'scratch operand']
  %s0 = inlined_call_operand.vmem [shape: f32[2,4,256], index: 0, kind: input, shape index: {}]
  %s1 = inlined_call_operand.vmem [shape: f32[4,4], index: 1, kind: input, shape index: {}]
  %s2 = inlined_call_operand.vmem [shape: f32[4,36], index: 2, kind: input, shape index: {}]
  %s3 = inlined_call_operand.vmem [shape: f32[4,36], index: 3, kind: input, shape index: {}]
  %s4 = inlined_call_operand.vmem [shape: f32[4,12], index: 4, kind: input, shape index: {}]
  %s5 = inlined_call_operand.vmem [shape: f32[4,6], index: 5, kind: input, shape index: {}]
  %s6 = inlined_call_operand.vmem [shape: f32[2,4,256], index: 6, kind: output, shape index: {0}]
  %s7 = inlined_call_operand.vmem [shape: f32[4,2], index: 7, kind: output, shape index: {1}]
  %8 = xla_tuple %s6, %s7
  %s9 = sld [smem:[#allocation0]]
  $region73: #{multi_scale_attention_gate.4} parent=0
    _
  %s11 = ssub.s32 1, %s9
  %s12 = scalar_select 0, %s11, %s9
  loop: start=0, step=1, limit=4
  $region2: #{multi_scale_attention_gate.4} parent=0 // loop_pre_header
    _
  $region3: #{multi_scale_attention_gate.4} parent=0 // loop_header
    %s14 = sphi 0, %s18
    %p15 = scmp.ge.s32.totalorder %s14, 4
    %s24 = sphi 0, %s26
    %s27 = sphi 0, %s24
    %s28 = sphi 0, %s27
    %s44 = sphi 0, %s28
    %s48 = sphi 0, %s48
    %s50 = sphi 0, %s48
    %s51 = sphi 0, %s50
    %s65 = sphi 0, %s51
    %s69 = sphi 0, %s69
    %s71 = sphi 0, %s69
    %s72 = sphi 0, %s71
    %s86 = sphi 0, %s72
    %s90 = sphi 0, %s90
    %s92 = sphi 0, %s90
    %s93 = sphi 0, %s92
    %s107 = sphi 0, %s93
    %s111 = sphi 0, %s111
    %s113 = sphi 0, %s111
    %s114 = sphi 0, %s113
    %s128 = sphi 0, %s114
    %s132 = sphi 0, %s132
    %s134 = sphi 0, %s132
    %s135 = sphi 0, %s134
    %s149 = sphi 0, %s135
    %s155 = sphi 0, %s157
    %s158 = sphi 0, %s155
    %s159 = sphi 0, %s158
    %s175 = sphi 0, %s159
    %s179 = sphi 0, %s179
    %s181 = sphi 0, %s179
    %s182 = sphi 0, %s181
    %s196 = sphi 0, %s182
  $region4: #{multi_scale_attention_gate.4} parent=0 // loop_header_branch
    %17 = sbr.rel (%p15) target = $region8
  $region5: #{multi_scale_attention_gate.4} parent=0 // loop_body
    %s19 = ssub.s32 %s14, 1
    %s20 = ssub.s32 %s14, 2
    %s21 = sadd.s32 %s14, 1
    %s22 = ssub.s32 %s14, %s21
    %p23 = scmp.eq.s32.totalorder %s22, 0
    %s25 = sadd.s32 %s24, 1
    %s26 = scalar_select %p23, %s24, %s25
    %p29 = pneg %p23
    %p30 = scmp.eq.s32.totalorder %s14, 1
    %p31 = por %p29, %p30
    %p32 = scmp.ne.s32.totalorder %s24, %s27
    %p33 = scmp.eq.s32.totalorder %s14, 0
    %p34 = por %p32, %p33
    %p35 = scmp.ne.s32.totalorder %s24, %s27
    %p36 = scmp.eq.s32.totalorder %s19, 1
    %p37 = por %p35, %p36
    %p38 = scmp.ne.s32.totalorder %s27, %s28
    %p39 = scmp.eq.s32.totalorder %s19, 0
    %p40 = por %p38, %p39
    %p41 = scmp.ne.s32.totalorder %s27, %s28
    %p42 = scmp.eq.s32.totalorder %s20, 1
    %p43 = por %p41, %p42
    %p45 = scmp.ne.s32.totalorder %s28, %s44
    %p46 = scmp.eq.s32.totalorder %s20, 0
    %p47 = por %p45, %p46
    %s49 = sadd.s32 %s48, 1
    %p52 = scmp.eq.s32.totalorder %s14, 1
    %p53 = scmp.ne.s32.totalorder %s48, %s50
    %p54 = scmp.eq.s32.totalorder %s14, 0
    %p55 = por %p53, %p54
    %p56 = scmp.ne.s32.totalorder %s48, %s50
    %p57 = scmp.eq.s32.totalorder %s19, 1
    %p58 = por %p56, %p57
    %p59 = scmp.ne.s32.totalorder %s50, %s51
    %p60 = scmp.eq.s32.totalorder %s19, 0
    %p61 = por %p59, %p60
    %p62 = scmp.ne.s32.totalorder %s50, %s51
    %p63 = scmp.eq.s32.totalorder %s20, 1
    %p64 = por %p62, %p63
    %p66 = scmp.ne.s32.totalorder %s51, %s65
    %p67 = scmp.eq.s32.totalorder %s20, 0
    %p68 = por %p66, %p67
    %s70 = sadd.s32 %s69, 1
    %p73 = scmp.eq.s32.totalorder %s14, 1
    %p74 = scmp.ne.s32.totalorder %s69, %s71
    %p75 = scmp.eq.s32.totalorder %s14, 0
    %p76 = por %p74, %p75
    %p77 = scmp.ne.s32.totalorder %s69, %s71
    %p78 = scmp.eq.s32.totalorder %s19, 1
    %p79 = por %p77, %p78
    %p80 = scmp.ne.s32.totalorder %s71, %s72
    %p81 = scmp.eq.s32.totalorder %s19, 0
    %p82 = por %p80, %p81
    %p83 = scmp.ne.s32.totalorder %s71, %s72
    %p84 = scmp.eq.s32.totalorder %s20, 1
    %p85 = por %p83, %p84
    %p87 = scmp.ne.s32.totalorder %s72, %s86
    %p88 = scmp.eq.s32.totalorder %s20, 0
    %p89 = por %p87, %p88
    %s91 = sadd.s32 %s90, 1
    %p94 = scmp.eq.s32.totalorder %s14, 1
    %p95 = scmp.ne.s32.totalorder %s90, %s92
    %p96 = scmp.eq.s32.totalorder %s14, 0
    %p97 = por %p95, %p96
    %p98 = scmp.ne.s32.totalorder %s90, %s92
    %p99 = scmp.eq.s32.totalorder %s19, 1
    %p100 = por %p98, %p99
    %p101 = scmp.ne.s32.totalorder %s92, %s93
    %p102 = scmp.eq.s32.totalorder %s19, 0
    %p103 = por %p101, %p102
    %p104 = scmp.ne.s32.totalorder %s92, %s93
    %p105 = scmp.eq.s32.totalorder %s20, 1
    %p106 = por %p104, %p105
    %p108 = scmp.ne.s32.totalorder %s93, %s107
    %p109 = scmp.eq.s32.totalorder %s20, 0
    %p110 = por %p108, %p109
    %s112 = sadd.s32 %s111, 1
    %p115 = scmp.eq.s32.totalorder %s14, 1
    %p116 = scmp.ne.s32.totalorder %s111, %s113
    %p117 = scmp.eq.s32.totalorder %s14, 0
    %p118 = por %p116, %p117
    %p119 = scmp.ne.s32.totalorder %s111, %s113
    %p120 = scmp.eq.s32.totalorder %s19, 1
    %p121 = por %p119, %p120
    %p122 = scmp.ne.s32.totalorder %s113, %s114
    %p123 = scmp.eq.s32.totalorder %s19, 0
    %p124 = por %p122, %p123
    %p125 = scmp.ne.s32.totalorder %s113, %s114
    %p126 = scmp.eq.s32.totalorder %s20, 1
    %p127 = por %p125, %p126
    %p129 = scmp.ne.s32.totalorder %s114, %s128
    %p130 = scmp.eq.s32.totalorder %s20, 0
    %p131 = por %p129, %p130
    %s133 = sadd.s32 %s132, 1
    %p136 = scmp.eq.s32.totalorder %s14, 1
    %p137 = scmp.ne.s32.totalorder %s132, %s134
    %p138 = scmp.eq.s32.totalorder %s14, 0
    %p139 = por %p137, %p138
    %p140 = scmp.ne.s32.totalorder %s132, %s134
    %p141 = scmp.eq.s32.totalorder %s19, 1
    %p142 = por %p140, %p141
    %p143 = scmp.ne.s32.totalorder %s134, %s135
    %p144 = scmp.eq.s32.totalorder %s19, 0
    %p145 = por %p143, %p144
    %p146 = scmp.ne.s32.totalorder %s134, %s135
    %p147 = scmp.eq.s32.totalorder %s20, 1
    %p148 = por %p146, %p147
    %p150 = scmp.ne.s32.totalorder %s135, %s149
    %p151 = scmp.eq.s32.totalorder %s20, 0
    %p152 = por %p150, %p151
    %s153 = ssub.s32 %s14, %s21
    %p154 = scmp.eq.s32.totalorder %s153, 0
    %s156 = sadd.s32 %s155, 1
    %s157 = scalar_select %p154, %s155, %s156
    %p160 = pneg %p154
    %p161 = scmp.eq.s32.totalorder %s14, 1
    %p162 = por %p160, %p161
    %p163 = scmp.ne.s32.totalorder %s155, %s158
    %p164 = scmp.eq.s32.totalorder %s14, 0
    %p165 = por %p163, %p164
    %p166 = scmp.ne.s32.totalorder %s155, %s158
    %p167 = scmp.eq.s32.totalorder %s19, 1
    %p168 = por %p166, %p167
    %p169 = scmp.ne.s32.totalorder %s158, %s159
    %p170 = scmp.eq.s32.totalorder %s19, 0
    %p171 = por %p169, %p170
    %p172 = scmp.ne.s32.totalorder %s158, %s159
    %p173 = scmp.eq.s32.totalorder %s20, 1
    %p174 = por %p172, %p173
    %p176 = scmp.ne.s32.totalorder %s159, %s175
    %p177 = scmp.eq.s32.totalorder %s20, 0
    %p178 = por %p176, %p177
    %s180 = sadd.s32 %s179, 1
    %p183 = scmp.eq.s32.totalorder %s14, 1
    %p184 = scmp.ne.s32.totalorder %s179, %s181
    %p185 = scmp.eq.s32.totalorder %s14, 0
    %p186 = por %p184, %p185
    %p187 = scmp.ne.s32.totalorder %s179, %s181
    %p188 = scmp.eq.s32.totalorder %s19, 1
    %p189 = por %p187, %p188
    %p190 = scmp.ne.s32.totalorder %s181, %s182
    %p191 = scmp.eq.s32.totalorder %s19, 0
    %p192 = por %p190, %p191
    %p193 = scmp.ne.s32.totalorder %s181, %s182
    %p194 = scmp.eq.s32.totalorder %s20, 1
    %p195 = por %p193, %p194
    %p197 = scmp.ne.s32.totalorder %s182, %s196
    %p198 = scmp.eq.s32.totalorder %s20, 0
    %p199 = por %p197, %p198
    %p200 = scmp.le.s32.totalorder 1, %s14
    %p201 = scmp.lt.s32.totalorder %s14, 3
    %p202 = pnand %p200, %p201
    %p203 = pneg %p202
    // Predicated region
    $region9: #{multi_scale_attention_gate.4} parent=5 // pred_check
      _
    $region10: #{multi_scale_attention_gate.4} parent=5 // pred_check_branch
      %205 = sbr.rel (%p202) target = $region12
    $region11: #{multi_scale_attention_gate.4} parent=5 // pred_region
      %s206 = ssub.s32 %s14, 1
      // Predicated region
      $region13: #{multi_scale_attention_gate.4} parent=11 // pred_check
        %p207 = pneg %p61
      $region14: #{multi_scale_attention_gate.4} parent=11 // pred_check_branch
        %209 = sbr.rel (%p207) target = $region16
      $region15: #{multi_scale_attention_gate.4} parent=11 // pred_region
        _
      $region16: #{multi_scale_attention_gate.4} parent=11 // pred_fallthru
        _
      // Predicated region
      $region17: #{multi_scale_attention_gate.4} parent=11 // pred_check
        %p210 = pneg %p82
      $region18: #{multi_scale_attention_gate.4} parent=11 // pred_check_branch
        %212 = sbr.rel (%p210) target = $region20
      $region19: #{multi_scale_attention_gate.4} parent=11 // pred_region
        _
      $region20: #{multi_scale_attention_gate.4} parent=11 // pred_fallthru
        _
      // Predicated region
      $region21: #{multi_scale_attention_gate.4} parent=11 // pred_check
        %p213 = pneg %p103
      $region22: #{multi_scale_attention_gate.4} parent=11 // pred_check_branch
        %215 = sbr.rel (%p213) target = $region24
      $region23: #{multi_scale_attention_gate.4} parent=11 // pred_region
        _
      $region24: #{multi_scale_attention_gate.4} parent=11 // pred_fallthru
        _
      // Predicated region
      $region25: #{multi_scale_attention_gate.4} parent=11 // pred_check
        %p216 = pneg %p124
      $region26: #{multi_scale_attention_gate.4} parent=11 // pred_check_branch
        %218 = sbr.rel (%p216) target = $region28
      $region27: #{multi_scale_attention_gate.4} parent=11 // pred_region
        _
      $region28: #{multi_scale_attention_gate.4} parent=11 // pred_fallthru
        _
      // Predicated region
      $region29: #{multi_scale_attention_gate.4} parent=11 // pred_check
        %p219 = pneg %p145
      $region30: #{multi_scale_attention_gate.4} parent=11 // pred_check_branch
        %221 = sbr.rel (%p219) target = $region32
      $region31: #{multi_scale_attention_gate.4} parent=11 // pred_region
        _
      $region32: #{multi_scale_attention_gate.4} parent=11 // pred_fallthru
        _
    $region12: #{multi_scale_attention_gate.4} parent=5 // pred_fallthru
      _
    %p222 = scmp.lt.s32.totalorder %s14, 2
    // Predicated region
    $region33: #{multi_scale_attention_gate.4} parent=5 // pred_check
      %p223 = pneg %p222
    $region34: #{multi_scale_attention_gate.4} parent=5 // pred_check_branch
      %225 = sbr.rel (%p223) target = $region36
    $region35: #{multi_scale_attention_gate.4} parent=5 // pred_region
      // Predicated region
      $region37: #{multi_scale_attention_gate.4} parent=35 // pred_check
        %p226 = pneg %p34
      $region38: #{multi_scale_attention_gate.4} parent=35 // pred_check_branch
        %228 = sbr.rel (%p226) target = $region40
      $region39: #{multi_scale_attention_gate.4} parent=35 // pred_region
        %p229 = scmp.lt.s32.totalorder %s14, 1
        %s230 = scalar_select %p229, %s14, 1
        %s231 = smul.addr %s230, 2
        %s232 = smul.addr %s231, 4
        %s233 = scalar_lea.vmem %s0, %s232
      $region40: #{multi_scale_attention_gate.4} parent=35 // pred_fallthru
        _
    $region36: #{multi_scale_attention_gate.4} parent=5 // pred_fallthru
      _
    %p234 = scmp.le.s32.totalorder 1, %s14
    %p235 = scmp.lt.s32.totalorder %s14, 3
    %p236 = pnand %p234, %p235
    %p237 = pneg %p236
    // Predicated region
    $region41: #{multi_scale_attention_gate.4} parent=5 // pred_check
      _
    $region42: #{multi_scale_attention_gate.4} parent=5 // pred_check_branch
      %239 = sbr.rel (%p236) target = $region44
    $region43: #{multi_scale_attention_gate.4} parent=5 // pred_region
      %s240 = ssub.s32 %s14, 1
      %p241 = scmp.lt.s32.totalorder %s19, 1
      %s242 = scalar_select %p241, %s19, 1
      %s243 = smul.addr %s242, 2
      %s244 = smul.addr %s243, 4
      %s245 = scalar_lea.vmem %s0, %s244
      %p246 = pneg %p40
      %p247 = pneg %p37
      %p248 = pneg %p61
      %p249 = pneg %p58
      %p250 = pneg %p82
      %p251 = pneg %p79
      %p252 = pneg %p103
      %p253 = pneg %p100
      %p254 = pneg %p124
      %p255 = pneg %p121
      %p256 = pneg %p145
      %p257 = pneg %p142
      %p258 = pneg %p171
      %p259 = pneg %p168
      %p260 = scmp.lt.s32.totalorder %s19, 1
      %s261 = scalar_select %p260, %s19, 1
      %s262 = smul.addr %s261, 2
      %s263 = smul.addr %s262, 4
      %s264 = scalar_lea.vmem %s6, %s263
      %p265 = pneg %p192
      %p266 = pneg %p189
      %p267 = scmp.lt.s32.totalorder %s19, 1
      %s268 = scalar_select %p267, %s19, 1
      %s269 = smul.addr %s268, 2
      %s270 = smul.addr %s269, 4
      %s271 = scalar_lea.vmem %s0, %s270
      %p272 = scmp.lt.s32.totalorder %s19, 1
      %s273 = scalar_select %p272, %s19, 1
      %s274 = smul.addr %s273, 2
      %s275 = smul.addr %s274, 4
      %s276 = scalar_lea.vmem %s6, %s275
      %p277 = scmp.eq.s32.totalorder %s19, 0
      // Predicated region
      $region45: #{multi_scale_attention_gate.4} parent=43 // pred_check
        %p278 = pneg %p277
      $region46: #{multi_scale_attention_gate.4} parent=43 // pred_check_branch
        %280 = sbr.rel (%p278) target = $region48
      $region47: #{multi_scale_attention_gate.4} parent=43 // pred_region
        %vm281 = vcmask 11264
        %282 = vst.msk [vmem:[%s7] sm:$0xf] %vm281, 0.0
      $region48: #{multi_scale_attention_gate.4} parent=43 // pred_fallthru
        _
      %v283 = vld [vmem:[%s271] sm:$0xff]
      // Predicated region
      $region49: #{multi_scale_attention_gate.4} parent=43 // pred_check
        %p284 = pneg %p277
      $region50: #{multi_scale_attention_gate.4} parent=43 // pred_check_branch
        %286 = sbr.rel (%p284) target = $region52
      $region51: #{multi_scale_attention_gate.4} parent=43 // pred_region
        %287 = vst [vmem:[#allocation2] sm:$0xff] 0.0
        %vm288 = vcmask 551936
        %289 = vst.msk [vmem:[#allocation2 + $0x8] sm:$0xf] %vm288, 0.0
      $region52: #{multi_scale_attention_gate.4} parent=43 // pred_fallthru
        _
      %291 = vrot.lane.b32.xlu0 %v283, 34
      %v292 = vpop.permute.xlu0 %291
      %v293 = vrot.slane %v292, 4
      %vm294 = vcmask 277504
      %v295 = vsel %vm294, %v293, %v292
      %vm298 = vcmask 1043728
      %vm299 = vcmask 1047556
      %vm300 = vmor %vm299, %vm298
      %301 = vst.msk [vmem:[#allocation2] sm:$0xff] %vm300, %v295
      %vm302 = vcmask 273408
      %303 = vst.msk [vmem:[#allocation2 + $0x8] sm:$0xf] %vm302, %v293
      %v304 = vlaneseq
      %v305 = vand.u32 %v304, 127
      %v306 = vadd.s32 %v305, 128
      %vm307 = vcmp.lt.s32.totalorder %v305, 0
      %v308 = vsub.s32 0, %v305
      %v309 = vsel %vm307, %v308, %v305
      %v310 = vshrl.u32 %v309, 4
      %v311 = vand.u32 %v309, 15
      %v312 = vsub.s32 0, %v311
      %v313 = vsel %vm307, %v312, %v311
      %vm314 = vcmp.lt.s32.totalorder %v306, 0
      %v315 = vsub.s32 0, %v306
      %v316 = vsel %vm314, %v315, %v306
      %v317 = vshrl.u32 %v316, 4
      %v318 = vand.u32 %v316, 15
      %v319 = vsub.s32 0, %v318
      %v320 = vsel %vm314, %v319, %v318
      %vm321 = vcmp.ne.s32.totalorder %v313, 0
      %vm322 = vcmp.ne.s32.totalorder %v320, 0
      %vm323 = vcmp.lt.s32.totalorder %v313, 0
      %vm324 = vcmp.lt.s32.totalorder %v320, 0
      %vm325 = vmand %vm323, %vm321
      %vm326 = vmand %vm324, %vm322
      %v327 = vadd.s32 %v313, 16
      %v328 = vadd.s32 %v320, 16
      %v329 = vsel %vm325, %v327, %v313
      %v330 = vsel %vm326, %v328, %v320
      %v331 = vadd.s32 %v329, 4294967294
      %v332 = vadd.s32 %v330, 4294967294
      %vm333 = vcmp.ge.s32.totalorder %v331, 0
      %vm334 = vcmp.ge.s32.totalorder %v332, 0
      %vm335 = vcmp.lt.s32.totalorder %v331, 16
      %vm336 = vcmp.lt.s32.totalorder %v332, 16
      %vm337 = vmand %vm333, %vm335
      %vm338 = vmand %vm334, %vm336
      %v339 = vadd.s32 %v329, 4294967295
      %v340 = vadd.s32 %v330, 4294967295
      %vm341 = vcmp.ge.s32.totalorder %v339, 0
      %vm342 = vcmp.ge.s32.totalorder %v340, 0
      %vm343 = vcmp.lt.s32.totalorder %v339, 16
      %vm344 = vcmp.lt.s32.totalorder %v340, 16
      %vm345 = vmand %vm341, %vm343
      %vm346 = vmand %vm342, %vm344
      %v347 = vadd.s32 %v329, 1
      %v348 = vadd.s32 %v330, 1
      %vm349 = vcmp.ge.s32.totalorder %v347, 0
      %vm350 = vcmp.ge.s32.totalorder %v348, 0
      %vm351 = vcmp.lt.s32.totalorder %v347, 16
      %vm352 = vcmp.lt.s32.totalorder %v348, 16
      %vm353 = vmand %vm349, %vm351
      %vm354 = vmand %vm350, %vm352
      %v355 = vadd.s32 %v329, 2
      %v356 = vadd.s32 %v330, 2
      %vm357 = vcmp.ge.s32.totalorder %v355, 0
      %vm358 = vcmp.ge.s32.totalorder %v356, 0
      %vm359 = vcmp.lt.s32.totalorder %v355, 16
      %vm360 = vcmp.lt.s32.totalorder %v356, 16
      %vm361 = vmand %vm357, %vm359
      %vm362 = vmand %vm358, %vm360
      %v363 = vld [vmem:[%s1] sm:$0xf]
      %v364 = vld [vmem:[%s2] sm:$0xf]
      %v365 = vld [vmem:[%s3] sm:$0xf]
      %v366 = vcombine.high %v283, %v283
      %vm367 = vcmask 31744
      %v369 = vsel %vm367, %v363, 0
      %vm371 = vcmask 1043456
      %v372 = vsel %vm371, %v283, 0
      %v374 = vsel %vm371, %v366, 0
      %376 = vmatprep.subr.mxu0 0.0
      %377 = vmatpush1.msra.mxu0 0.0
      %378 = vmatprep.subr.mxu0 0.0
      %379 = vmatpush1.msra.mxu0 0.0
      %380 = vmatprep.subr.mxu0 0.0
      %381 = vmatpush1.msra.mxu0 0.0
      %382 = vmatprep.subr.mxu0 0.0
      %383 = vmatpush1.msra.mxu0 0.0
      %384 = vmatprep.subr.mxu0 0.0
      %385 = vmatpush1.msra.mxu0 0.0
      %386 = vmatprep.subr.mxu0 0.0
      %387 = vmatpush1.msra.mxu0 0.0
      %388 = vmatprep.subr.mxu0 0.0
      %389 = vmatpush1.msra.mxu0 0.0
      %390 = vmatprep.subr.mxu0 0.0
      %391 = vmatpush1.msra.mxu0 0.0
      %392 = vmatprep.subr.mxu0 0.0
      %393 = vmatpush1.msra.mxu0 0.0
      %394 = vmatprep.subr.mxu0 0.0
      %395 = vmatpush1.msra.mxu0 0.0
      %396 = vmatprep.subr.mxu0 0.0
      %397 = vmatpush1.msra.mxu0 0.0
      %398 = vmatprep.subr.mxu0 0.0
      %399 = vmatpush1.msra.mxu0 0.0
      %400 = vmatprep.subr.mxu0 0.0
      %401 = vmatpush1.msra.mxu0 0.0
      %402 = vmatprep.subr.mxu0 0.0
      %403 = vmatpush1.msra.mxu0 0.0
      %404 = vmatprep.subr.mxu0 0.0
      %405 = vmatpush1.msra.mxu0 0.0
      %406 = vmatprep.subr.mxu0 %v374
      %407 = vmatpush1.msra.mxu0 %v372
      %408 = vmatprep.subr.mxu0 0.0
      %409 = vmatpush2.msra.mxu0 0.0
      %410 = vmatprep.subr.mxu0 0.0
      %411 = vmatpush2.msra.mxu0 0.0
      %412 = vmatprep.subr.mxu0 0.0
      %413 = vmatpush2.msra.mxu0 0.0
      %414 = vmatprep.subr.mxu0 0.0
      %415 = vmatpush2.msra.mxu0 0.0
      %416 = vmatprep.subr.mxu0 0.0
      %417 = vmatpush2.msra.mxu0 0.0
      %418 = vmatprep.subr.mxu0 0.0
      %419 = vmatpush2.msra.mxu0 0.0
      %420 = vmatprep.subr.mxu0 0.0
      %421 = vmatpush2.msra.mxu0 0.0
      %422 = vmatprep.subr.mxu0 0.0
      %423 = vmatpush2.msra.mxu0 0.0
      %424 = vmatprep.subr.mxu0 0.0
      %425 = vmatpush2.msra.mxu0 0.0
      %426 = vmatprep.subr.mxu0 0.0
      %427 = vmatpush2.msra.mxu0 0.0
      %428 = vmatprep.subr.mxu0 0.0
      %429 = vmatpush2.msra.mxu0 0.0
      %430 = vmatprep.subr.mxu0 0.0
      %431 = vmatpush2.msra.mxu0 0.0
      %432 = vmatprep.subr.mxu0 0.0
      %433 = vmatpush2.msra.mxu0 0.0
      %434 = vmatprep.subr.mxu0 0.0
      %435 = vmatpush2.msra.mxu0 0.0
      %436 = vmatprep.subr.mxu0 0.0
      %437 = vmatpush2.msra.mxu0 0.0
      %438 = vmatprep.subr.mxu0 0.0
      %439 = vmatpush2.msra.mxu0 0.0
      %440 = vmatprep.mubr.f32.mxu0 0.0
      %441 = vmatmul.mubr.f32.gmra.mxu0 %v369
      %v442 = vpop.f32.mrf.mxu0
      %v443 = vadd.f32 0.0, %v442
      %v444 = vpop.f32.mrf.mxu0
      %v445 = vadd.f32 0.0, %v444
      %446 = vdwg.mxu0
      %v447 = vld [vmem:[#allocation2] sm:$0xff]
      %v448 = vld [vmem:[#allocation2 + $0x8] sm:$0xf]
      %v449 = vsel %vm345, 1, 0
      %v450 = vsel %vm346, 1, 0
      %vm451 = vcmp.eq.s32.totalorder %v449, 1
      %vm452 = vcmp.eq.s32.totalorder %v450, 1
      %v455 = vcombine.high %v447, %v447
      %456 = vrot.lane.b32.xlu0 %v447, 111
      %v457 = vpop.permute.xlu0 %456
      %458 = vrot.lane.b32.xlu0 %v455, 111
      %v459 = vpop.permute.xlu0 %458
      %460 = vrot.lane.b32.xlu0 %v448, 111
      %v461 = vpop.permute.xlu0 %460
      %vm462 = vcmask 908288
      %v463 = vsel %vm462, %v457, %v459
      %v464 = vsel %vm462, %v459, %v461
      %v467 = vsel %vm451, %v463, 0.0
      %v468 = vsel %vm452, %v464, 0.0
      %v469 = vsel %vm337, 1, 0
      %v470 = vsel %vm338, 1, 0
      %vm471 = vcmp.eq.s32.totalorder %v469, 1
      %vm472 = vcmp.eq.s32.totalorder %v470, 1
      %v474 = vsel %vm471, %v447, 0.0
      %v475 = vsel %vm472, %v455, 0.0
      %v476 = vsel %vm353, 1, 0
      %v477 = vsel %vm354, 1, 0
      %vm478 = vcmp.eq.s32.totalorder %v476, 1
      %vm479 = vcmp.eq.s32.totalorder %v477, 1
      %480 = vrot.lane.b32.xlu0 %v447, 109
      %v481 = vpop.permute.xlu0 %480
      %482 = vrot.lane.b32.xlu0 %v455, 109
      %v483 = vpop.permute.xlu0 %482
      %484 = vrot.lane.b32.xlu0 %v448, 109
      %v485 = vpop.permute.xlu0 %484
      %vm486 = vcmask 891904
      %v487 = vsel %vm486, %v481, %v483
      %v488 = vsel %vm486, %v483, %v485
      %v491 = vsel %vm478, %v487, 0.0
      %v492 = vsel %vm479, %v488, 0.0
      %v493 = vsel %vm361, 1, 0
      %v494 = vsel %vm362, 1, 0
      %vm495 = vcmp.eq.s32.totalorder %v493, 1
      %vm496 = vcmp.eq.s32.totalorder %v494, 1
      %497 = vrot.lane.b32.xlu0 %v447, 124
      %v498 = vpop.permute.xlu0 %497
      %499 = vrot.lane.b32.xlu0 %v455, 124
      %v500 = vpop.permute.xlu0 %499
      %501 = vrot.lane.b32.xlu0 %v448, 124
      %v502 = vpop.permute.xlu0 %501
      %vm503 = vcmask 1014784
      %v504 = vsel %vm503, %v498, %v500
      %v505 = vsel %vm503, %v500, %v502
      %v508 = vsel %vm495, %v504, 0.0
      %v509 = vsel %vm496, %v505, 0.0
      %510 = vrot.lane.b32.xlu0 %v447, 95
      %v511 = vpop.permute.xlu0 %510
      %512 = vrot.lane.b32.xlu0 %v455, 95
      %v513 = vpop.permute.xlu0 %512
      %514 = vrot.lane.b32.xlu0 %v448, 95
      %v515 = vpop.permute.xlu0 %514
      %vm516 = vcmask 777216
      %v517 = vsel %vm516, %v511, %v513
      %v518 = vsel %vm516, %v513, %v515
      %v521 = vsel %vm451, %v517, 0.0
      %v522 = vsel %vm452, %v518, 0.0
      %523 = vrot.lane.b32.xlu0 %v447, 96
      %v524 = vpop.permute.xlu0 %523
      %525 = vrot.lane.b32.xlu0 %v455, 96
      %v526 = vpop.permute.xlu0 %525
      %527 = vrot.lane.b32.xlu0 %v448, 96
      %v528 = vpop.permute.xlu0 %527
      %vm529 = vcmask 785408
      %v530 = vsel %vm529, %v524, %v526
      %v531 = vsel %vm529, %v526, %v528
      %v534 = vsel %vm471, %v530, 0.0
      %v535 = vsel %vm472, %v531, 0.0
      %536 = vrot.lane.b32.xlu0 %v447, 93
      %v537 = vpop.permute.xlu0 %536
      %538 = vrot.lane.b32.xlu0 %v455, 93
      %v539 = vpop.permute.xlu0 %538
      %540 = vrot.lane.b32.xlu0 %v448, 93
      %v541 = vpop.permute.xlu0 %540
      %vm542 = vcmask 760832
      %v543 = vsel %vm542, %v537, %v539
      %v544 = vsel %vm542, %v539, %v541
      %v547 = vsel %vm478, %v543, 0.0
      %v548 = vsel %vm479, %v544, 0.0
      %549 = vrot.lane.b32.xlu0 %v447, 92
      %v550 = vpop.permute.xlu0 %549
      %551 = vrot.lane.b32.xlu0 %v455, 92
      %v552 = vpop.permute.xlu0 %551
      %553 = vrot.lane.b32.xlu0 %v448, 92
      %v554 = vpop.permute.xlu0 %553
      %vm555 = vcmask 752640
      %v556 = vsel %vm555, %v550, %v552
      %v557 = vsel %vm555, %v552, %v554
      %v560 = vsel %vm495, %v556, 0.0
      %v561 = vsel %vm496, %v557, 0.0
      %562 = vrot.lane.b32.xlu0 %v447, 79
      %v563 = vpop.permute.xlu0 %562
      %564 = vrot.lane.b32.xlu0 %v455, 79
      %v565 = vpop.permute.xlu0 %564
      %566 = vrot.lane.b32.xlu0 %v448, 79
      %v567 = vpop.permute.xlu0 %566
      %vm568 = vcmask 646144
      %v569 = vsel %vm568, %v563, %v565
      %v570 = vsel %vm568, %v565, %v567
      %v573 = vsel %vm451, %v569, 0.0
      %v574 = vsel %vm452, %v570, 0.0
      %575 = vrot.lane.b32.xlu0 %v447, 64
      %v576 = vpop.permute.xlu0 %575
      %577 = vrot.lane.b32.xlu0 %v455, 64
      %v578 = vpop.permute.xlu0 %577
      %579 = vrot.lane.b32.xlu0 %v448, 64
      %v580 = vpop.permute.xlu0 %579
      %vm581 = vcmask 523264
      %v582 = vsel %vm581, %v576, %v578
      %v583 = vsel %vm581, %v578, %v580
      %v586 = vsel %vm471, %v582, 0.0
      %v587 = vsel %vm472, %v583, 0.0
      %588 = vrot.lane.b32.xlu0 %v447, 77
      %v589 = vpop.permute.xlu0 %588
      %590 = vrot.lane.b32.xlu0 %v455, 77
      %v591 = vpop.permute.xlu0 %590
      %592 = vrot.lane.b32.xlu0 %v448, 77
      %v593 = vpop.permute.xlu0 %592
      %vm594 = vcmask 629760
      %v595 = vsel %vm594, %v589, %v591
      %v596 = vsel %vm594, %v591, %v593
      %v599 = vsel %vm478, %v595, 0.0
      %v600 = vsel %vm479, %v596, 0.0
      %601 = vrot.lane.b32.xlu0 %v447, 60
      %v602 = vpop.permute.xlu0 %601
      %603 = vrot.lane.b32.xlu0 %v455, 60
      %v604 = vpop.permute.xlu0 %603
      %605 = vrot.lane.b32.xlu0 %v448, 60
      %v606 = vpop.permute.xlu0 %605
      %vm607 = vcmask 490496
      %v608 = vsel %vm607, %v602, %v604
      %v609 = vsel %vm607, %v604, %v606
      %v612 = vsel %vm495, %v608, 0.0
      %v613 = vsel %vm496, %v609, 0.0
      %v614 = vcombine.low %v447, %v447
      %v615 = vcombine.low %v448, %v448
      %616 = vrot.lane.b32.xlu0 %v614, 110
      %v617 = vpop.permute.xlu0 %616
      %618 = vrot.lane.b32.xlu0 %v447, 110
      %v619 = vpop.permute.xlu0 %618
      %620 = vrot.lane.b32.xlu0 %v615, 110
      %v621 = vpop.permute.xlu0 %620
      %vm622 = vcmask 900096
      %v623 = vsel %vm622, %v617, %v619
      %v624 = vsel %vm622, %v619, %v621
      %v629 = vrot.slane %v521, 4
      %v630 = vrot.slane %v522, 4
      %v636 = vrot.slane %v547, 4
      %v637 = vrot.slane %v548, 4
      %640 = vrot.lane.b32.xlu0 %v614, 78
      %v641 = vpop.permute.xlu0 %640
      %642 = vrot.lane.b32.xlu0 %v447, 78
      %v643 = vpop.permute.xlu0 %642
      %644 = vrot.lane.b32.xlu0 %v615, 78
      %v645 = vpop.permute.xlu0 %644
      %vm646 = vcmask 637952
      %v647 = vsel %vm646, %v641, %v643
      %v648 = vsel %vm646, %v643, %v645
      %v651 = vsel %vm371, %v467, %v623
      %v652 = vsel %vm371, %v468, %v624
      %v653 = vsel %vm371, %v491, %v629
      %v654 = vsel %vm371, %v492, %v630
      %v655 = vsel %vm371, %v283, %v636
      %v656 = vsel %vm371, %v366, %v637
      %v657 = vsel %vm371, %v573, %v647
      %v658 = vsel %vm371, %v574, %v648
      %vm659 = vcmask 293888
      %v661 = vsel %vm659, %v364, 0
      %v664 = vsel %vm371, %v599, 0
      %v667 = vsel %vm371, %v600, 0
      %669 = vmatprep.subr.mxu0 0.0
      %670 = vmatpush1.msra.mxu0 0.0
      %671 = vmatprep.subr.mxu0 0.0
      %672 = vmatpush1.msra.mxu0 0.0
      %673 = vmatprep.subr.mxu0 0.0
      %674 = vmatpush1.msra.mxu0 0.0
      %675 = vmatprep.subr.mxu0 0.0
      %676 = vmatpush1.msra.mxu0 0.0
      %677 = vmatprep.subr.mxu0 0.0
      %678 = vmatpush1.msra.mxu0 0.0
      %679 = vmatprep.subr.mxu0 0.0
      %680 = vmatpush1.msra.mxu0 0.0
      %681 = vmatprep.subr.mxu0 0.0
      %682 = vmatpush1.msra.mxu0 0.0
      %683 = vmatprep.subr.mxu0 0.0
      %684 = vmatpush1.msra.mxu0 0.0
      %685 = vmatprep.subr.mxu0 0.0
      %686 = vmatpush1.msra.mxu0 0.0
      %687 = vmatprep.subr.mxu0 0.0
      %688 = vmatpush1.msra.mxu0 0.0
      %689 = vmatprep.subr.mxu0 0.0
      %690 = vmatpush1.msra.mxu0 0.0
      %691 = vmatprep.subr.mxu0 %v667
      %692 = vmatpush1.msra.mxu0 %v664
      %693 = vmatprep.subr.mxu0 %v658
      %694 = vmatpush1.msra.mxu0 %v657
      %695 = vmatprep.subr.mxu0 %v656
      %696 = vmatpush1.msra.mxu0 %v655
      %697 = vmatprep.subr.mxu0 %v654
      %698 = vmatpush1.msra.mxu0 %v653
      %699 = vmatprep.subr.mxu0 %v652
      %700 = vmatpush1.msra.mxu0 %v651
      %701 = vmatprep.subr.mxu0 0.0
      %702 = vmatpush2.msra.mxu0 0.0
      %703 = vmatprep.subr.mxu0 0.0
      %704 = vmatpush2.msra.mxu0 0.0
      %705 = vmatprep.subr.mxu0 0.0
      %706 = vmatpush2.msra.mxu0 0.0
      %707 = vmatprep.subr.mxu0 0.0
      %708 = vmatpush2.msra.mxu0 0.0
      %709 = vmatprep.subr.mxu0 0.0
      %710 = vmatpush2.msra.mxu0 0.0
      %711 = vmatprep.subr.mxu0 0.0
      %712 = vmatpush2.msra.mxu0 0.0
      %713 = vmatprep.subr.mxu0 0.0
      %714 = vmatpush2.msra.mxu0 0.0
      %715 = vmatprep.subr.mxu0 0.0
      %716 = vmatpush2.msra.mxu0 0.0
      %717 = vmatprep.subr.mxu0 0.0
      %718 = vmatpush2.msra.mxu0 0.0
      %719 = vmatprep.subr.mxu0 0.0
      %720 = vmatpush2.msra.mxu0 0.0
      %721 = vmatprep.subr.mxu0 0.0
      %722 = vmatpush2.msra.mxu0 0.0
      %723 = vmatprep.subr.mxu0 0.0
      %724 = vmatpush2.msra.mxu0 0.0
      %725 = vmatprep.subr.mxu0 0.0
      %726 = vmatpush2.msra.mxu0 0.0
      %727 = vmatprep.subr.mxu0 0.0
      %728 = vmatpush2.msra.mxu0 0.0
      %729 = vmatprep.subr.mxu0 0.0
      %730 = vmatpush2.msra.mxu0 0.0
      %731 = vmatprep.subr.mxu0 0.0
      %732 = vmatpush2.msra.mxu0 0.0
      %733 = vmatprep.mubr.f32.mxu0 0.0
      %734 = vmatmul.mubr.f32.gmra.mxu0 %v661
      %v735 = vpop.f32.mrf.mxu0
      %v736 = vadd.f32 0.0, %v735
      %v737 = vpop.f32.mrf.mxu0
      %v738 = vadd.f32 0.0, %v737
      %739 = vdwg.mxu0
      %740 = vrot.lane.b32.xlu0 %v614, 126
      %v741 = vpop.permute.xlu0 %740
      %742 = vrot.lane.b32.xlu0 %v447, 126
      %v743 = vpop.permute.xlu0 %742
      %744 = vrot.lane.b32.xlu0 %v615, 126
      %v745 = vpop.permute.xlu0 %744
      %vm746 = vcmask 1031168
      %v747 = vsel %vm746, %v741, %v743
      %v748 = vsel %vm746, %v743, %v745
      %v753 = vrot.slane %v534, 4
      %v754 = vrot.slane %v535, 4
      %v759 = vrot.slane %v560, 4
      %v760 = vrot.slane %v561, 4
      %763 = vrot.lane.b32.xlu0 %v614, 62
      %v764 = vpop.permute.xlu0 %763
      %765 = vrot.lane.b32.xlu0 %v447, 62
      %v766 = vpop.permute.xlu0 %765
      %767 = vrot.lane.b32.xlu0 %v615, 62
      %v768 = vpop.permute.xlu0 %767
      %vm769 = vcmask 506880
      %v770 = vsel %vm769, %v764, %v766
      %v771 = vsel %vm769, %v766, %v768
      %v774 = vsel %vm371, %v474, %v747
      %v775 = vsel %vm371, %v475, %v748
      %v776 = vsel %vm371, %v508, %v753
      %v777 = vsel %vm371, %v509, %v754
      %v778 = vsel %vm371, %v283, %v759
      %v779 = vsel %vm371, %v366, %v760
      %v780 = vsel %vm371, %v586, %v770
      %v781 = vsel %vm371, %v587, %v771
      %v783 = vsel %vm659, %v365, 0
      %v786 = vsel %vm371, %v612, 0
      %v789 = vsel %vm371, %v613, 0
      %791 = vmatprep.subr.mxu0 0.0
      %792 = vmatpush1.msra.mxu0 0.0
      %793 = vmatprep.subr.mxu0 0.0
      %794 = vmatpush1.msra.mxu0 0.0
      %795 = vmatprep.subr.mxu0 0.0
      %796 = vmatpush1.msra.mxu0 0.0
      %797 = vmatprep.subr.mxu0 0.0
      %798 = vmatpush1.msra.mxu0 0.0
      %799 = vmatprep.subr.mxu0 0.0
      %800 = vmatpush1.msra.mxu0 0.0
      %801 = vmatprep.subr.mxu0 0.0
      %802 = vmatpush1.msra.mxu0 0.0
      %803 = vmatprep.subr.mxu0 0.0
      %804 = vmatpush1.msra.mxu0 0.0
      %805 = vmatprep.subr.mxu0 0.0
      %806 = vmatpush1.msra.mxu0 0.0
      %807 = vmatprep.subr.mxu0 0.0
      %808 = vmatpush1.msra.mxu0 0.0
      %809 = vmatprep.subr.mxu0 0.0
      %810 = vmatpush1.msra.mxu0 0.0
      %811 = vmatprep.subr.mxu0 0.0
      %812 = vmatpush1.msra.mxu0 0.0
      %813 = vmatprep.subr.mxu0 %v789
      %814 = vmatpush1.msra.mxu0 %v786
      %815 = vmatprep.subr.mxu0 %v781
      %816 = vmatpush1.msra.mxu0 %v780
      %817 = vmatprep.subr.mxu0 %v779
      %818 = vmatpush1.msra.mxu0 %v778
      %819 = vmatprep.subr.mxu0 %v777
      %820 = vmatpush1.msra.mxu0 %v776
      %821 = vmatprep.subr.mxu0 %v775
      %822 = vmatpush1.msra.mxu0 %v774
      %823 = vmatprep.subr.mxu0 0.0
      %824 = vmatpush2.msra.mxu0 0.0
      %825 = vmatprep.subr.mxu0 0.0
      %826 = vmatpush2.msra.mxu0 0.0
      %827 = vmatprep.subr.mxu0 0.0
      %828 = vmatpush2.msra.mxu0 0.0
      %829 = vmatprep.subr.mxu0 0.0
      %830 = vmatpush2.msra.mxu0 0.0
      %831 = vmatprep.subr.mxu0 0.0
      %832 = vmatpush2.msra.mxu0 0.0
      %833 = vmatprep.subr.mxu0 0.0
      %834 = vmatpush2.msra.mxu0 0.0
      %835 = vmatprep.subr.mxu0 0.0
      %836 = vmatpush2.msra.mxu0 0.0
      %837 = vmatprep.subr.mxu0 0.0
      %838 = vmatpush2.msra.mxu0 0.0
      %839 = vmatprep.subr.mxu0 0.0
      %840 = vmatpush2.msra.mxu0 0.0
      %841 = vmatprep.subr.mxu0 0.0
      %842 = vmatpush2.msra.mxu0 0.0
      %843 = vmatprep.subr.mxu0 0.0
      %844 = vmatpush2.msra.mxu0 0.0
      %845 = vmatprep.subr.mxu0 0.0
      %846 = vmatpush2.msra.mxu0 0.0
      %847 = vmatprep.subr.mxu0 0.0
      %848 = vmatpush2.msra.mxu0 0.0
      %849 = vmatprep.subr.mxu0 0.0
      %850 = vmatpush2.msra.mxu0 0.0
      %851 = vmatprep.subr.mxu0 0.0
      %852 = vmatpush2.msra.mxu0 0.0
      %853 = vmatprep.subr.mxu0 0.0
      %854 = vmatpush2.msra.mxu0 0.0
      %855 = vmatprep.mubr.f32.mxu0 0.0
      %856 = vmatmul.mubr.f32.gmra.mxu0 %v783
      %v857 = vpop.f32.mrf.mxu0
      %v858 = vadd.f32 0.0, %v857
      %v859 = vpop.f32.mrf.mxu0
      %v860 = vadd.f32 0.0, %v859
      %861 = vdwg.mxu0
      %v862 = vld [vmem:[%s5] sm:$0xf]
      %864 = vset.pattern.permute.xlu0 0
      %865 = vperm.xlu0 %864, %v862
      %v866 = vpop.permute.xlu0 %865
      %v868 = vmul.f32 %v443, %v866
      %v869 = vmul.f32 %v445, %v866
      %870 = vset.pattern.permute.xlu0 3
      %871 = vperm.xlu0 %870, %v862
      %v872 = vpop.permute.xlu0 %871
      %v874 = vadd.f32 %v868, %v872
      %v875 = vadd.f32 %v869, %v872
      %v876 = vmax.f32 %v874, 0.0
      %v877 = vmax.f32 %v875, 0.0
      %878 = vset.pattern.permute.xlu0 1
      %879 = vperm.xlu0 %878, %v862
      %v880 = vpop.permute.xlu0 %879
      %v882 = vmul.f32 %v736, %v880
      %v883 = vmul.f32 %v738, %v880
      %884 = vset.pattern.permute.xlu0 4
      %885 = vperm.xlu0 %884, %v862
      %v886 = vpop.permute.xlu0 %885
      %v888 = vadd.f32 %v882, %v886
      %v889 = vadd.f32 %v883, %v886
      %v890 = vmax.f32 %v888, 0.0
      %v891 = vmax.f32 %v889, 0.0
      %892 = vset.pattern.permute.xlu0 2
      %893 = vperm.xlu0 %892, %v862
      %v894 = vpop.permute.xlu0 %893
      %v896 = vmul.f32 %v858, %v894
      %v897 = vmul.f32 %v860, %v894
      %898 = vset.pattern.permute.xlu0 5
      %899 = vperm.xlu0 %898, %v862
      %v900 = vpop.permute.xlu0 %899
      %v902 = vadd.f32 %v896, %v900
      %v903 = vadd.f32 %v897, %v900
      %v904 = vmax.f32 %v902, 0.0
      %v905 = vmax.f32 %v903, 0.0
      %v906 = vld [vmem:[%s4] sm:$0xf]
      %v909 = vrot.slane %v890, 4
      %v910 = vrot.slane %v891, 4
      %v913 = vsel %vm371, %v876, %v909
      %v914 = vsel %vm371, %v877, %v910
      %vm915 = vcmask 97280
      %v917 = vsel %vm915, %v906, 0
      %v920 = vsel %vm371, %v904, 0
      %v923 = vsel %vm371, %v905, 0
      %925 = vmatprep.subr.mxu0 0.0
      %926 = vmatpush1.msra.mxu0 0.0
      %927 = vmatprep.subr.mxu0 0.0
      %928 = vmatpush1.msra.mxu0 0.0
      %929 = vmatprep.subr.mxu0 0.0
      %930 = vmatpush1.msra.mxu0 0.0
      %931 = vmatprep.subr.mxu0 0.0
      %932 = vmatpush1.msra.mxu0 0.0
      %933 = vmatprep.subr.mxu0 0.0
      %934 = vmatpush1.msra.mxu0 0.0
      %935 = vmatprep.subr.mxu0 0.0
      %936 = vmatpush1.msra.mxu0 0.0
      %937 = vmatprep.subr.mxu0 0.0
      %938 = vmatpush1.msra.mxu0 0.0
      %939 = vmatprep.subr.mxu0 0.0
      %940 = vmatpush1.msra.mxu0 0.0
      %941 = vmatprep.subr.mxu0 0.0
      %942 = vmatpush1.msra.mxu0 0.0
      %943 = vmatprep.subr.mxu0 0.0
      %944 = vmatpush1.msra.mxu0 0.0
      %945 = vmatprep.subr.mxu0 0.0
      %946 = vmatpush1.msra.mxu0 0.0
      %947 = vmatprep.subr.mxu0 0.0
      %948 = vmatpush1.msra.mxu0 0.0
      %949 = vmatprep.subr.mxu0 0.0
      %950 = vmatpush1.msra.mxu0 0.0
      %951 = vmatprep.subr.mxu0 0.0
      %952 = vmatpush1.msra.mxu0 0.0
      %953 = vmatprep.subr.mxu0 %v923
      %954 = vmatpush1.msra.mxu0 %v920
      %955 = vmatprep.subr.mxu0 %v914
      %956 = vmatpush1.msra.mxu0 %v913
      %957 = vmatprep.subr.mxu0 0.0
      %958 = vmatpush2.msra.mxu0 0.0
      %959 = vmatprep.subr.mxu0 0.0
      %960 = vmatpush2.msra.mxu0 0.0
      %961 = vmatprep.subr.mxu0 0.0
      %962 = vmatpush2.msra.mxu0 0.0
      %963 = vmatprep.subr.mxu0 0.0
      %964 = vmatpush2.msra.mxu0 0.0
      %965 = vmatprep.subr.mxu0 0.0
      %966 = vmatpush2.msra.mxu0 0.0
      %967 = vmatprep.subr.mxu0 0.0
      %968 = vmatpush2.msra.mxu0 0.0
      %969 = vmatprep.subr.mxu0 0.0
      %970 = vmatpush2.msra.mxu0 0.0
      %971 = vmatprep.subr.mxu0 0.0
      %972 = vmatpush2.msra.mxu0 0.0
      %973 = vmatprep.subr.mxu0 0.0
      %974 = vmatpush2.msra.mxu0 0.0
      %975 = vmatprep.subr.mxu0 0.0
      %976 = vmatpush2.msra.mxu0 0.0
      %977 = vmatprep.subr.mxu0 0.0
      %978 = vmatpush2.msra.mxu0 0.0
      %979 = vmatprep.subr.mxu0 0.0
      %980 = vmatpush2.msra.mxu0 0.0
      %981 = vmatprep.subr.mxu0 0.0
      %982 = vmatpush2.msra.mxu0 0.0
      %983 = vmatprep.subr.mxu0 0.0
      %984 = vmatpush2.msra.mxu0 0.0
      %985 = vmatprep.subr.mxu0 0.0
      %986 = vmatpush2.msra.mxu0 0.0
      %987 = vmatprep.subr.mxu0 0.0
      %988 = vmatpush2.msra.mxu0 0.0
      %989 = vmatprep.mubr.f32.mxu0 0.0
      %990 = vmatmul.mubr.f32.gmra.mxu0 %v917
      %v991 = vpop.f32.mrf.mxu0
      %v992 = vadd.f32 0.0, %v991
      %v993 = vpop.f32.mrf.mxu0
      %v994 = vadd.f32 0.0, %v993
      %995 = vdwg.mxu0
      %v998 = vcombine.low %v992, %v994
      %1000 = vst [vmem:[%s276] sm:$0xff] %v998
      %v1001 = vld [vmem:[%s7] sm:$0xf]
      %v1002 = vsel %vm371, %v992, 0.0
      %v1003 = vsel %vm371, %v994, 0.0
      %v1004 = vadd.f32 %v1002, %v1003
      %1005 = vadd.xlane.f32.xlu0 %v1004
      %v1006 = vpop.xlane.xlu0 %1005
      %v1007 = vmul.f32 %v992, %v992
      %v1008 = vmul.f32 %v994, %v994
      %v1009 = vsel %vm371, %v1007, 0.0
      %v1010 = vsel %vm371, %v1008, 0.0
      %v1011 = vadd.f32 %v1009, %v1010
      %1012 = vadd.xlane.f32.xlu0 %v1011
      %v1013 = vpop.xlane.xlu0 %1012
      %vm1014 = vcmask 7168
      %v1015 = vsel %vm1014, %v1006, %v1013
      %v1016 = vadd.f32 %v1001, %v1015
      %vm1017 = vcmask 11264
      %1018 = vst.msk [vmem:[%s7] sm:$0xf] %vm1017, %v1016
      %p1019 = scmp.lt.s32.totalorder %s19, 1
      %s1020 = scalar_select %p1019, %s19, 1
      %s1021 = smul.addr %s1020, 2
      %s1022 = smul.addr %s1021, 4
      %s1023 = scalar_lea.vmem %s6, %s1022
      // Predicated region
      $region53: #{multi_scale_attention_gate.4} parent=43 // pred_check
        %p1024 = pneg %p168
      $region54: #{multi_scale_attention_gate.4} parent=43 // pred_check_branch
        %1026 = sbr.rel (%p1024) target = $region56
      $region55: #{multi_scale_attention_gate.4} parent=43 // pred_region
        _
      $region56: #{multi_scale_attention_gate.4} parent=43 // pred_fallthru
        _
      // Predicated region
      $region57: #{multi_scale_attention_gate.4} parent=43 // pred_check
        %p1027 = pneg %p189
      $region58: #{multi_scale_attention_gate.4} parent=43 // pred_check_branch
        %1029 = sbr.rel (%p1027) target = $region60
      $region59: #{multi_scale_attention_gate.4} parent=43 // pred_region
        _
      $region60: #{multi_scale_attention_gate.4} parent=43 // pred_fallthru
        _
      // Predicated region
      $region61: #{multi_scale_attention_gate.4} parent=43 // pred_check
        %p1030 = pneg %p189
      $region62: #{multi_scale_attention_gate.4} parent=43 // pred_check_branch
        %1032 = sbr.rel (%p1030) target = $region64
      $region63: #{multi_scale_attention_gate.4} parent=43 // pred_region
        _
      $region64: #{multi_scale_attention_gate.4} parent=43 // pred_fallthru
        _
    $region44: #{multi_scale_attention_gate.4} parent=5 // pred_fallthru
      _
    %p1033 = scmp.le.s32.totalorder 2, %s14
    // Predicated region
    $region65: #{multi_scale_attention_gate.4} parent=5 // pred_check
      %p1034 = pneg %p1033
    $region66: #{multi_scale_attention_gate.4} parent=5 // pred_check_branch
      %1036 = sbr.rel (%p1034) target = $region68
    $region67: #{multi_scale_attention_gate.4} parent=5 // pred_region
      %s1037 = ssub.s32 %s14, 2
      // Predicated region
      $region69: #{multi_scale_attention_gate.4} parent=67 // pred_check
        %p1038 = pneg %p174
      $region70: #{multi_scale_attention_gate.4} parent=67 // pred_check_branch
        %1040 = sbr.rel (%p1038) target = $region72
      $region71: #{multi_scale_attention_gate.4} parent=67 // pred_region
        %p1041 = scmp.lt.s32.totalorder %s20, 1
        %s1042 = scalar_select %p1041, %s20, 1
        %s1043 = smul.addr %s1042, 2
        %s1044 = smul.addr %s1043, 4
        %s1045 = scalar_lea.vmem %s6, %s1044
      $region72: #{multi_scale_attention_gate.4} parent=67 // pred_fallthru
        _
    $region68: #{multi_scale_attention_gate.4} parent=5 // pred_fallthru
      _
  $region6: #{multi_scale_attention_gate.4} parent=0 // loop_footer
    %s18 = sadd.s32 1, %s14
  $region7: #{multi_scale_attention_gate.4} parent=0 // loop_footer_branch
    %13 = sbr.rel target = $region3
  $region8: #{multi_scale_attention_gate.4} parent=0 // loop_exit
    _

</llo_original>
